<compile_context>
chip_gen: v6e
topology: v6e:2x2x1
jax: 0.10.0
libtpu: 0.0.40
codegen_flags: <defaults>
</compile_context>

<pallas_src>
import functools

import jax
import jax.numpy as jnp
from jax.experimental import pallas as pl
from jax.experimental.pallas import tpu as pltpu


def _round_up(x, m):
    return (x + m - 1) // m * m


# ----------------------------------------------------------------------------
# Kernel: full encoder MLP + merged (mu|logvar) head + exp, one batch tile / step
# ----------------------------------------------------------------------------
def _encoder_kernel(n_hidden, precision, *refs):
    # refs layout:
    #   x_tile, (W_i, b_i) * n_hidden, W_head, b_head,   <- inputs
    #   out_tile                                          <- output (TB, 2*head_pad)
    #
    # out_tile lanes:
    #   [0 : head_pad)            = head          = [mu | logvar | 0-pad]
    #   [head_pad : 2*head_pad)   = exp(0.5*head) = [exp(.5*mu) | std | 1-pad]
    # head_pad is a multiple of 128 -> every store below is an unmasked, lane-dense vst.
    x_ref = refs[0]
    out_ref = refs[-1]

    h = x_ref[...].astype(jnp.float32)
    idx = 1
    for _ in range(n_hidden):
        w = refs[idx][...]
        b = refs[idx + 1][...].astype(jnp.float32)
        idx += 2
        # matmul in the weight dtype (f32 HIGHEST or bf16), accumulate f32,
        # bias + ReLU in f32 (v5e has no bf16 VPU path).
        h = jnp.maximum(
            jnp.dot(h.astype(w.dtype), w,
                    preferred_element_type=jnp.float32, precision=precision) + b,
            0.0,
        )

    w_head = refs[idx][...]
    b_head = refs[idx + 1][...].astype(jnp.float32)
    # Single MXU push for both heads (already lane-padded to a multiple of 128).
    head = (
        jnp.dot(h.astype(w_head.dtype), w_head,
                preferred_element_type=jnp.float32, precision=precision)
        + b_head
    )
    # One EUP sweep over the whole padded head (same cost as slicing logvar out,
    # but with no lane-unaligned slice).  Pad lanes produce exp(0)=1, sliced off later.
    exp_half = jnp.exp(0.5 * head)

    hp = head.shape[-1]              # static, multiple of 128
    out_ref[:, :hp] = head           # 128-aligned, unmasked store
    out_ref[:, hp:] = exp_half       # 128-aligned, unmasked store


# ----------------------------------------------------------------------------
# One-time parameter packing (hoisted out of the per-forward path)
# ----------------------------------------------------------------------------
def prepare_encoder_params(hidden_params, mu_params, logvar_params, emb_dim,
                           weights_dtype=jnp.float32):
    """Cast hidden weights and merge fc_mu/fc_logvar into a lane-padded head.

    weights_dtype=jnp.bfloat16 enables the bf16 MXU fast path on v6e/v7x
    (f32 accumulation, f32 elementwise). Do this once at param load, not per call.
    """
    head_pad = _round_up(2 * emb_dim, 128)
    pad_cols = head_pad - 2 * emb_dim
    w_mu, b_mu = mu_params
    w_lv, b_lv = logvar_params
    in_dim = w_mu.shape[0]
    w_head = jnp.concatenate(
        [w_mu, w_lv, jnp.zeros((in_dim, pad_cols), w_mu.dtype)], axis=1
    ).astype(weights_dtype)
    b_head = jnp.concatenate(
        [b_mu, b_lv, jnp.zeros((1, pad_cols), b_mu.dtype)], axis=1
    ).astype(jnp.float32)
    return dict(
        hidden_w=tuple(w.astype(weights_dtype) for w, _ in hidden_params),
        hidden_b=tuple(b.astype(jnp.float32) for _, b in hidden_params),
        w_head=w_head,
        b_head=b_head,
        emb_dim=emb_dim,
        head_pad=head_pad,
        weights_dtype=weights_dtype,
    )


# ----------------------------------------------------------------------------
# Wrapper
# ----------------------------------------------------------------------------
def encoder_forward(x, prep, *, block_batch=512, use_core_parallel=False):
    """Fused encoder forward. Returns (mu, std, logvar), each (batch, emb_dim) f32."""
    batch, data_dim = x.shape
    emb_dim = prep["emb_dim"]
    head_pad = prep["head_pad"]
    hidden_w, hidden_b = prep["hidden_w"], prep["hidden_b"]
    w_head, b_head = prep["w_head"], prep["b_head"]

    # f32 weights: force true-f32 MXU accumulation (matches PyTorch numerics).
    # bf16 weights: native bf16 MXU path (f32 accumulation).
    precision = (jax.lax.Precision.HIGHEST
                 if prep["weights_dtype"] == jnp.float32 else None)

    # Batch tiling: one big tile when the whole batch fits (single grid step on
    # single-TC v5e/v6e), else TB-row tiles (multiple of 8 f32 sublanes).
    tb = min(_round_up(batch, 8), _round_up(block_batch, 8))
    padded = _round_up(batch, tb)
    x_p = x if padded == batch else jnp.pad(x, ((0, padded - batch), (0, 0)))
    grid = (padded // tb,)

    flat_in = [x_p]
    in_specs = [pl.BlockSpec((tb, data_dim), lambda i: (i, 0))]
    for w, b in zip(hidden_w, hidden_b):
        flat_in += [w, b]
        # Weights/biases: full-array blocks, constant index_map -> fetched once and
        # VMEM-resident across grid steps.  (At hidden widths >~1-2K, re-derive this
        # residency plan against v7x's 64 MiB VMEM / switch to bf16 or a K grid axis.)
        in_specs += [
            pl.BlockSpec(w.shape, lambda i: (0, 0)),
            pl.BlockSpec(b.shape, lambda i: (0, 0)),
        ]
    flat_in += [w_head, b_head]
    in_specs += [
        pl.BlockSpec(w_head.shape, lambda i: (0, 0)),
        pl.BlockSpec(b_head.shape, lambda i: (0, 0)),
    ]

    out_dim = 2 * head_pad   # [ head | exp(0.5*head) ], each 128-lane padded
    out_specs = pl.BlockSpec((tb, out_dim), lambda i: (i, 0))
    out_shape = jax.ShapeDtypeStruct((padded, out_dim), jnp.float32)

    # Tight VMEM hint from the actual working set (double-buffered tiles + resident
    # weights + activation scratch + headroom) instead of a blanket 32 MiB.
    def _nbytes(a):
        return int(a.size) * a.dtype.itemsize
    resident = sum(_nbytes(a) for a in flat_in[1:])
    tile_bytes = tb * data_dim * 4 + tb * out_dim * 4
    widths = [data_dim] + [w.shape[1] for w in hidden_w] + [head_pad]
    scratch = 4 * tb * max(widths) * 4
    vmem_limit = int(2 * (resident + tile_bytes) + scratch + (4 << 20))

    # Advisory cost estimate for the XLA scheduler.
    dims = [data_dim] + [w.shape[1] for w in hidden_w]
    flops = sum(2 * padded * dims[i] * dims[i + 1] for i in range(len(hidden_w)))
    flops += 2 * padded * dims[-1] * head_pad
    cost = pl.CostEstimate(
        flops=int(flops),
        transcendentals=int(padded * head_pad),
        bytes_accessed=int(resident + 4 * padded * (data_dim + out_dim)),
    )

    # v7x: CORE_PARALLEL shards batch-grid steps across both TensorCores.  On
    # single-TC v5e/v6e, plain "parallel"/"arbitrary" are equivalent, so default off.
    semantics = (pltpu.CORE_PARALLEL,) if use_core_parallel else ("parallel",)

    kernel = functools.partial(_encoder_kernel, len(hidden_w), precision)
    packed = pl.pallas_call(
        kernel,
        out_shape=out_shape,
        grid=grid,
        in_specs=in_specs,
        out_specs=out_specs,
        compiler_params=pltpu.CompilerParams(
            dimension_semantics=semantics,
            vmem_limit_bytes=vmem_limit,
        ),
        cost_estimate=cost,
    )(*flat_in)

    # Padded batch rows only see bias-driven values and are sliced off here;
    # nothing in the kernel reduces over them.
    mu = packed[:batch, :emb_dim]
    logvar = packed[:batch, emb_dim: 2 * emb_dim]
    std = packed[:batch, head_pad + emb_dim: head_pad + 2 * emb_dim]
    return mu, std, logvar


# ----------------------------------------------------------------------------
# Pure-JAX reference (matches the PyTorch module semantics; true-f32 dots)
# ----------------------------------------------------------------------------
def encoder_reference(x, hidden_params, mu_params, logvar_params):
    prec = jax.lax.Precision.HIGHEST
    h = x
    for w, b in hidden_params:
        h = jnp.maximum(
            jnp.dot(h, w, preferred_element_type=jnp.float32, precision=prec) + b, 0.0
        )
    mu = jnp.dot(h, mu_params[0], preferred_element_type=jnp.float32,
                 precision=prec) + mu_params[1]
    logvar = jnp.dot(h, logvar_params[0], preferred_element_type=jnp.float32,
                     precision=prec) + logvar_params[1]
    std = jnp.exp(0.5 * logvar)
    return mu, std, logvar


# ----------------------------------------------------------------------------
# Deterministic parameter init (PyTorch nn.Linear-style uniform), W stored as weight.T
# ----------------------------------------------------------------------------
def _init_linear(key, in_dim, out_dim):
    kw, kb = jax.random.split(key)
    bound = 1.0 / (in_dim ** 0.5)
    w = jax.random.uniform(kw, (in_dim, out_dim), jnp.float32, -bound, bound)
    b = jax.random.uniform(kb, (1, out_dim), jnp.float32, -bound, bound)
    return w, b


def init_encoder_params(key, data_dim, hiddens, emb_dim):
    params = {}
    hidden = []
    dim = data_dim
    for hid in hiddens:
        key, sub = jax.random.split(key)
        hidden.append(_init_linear(sub, dim, hid))
        dim = hid
    params["hidden"] = hidden
    key, sub = jax.random.split(key)
    params["fc_mu"] = _init_linear(sub, dim, emb_dim)
    key, sub = jax.random.split(key)
    params["fc_logvar"] = _init_linear(sub, dim, emb_dim)
    return params


# ----------------------------------------------------------------------------
# Main
# ----------------------------------------------------------------------------
if __name__ == "__main__":
    batch = 256
    data_dim = 32
    hiddens = (64, 32)
    emb_dim = 16

    key = jax.random.PRNGKey(0)
    key, kx, kparams = jax.random.split(key, 3)
    x = jax.random.normal(kx, (batch, data_dim), jnp.float32)
    params = init_encoder_params(kparams, data_dim, hiddens, emb_dim)

    ref_mu, ref_std, ref_logvar = encoder_reference(
        x, params["hidden"], params["fc_mu"], params["fc_logvar"]
    )

    # ---- f32 path, single grid step (default block_batch covers the batch) ----
    prep_f32 = prepare_encoder_params(
        params["hidden"], params["fc_mu"], params["fc_logvar"], emb_dim
    )
    mu, std, logvar = encoder_forward(x, prep_f32)
    jax.block_until_ready((mu, std, logvar))
    assert mu.shape == (batch, emb_dim)
    assert std.shape == (batch, emb_dim)
    assert logvar.shape == (batch, emb_dim)
    assert jnp.allclose(mu, ref_mu, rtol=1e-4, atol=1e-4)
    assert jnp.allclose(logvar, ref_logvar, rtol=1e-4, atol=1e-4)
    assert jnp.allclose(std, ref_std, rtol=1e-4, atol=1e-4)

    # ---- f32 path, 2-step batch grid (exercises the tiled / multi-step path) ----
    mu2, std2, logvar2 = encoder_forward(x, prep_f32, block_batch=128)
    jax.block_until_ready((mu2, std2, logvar2))
    assert jnp.allclose(mu2, ref_mu, rtol=1e-4, atol=1e-4)
    assert jnp.allclose(logvar2, ref_logvar, rtol=1e-4, atol=1e-4)
    assert jnp.allclose(std2, ref_std, rtol=1e-4, atol=1e-4)

    # ---- bf16-weight MXU fast path (v6e/v7x); f32 accumulation + f32 elementwise ----
    prep_bf16 = prepare_encoder_params(
        params["hidden"], params["fc_mu"], params["fc_logvar"], emb_dim,
        weights_dtype=jnp.bfloat16,
    )
    mu_bf, std_bf, logvar_bf = encoder_forward(x, prep_bf16)
    jax.block_until_ready((mu_bf, std_bf, logvar_bf))
    assert mu_bf.shape == (batch, emb_dim)
    assert jnp.allclose(mu_bf, ref_mu, rtol=3e-2, atol=3e-2)
    assert jnp.allclose(logvar_bf, ref_logvar, rtol=3e-2, atol=3e-2)
    assert jnp.allclose(std_bf, ref_std, rtol=3e-2, atol=3e-2)

    print("KERNEL_OK")
</pallas_src>

<mosaic_0001>
module attributes {stable_mosaic.version = 11 : i64} {
  func.func @_encoder_kernel(%arg0: i32, %arg1: memref<256x32xf32, #tpu.memory_space<vmem>>, %arg2: memref<32x64xf32, #tpu.memory_space<vmem>>, %arg3: memref<1x64xf32, #tpu.memory_space<vmem>>, %arg4: memref<64x32xf32, #tpu.memory_space<vmem>>, %arg5: memref<1x32xf32, #tpu.memory_space<vmem>>, %arg6: memref<32x128xf32, #tpu.memory_space<vmem>>, %arg7: memref<1x128xf32, #tpu.memory_space<vmem>>, %arg8: memref<256x256xf32, #tpu.memory_space<vmem>>) attributes {dimension_semantics = [#tpu.dimension_semantics<parallel>], iteration_bounds = array<i64: 1>, scalar_prefetch = 0 : i64, scratch_operands = 0 : i64, tpu.core_type = #tpu.core_type<tc>, window_params = [{transform_indices = @transform_0, window_bounds = array<i64: 256, 32>}, {pipeline_mode = #tpu.pipeline_mode<synchronous>, transform_indices = @transform_1, window_bounds = array<i64: 32, 64>}, {pipeline_mode = #tpu.pipeline_mode<synchronous>, transform_indices = @transform_2, window_bounds = array<i64: 1, 64>}, {pipeline_mode = #tpu.pipeline_mode<synchronous>, transform_indices = @transform_3, window_bounds = array<i64: 64, 32>}, {pipeline_mode = #tpu.pipeline_mode<synchronous>, transform_indices = @transform_4, window_bounds = array<i64: 1, 32>}, {pipeline_mode = #tpu.pipeline_mode<synchronous>, transform_indices = @transform_5, window_bounds = array<i64: 32, 128>}, {pipeline_mode = #tpu.pipeline_mode<synchronous>, transform_indices = @transform_6, window_bounds = array<i64: 1, 128>}, {transform_indices = @transform_7, window_bounds = array<i64: 256, 256>}]} {
    %c0 = arith.constant 0 : index
    %c0_0 = arith.constant 0 : index
    %0 = vector.load %arg1[%c0, %c0_0] : memref<256x32xf32, #tpu.memory_space<vmem>>, vector<256x32xf32>
    %c0_1 = arith.constant 0 : index
    %c0_2 = arith.constant 0 : index
    %1 = vector.load %arg2[%c0_1, %c0_2] : memref<32x64xf32, #tpu.memory_space<vmem>>, vector<32x64xf32>
    %c0_3 = arith.constant 0 : index
    %c0_4 = arith.constant 0 : index
    %2 = vector.load %arg3[%c0_3, %c0_4] : memref<1x64xf32, #tpu.memory_space<vmem>>, vector<1x64xf32>
    %cst = arith.constant dense<0.000000e+00> : vector<256x64xf32>
    %3 = tpu.matmul %0, %1, %cst {dimension_numbers = #tpu.dot_dimension_numbers<[1], [0], [0], [1], [0, 0, 1, 1], [], []>, precision = #tpu.contract_precision<fp32>} : vector<256x32xf32>, vector<32x64xf32>, vector<256x64xf32> -> vector<256x64xf32>
    %4 = vector.broadcast %2 : vector<1x64xf32> to vector<256x64xf32>
    %5 = arith.addf %3, %4 : vector<256x64xf32>
    %cst_5 = arith.constant 0.000000e+00 : f32
    %6 = vector.broadcast %cst_5 : f32 to vector<256x64xf32>
    %7 = arith.maximumf %5, %6 : vector<256x64xf32>
    %c0_6 = arith.constant 0 : index
    %c0_7 = arith.constant 0 : index
    %8 = vector.load %arg4[%c0_6, %c0_7] : memref<64x32xf32, #tpu.memory_space<vmem>>, vector<64x32xf32>
    %c0_8 = arith.constant 0 : index
    %c0_9 = arith.constant 0 : index
    %9 = vector.load %arg5[%c0_8, %c0_9] : memref<1x32xf32, #tpu.memory_space<vmem>>, vector<1x32xf32>
    %cst_10 = arith.constant dense<0.000000e+00> : vector<256x32xf32>
    %10 = tpu.matmul %7, %8, %cst_10 {dimension_numbers = #tpu.dot_dimension_numbers<[1], [0], [0], [1], [0, 0, 1, 1], [], []>, precision = #tpu.contract_precision<fp32>} : vector<256x64xf32>, vector<64x32xf32>, vector<256x32xf32> -> vector<256x32xf32>
    %11 = vector.broadcast %9 : vector<1x32xf32> to vector<256x32xf32>
    %12 = arith.addf %10, %11 : vector<256x32xf32>
    %cst_11 = arith.constant 0.000000e+00 : f32
    %13 = vector.broadcast %cst_11 : f32 to vector<256x32xf32>
    %14 = arith.maximumf %12, %13 : vector<256x32xf32>
    %c0_12 = arith.constant 0 : index
    %c0_13 = arith.constant 0 : index
    %15 = vector.load %arg6[%c0_12, %c0_13] : memref<32x128xf32, #tpu.memory_space<vmem>>, vector<32x128xf32>
    %c0_14 = arith.constant 0 : index
    %c0_15 = arith.constant 0 : index
    %16 = vector.load %arg7[%c0_14, %c0_15] : memref<1x128xf32, #tpu.memory_space<vmem>>, vector<1x128xf32>
    %cst_16 = arith.constant dense<0.000000e+00> : vector<256x128xf32>
    %17 = tpu.matmul %14, %15, %cst_16 {dimension_numbers = #tpu.dot_dimension_numbers<[1], [0], [0], [1], [0, 0, 1, 1], [], []>, precision = #tpu.contract_precision<fp32>} : vector<256x32xf32>, vector<32x128xf32>, vector<256x128xf32> -> vector<256x128xf32>
    %18 = vector.broadcast %16 : vector<1x128xf32> to vector<256x128xf32>
    %19 = arith.addf %17, %18 : vector<256x128xf32>
    %cst_17 = arith.constant 5.000000e-01 : f32
    %20 = vector.broadcast %cst_17 : f32 to vector<256x128xf32>
    %21 = arith.mulf %20, %19 : vector<256x128xf32>
    %22 = math.exp %21 : vector<256x128xf32>
    %c0_18 = arith.constant 0 : index
    %c0_19 = arith.constant 0 : index
    %23 = vector.load %arg8[%c0_18, %c0_19] : memref<256x256xf32, #tpu.memory_space<vmem>>, vector<256x128xf32>
    tpu.vector_store %arg8[%c0_18, %c0_19], %19 {strides = array<i32>} : memref<256x256xf32, #tpu.memory_space<vmem>>, vector<256x128xf32>,
    %c0_20 = arith.constant 0 : index
    %c128 = arith.constant 128 : index
    %24 = vector.load %arg8[%c0_20, %c128] : memref<256x256xf32, #tpu.memory_space<vmem>>, vector<256x128xf32>
    tpu.vector_store %arg8[%c0_20, %c128], %22 {strides = array<i32>} : memref<256x256xf32, #tpu.memory_space<vmem>>, vector<256x128xf32>,
    return
  }
  func.func @transform_0(%arg0: i32) -> (i32, i32) {
    %c0_i32 = arith.constant 0 : i32
    %c0_i32_0 = arith.constant 0 : i32
    return %arg0, %c0_i32 : i32, i32
  }
  func.func @transform_1(%arg0: i32) -> (i32, i32) {
    %c0_i32 = arith.constant 0 : i32
    %c0_i32_0 = arith.constant 0 : i32
    %c0_i32_1 = arith.constant 0 : i32
    return %c0_i32, %c0_i32_0 : i32, i32
  }
  func.func @transform_2(%arg0: i32) -> (i32, i32) {
    %c0_i32 = arith.constant 0 : i32
    %c0_i32_0 = arith.constant 0 : i32
    %c0_i32_1 = arith.constant 0 : i32
    return %c0_i32, %c0_i32_0 : i32, i32
  }
  func.func @transform_3(%arg0: i32) -> (i32, i32) {
    %c0_i32 = arith.constant 0 : i32
    %c0_i32_0 = arith.constant 0 : i32
    %c0_i32_1 = arith.constant 0 : i32
    return %c0_i32, %c0_i32_0 : i32, i32
  }
  func.func @transform_4(%arg0: i32) -> (i32, i32) {
    %c0_i32 = arith.constant 0 : i32
    %c0_i32_0 = arith.constant 0 : i32
    %c0_i32_1 = arith.constant 0 : i32
    return %c0_i32, %c0_i32_0 : i32, i32
  }
  func.func @transform_5(%arg0: i32) -> (i32, i32) {
    %c0_i32 = arith.constant 0 : i32
    %c0_i32_0 = arith.constant 0 : i32
    %c0_i32_1 = arith.constant 0 : i32
    return %c0_i32, %c0_i32_0 : i32, i32
  }
  func.func @transform_6(%arg0: i32) -> (i32, i32) {
    %c0_i32 = arith.constant 0 : i32
    %c0_i32_0 = arith.constant 0 : i32
    %c0_i32_1 = arith.constant 0 : i32
    return %c0_i32, %c0_i32_0 : i32, i32
  }
  func.func @transform_7(%arg0: i32) -> (i32, i32) {
    %c0_i32 = arith.constant 0 : i32
    %c0_i32_0 = arith.constant 0 : i32
    return %arg0, %c0_i32 : i32, i32
  }
}

</mosaic_0001>

<llo_original>
// kernel: tpu_custom_call.1
$region0: #{tpu_custom_call.1}
  #allocation0 [shape = 'u32[]', space=smem, size = 0x4, offset = 0x4, fixed_abs, tag = 'smem constant byte address 0x4 - core index']
  #allocation1 [shape = 'u32[144,128]{1,0:T(1,128)}', space=vmem, size = 0x12000, scoped, tag = 'internal scratch']
  %s0 = inlined_call_operand.vmem [shape: f32[256,32], index: 0, kind: input, shape index: {}]
  %s1 = inlined_call_operand.vmem [shape: f32[32,64], index: 1, kind: input, shape index: {}]
  %s2 = inlined_call_operand.vmem [shape: f32[1,64], index: 2, kind: input, shape index: {}]
  %s3 = inlined_call_operand.vmem [shape: f32[64,32], index: 3, kind: input, shape index: {}]
  %s4 = inlined_call_operand.vmem [shape: f32[1,32], index: 4, kind: input, shape index: {}]
  %s5 = inlined_call_operand.vmem [shape: f32[32,128], index: 5, kind: input, shape index: {}]
  %s6 = inlined_call_operand.vmem [shape: f32[1,128], index: 6, kind: input, shape index: {}]
  %s7 = inlined_call_operand.hbm [shape: f32[256,256], index: 7, kind: output, shape index: {}]
  %s8 = sld [smem:[#allocation0]]
  $region38: #{tpu_custom_call.1} parent=0
    _
  %s10 = ssub.s32 1, %s8
  %s11 = scalar_select 0, %s10, %s8
  $region1: #{tpu_custom_call.1} parent=0
    #allocation2 [shape = 'u8[262144]{0}', space=vmem, size = 0x40000, scoped, tag = 'output window, operand 0, single buffered']
    #allocation3 [shape = 's32[1]{0}', space=sflag, size = 0x4, scoped, tag = 'scoped memory for tpu_custom_call.1']
    %12 = vsyncpa [#allocation3], 0
    // Predicated region
    $region2: #{tpu_custom_call.1} parent=1 // pred_check
      _
    $region3: #{tpu_custom_call.1} parent=1 // pred_check_branch
      %14 = sbr.rel (0) target = $region5
    $region4: #{tpu_custom_call.1} parent=1 // pred_region
      _
    $region5: #{tpu_custom_call.1} parent=1 // pred_fallthru
      _
    // Predicated region
    $region6: #{tpu_custom_call.1} parent=1 // pred_check
      _
    $region7: #{tpu_custom_call.1} parent=1 // pred_check_branch
      %16 = sbr.rel (0) target = $region9
    $region8: #{tpu_custom_call.1} parent=1 // pred_region
      _
    $region9: #{tpu_custom_call.1} parent=1 // pred_fallthru
      _
    // Predicated region
    $region10: #{tpu_custom_call.1} parent=1 // pred_check
      _
    $region11: #{tpu_custom_call.1} parent=1 // pred_check_branch
      %18 = sbr.rel (0) target = $region13
    $region12: #{tpu_custom_call.1} parent=1 // pred_region
      _
    $region13: #{tpu_custom_call.1} parent=1 // pred_fallthru
      _
    // Predicated region
    $region14: #{tpu_custom_call.1} parent=1 // pred_check
      _
    $region15: #{tpu_custom_call.1} parent=1 // pred_check_branch
      %20 = sbr.rel (0) target = $region17
    $region16: #{tpu_custom_call.1} parent=1 // pred_region
      _
    $region17: #{tpu_custom_call.1} parent=1 // pred_fallthru
      _
    // Predicated region
    $region18: #{tpu_custom_call.1} parent=1 // pred_check
      _
    $region19: #{tpu_custom_call.1} parent=1 // pred_check_branch
      %22 = sbr.rel (0) target = $region21
    $region20: #{tpu_custom_call.1} parent=1 // pred_region
      _
    $region21: #{tpu_custom_call.1} parent=1 // pred_fallthru
      _
    // Predicated region
    $region22: #{tpu_custom_call.1} parent=1 // pred_check
      _
    $region23: #{tpu_custom_call.1} parent=1 // pred_check_branch
      %24 = sbr.rel (0) target = $region25
    $region24: #{tpu_custom_call.1} parent=1 // pred_region
      _
    $region25: #{tpu_custom_call.1} parent=1 // pred_fallthru
      _
    // Predicated region
    $region26: #{tpu_custom_call.1} parent=1 // pred_check
      _
    $region27: #{tpu_custom_call.1} parent=1 // pred_check_branch
      %26 = sbr.rel (0) target = $region29
    $region28: #{tpu_custom_call.1} parent=1 // pred_region
      _
    $region29: #{tpu_custom_call.1} parent=1 // pred_fallthru
      _
    %v27 = vld [vmem:[%s0] sm:$0xff]
    %v28 = vld [vmem:[%s0 + $0x8] sm:$0xff]
    %v29 = vld [vmem:[%s0 + $0x10] sm:$0xff]
    %v30 = vld [vmem:[%s0 + $0x18] sm:$0xff]
    %v31 = vld [vmem:[%s0 + $0x20] sm:$0xff]
    %v32 = vld [vmem:[%s0 + $0x28] sm:$0xff]
    %v33 = vld [vmem:[%s0 + $0x30] sm:$0xff]
    %v34 = vld [vmem:[%s0 + $0x38] sm:$0xff]
    %v35 = vld [vmem:[%s0 + $0x40] sm:$0xff]
    %v36 = vld [vmem:[%s0 + $0x48] sm:$0xff]
    %v37 = vld [vmem:[%s0 + $0x50] sm:$0xff]
    %v38 = vld [vmem:[%s0 + $0x58] sm:$0xff]
    %v39 = vld [vmem:[%s0 + $0x60] sm:$0xff]
    %v40 = vld [vmem:[%s0 + $0x68] sm:$0xff]
    %v41 = vld [vmem:[%s0 + $0x70] sm:$0xff]
    %v42 = vld [vmem:[%s0 + $0x78] sm:$0xff]
    %v43 = vld [vmem:[%s0 + $0x80] sm:$0xff]
    %v44 = vld [vmem:[%s0 + $0x88] sm:$0xff]
    %v45 = vld [vmem:[%s0 + $0x90] sm:$0xff]
    %v46 = vld [vmem:[%s0 + $0x98] sm:$0xff]
    %v47 = vld [vmem:[%s0 + $0xa0] sm:$0xff]
    %v48 = vld [vmem:[%s0 + $0xa8] sm:$0xff]
    %v49 = vld [vmem:[%s0 + $0xb0] sm:$0xff]
    %v50 = vld [vmem:[%s0 + $0xb8] sm:$0xff]
    %v51 = vld [vmem:[%s0 + $0xc0] sm:$0xff]
    %v52 = vld [vmem:[%s0 + $0xc8] sm:$0xff]
    %v53 = vld [vmem:[%s0 + $0xd0] sm:$0xff]
    %v54 = vld [vmem:[%s0 + $0xd8] sm:$0xff]
    %v55 = vld [vmem:[%s0 + $0xe0] sm:$0xff]
    %v56 = vld [vmem:[%s0 + $0xe8] sm:$0xff]
    %v57 = vld [vmem:[%s0 + $0xf0] sm:$0xff]
    %v58 = vld [vmem:[%s0 + $0xf8] sm:$0xff]
    %v59 = vld [vmem:[%s1] sm:$0xff]
    %v60 = vld [vmem:[%s1 + $0x8] sm:$0xff]
    %v61 = vld [vmem:[%s1 + $0x10] sm:$0xff]
    %v62 = vld [vmem:[%s1 + $0x18] sm:$0xff]
    %v63 = vld [vmem:[%s2] sm:$0x1]
    %v65 = vlaneseq
    %v66 = vshrl.u32 %v65, 7
    %v67 = vsub.s32 0, %v66
    %v68 = vrot.slane %v63, %v67
    %vm70 = vcmask 261120
    %v72 = vsel %vm70, %v27, 0
    %v75 = vsel %vm70, %v28, 0
    %v78 = vsel %vm70, %v29, 0
    %v81 = vsel %vm70, %v30, 0
    %v84 = vsel %vm70, %v31, 0
    %v87 = vsel %vm70, %v32, 0
    %v90 = vsel %vm70, %v33, 0
    %v93 = vsel %vm70, %v34, 0
    %v96 = vsel %vm70, %v35, 0
    %v99 = vsel %vm70, %v36, 0
    %v102 = vsel %vm70, %v37, 0
    %v105 = vsel %vm70, %v38, 0
    %v108 = vsel %vm70, %v39, 0
    %v111 = vsel %vm70, %v40, 0
    %v114 = vsel %vm70, %v41, 0
    %v117 = vsel %vm70, %v42, 0
    %v120 = vsel %vm70, %v43, 0
    %v123 = vsel %vm70, %v44, 0
    %v126 = vsel %vm70, %v45, 0
    %v129 = vsel %vm70, %v46, 0
    %v132 = vsel %vm70, %v47, 0
    %v135 = vsel %vm70, %v48, 0
    %v138 = vsel %vm70, %v49, 0
    %v141 = vsel %vm70, %v50, 0
    %v144 = vsel %vm70, %v51, 0
    %v147 = vsel %vm70, %v52, 0
    %v150 = vsel %vm70, %v53, 0
    %v153 = vsel %vm70, %v54, 0
    %v156 = vsel %vm70, %v55, 0
    %v159 = vsel %vm70, %v56, 0
    %v162 = vsel %vm70, %v57, 0
    %v165 = vsel %vm70, %v58, 0
    %167 = vmatprep.subr.mxu0 0.0
    %168 = vmatpush1.msra.mxu0 0.0
    %169 = vmatprep.subr.mxu0 0.0
    %170 = vmatpush1.msra.mxu0 0.0
    %171 = vmatprep.subr.mxu0 0.0
    %172 = vmatpush1.msra.mxu0 0.0
    %173 = vmatprep.subr.mxu0 0.0
    %174 = vmatpush1.msra.mxu0 0.0
    %175 = vmatprep.subr.mxu0 0.0
    %176 = vmatpush1.msra.mxu0 0.0
    %177 = vmatprep.subr.mxu0 0.0
    %178 = vmatpush1.msra.mxu0 0.0
    %179 = vmatprep.subr.mxu0 0.0
    %180 = vmatpush1.msra.mxu0 0.0
    %181 = vmatprep.subr.mxu0 0.0
    %182 = vmatpush1.msra.mxu0 0.0
    %183 = vmatprep.subr.mxu0 0.0
    %184 = vmatpush1.msra.mxu0 0.0
    %185 = vmatprep.subr.mxu0 0.0
    %186 = vmatpush1.msra.mxu0 0.0
    %187 = vmatprep.subr.mxu0 0.0
    %188 = vmatpush1.msra.mxu0 0.0
    %189 = vmatprep.subr.mxu0 0.0
    %190 = vmatpush1.msra.mxu0 0.0
    %191 = vmatprep.subr.mxu0 0.0
    %v192 = vand.u32 %v62, 4294901760
    %193 = vmatpush1.msra.mxu0 %v192
    %194 = vmatprep.subr.mxu0 0.0
    %v195 = vand.u32 %v61, 4294901760
    %196 = vmatpush1.msra.mxu0 %v195
    %197 = vmatprep.subr.mxu0 0.0
    %v198 = vand.u32 %v60, 4294901760
    %199 = vmatpush1.msra.mxu0 %v198
    %200 = vmatprep.subr.mxu0 0.0
    %v201 = vand.u32 %v59, 4294901760
    %202 = vmatpush1.msra.mxu0 %v201
    %203 = vmatprep.subr.mxu0 0.0
    %204 = vmatpush2.msra.mxu0 0.0
    %205 = vmatprep.subr.mxu0 0.0
    %206 = vmatpush2.msra.mxu0 0.0
    %207 = vmatprep.subr.mxu0 0.0
    %208 = vmatpush2.msra.mxu0 0.0
    %209 = vmatprep.subr.mxu0 0.0
    %210 = vmatpush2.msra.mxu0 0.0
    %211 = vmatprep.subr.mxu0 0.0
    %212 = vmatpush2.msra.mxu0 0.0
    %213 = vmatprep.subr.mxu0 0.0
    %214 = vmatpush2.msra.mxu0 0.0
    %215 = vmatprep.subr.mxu0 0.0
    %216 = vmatpush2.msra.mxu0 0.0
    %217 = vmatprep.subr.mxu0 0.0
    %218 = vmatpush2.msra.mxu0 0.0
    %219 = vmatprep.subr.mxu0 0.0
    %220 = vmatpush2.msra.mxu0 0.0
    %221 = vmatprep.subr.mxu0 0.0
    %222 = vmatpush2.msra.mxu0 0.0
    %223 = vmatprep.subr.mxu0 0.0
    %224 = vmatpush2.msra.mxu0 0.0
    %225 = vmatprep.subr.mxu0 0.0
    %226 = vmatpush2.msra.mxu0 0.0
    %227 = vmatprep.subr.mxu0 0.0
    %228 = vmatpush2.msra.mxu0 0.0
    %229 = vmatprep.subr.mxu0 0.0
    %230 = vmatpush2.msra.mxu0 0.0
    %231 = vmatprep.subr.mxu0 0.0
    %232 = vmatpush2.msra.mxu0 0.0
    %233 = vmatprep.subr.mxu0 0.0
    %234 = vmatpush2.msra.mxu0 0.0
    %235 = vmatprep.mubr.f32.mxu0 0.0
    %v236 = vand.u32 %v72, 4294901760
    %v237 = vsub.f32 %v72, %v236
    %v238 = vand.u32 %v237, 4294901760
    %v239 = vsub.f32 %v237, %v238
    %v240 = vand.u32 %v239, 4294901760
    %241 = vmatmul.mubr.f32.gmra.mxu0 %v240
    %v242 = vpop.f32.mrf.mxu0
    %v243 = vadd.f32 %v68, %v242
    %v244 = vpop.f32.mrf.mxu0
    %245 = vmatprep.mubr.f32.mxu0 0.0
    %v246 = vand.u32 %v75, 4294901760
    %v247 = vsub.f32 %v75, %v246
    %v248 = vand.u32 %v247, 4294901760
    %v249 = vsub.f32 %v247, %v248
    %v250 = vand.u32 %v249, 4294901760
    %251 = vmatmul.mubr.f32.gmra.mxu0 %v250
    %v252 = vpop.f32.mrf.mxu0
    %v253 = vadd.f32 %v68, %v252
    %v254 = vpop.f32.mrf.mxu0
    %255 = vmatprep.mubr.f32.mxu0 0.0
    %v256 = vand.u32 %v78, 4294901760
    %v257 = vsub.f32 %v78, %v256
    %v258 = vand.u32 %v257, 4294901760
    %v259 = vsub.f32 %v257, %v258
    %v260 = vand.u32 %v259, 4294901760
    %261 = vmatmul.mubr.f32.gmra.mxu0 %v260
    %v262 = vpop.f32.mrf.mxu0
    %v263 = vadd.f32 %v68, %v262
    %v264 = vpop.f32.mrf.mxu0
    %265 = vmatprep.mubr.f32.mxu0 0.0
    %v266 = vand.u32 %v81, 4294901760
    %v267 = vsub.f32 %v81, %v266
    %v268 = vand.u32 %v267, 4294901760
    %v269 = vsub.f32 %v267, %v268
    %v270 = vand.u32 %v269, 4294901760
    %271 = vmatmul.mubr.f32.gmra.mxu0 %v270
    %v272 = vpop.f32.mrf.mxu0
    %v273 = vadd.f32 %v68, %v272
    %v274 = vpop.f32.mrf.mxu0
    %275 = vmatprep.mubr.f32.mxu0 0.0
    %v276 = vand.u32 %v84, 4294901760
    %v277 = vsub.f32 %v84, %v276
    %v278 = vand.u32 %v277, 4294901760
    %v279 = vsub.f32 %v277, %v278
    %v280 = vand.u32 %v279, 4294901760
    %281 = vmatmul.mubr.f32.gmra.mxu0 %v280
    %v282 = vpop.f32.mrf.mxu0
    %v283 = vadd.f32 %v68, %v282
    %v284 = vpop.f32.mrf.mxu0
    %285 = vmatprep.mubr.f32.mxu0 0.0
    %v286 = vand.u32 %v87, 4294901760
    %v287 = vsub.f32 %v87, %v286
    %v288 = vand.u32 %v287, 4294901760
    %v289 = vsub.f32 %v287, %v288
    %v290 = vand.u32 %v289, 4294901760
    %291 = vmatmul.mubr.f32.gmra.mxu0 %v290
    %v292 = vpop.f32.mrf.mxu0
    %v293 = vadd.f32 %v68, %v292
    %v294 = vpop.f32.mrf.mxu0
    %295 = vmatprep.mubr.f32.mxu0 0.0
    %v296 = vand.u32 %v90, 4294901760
    %v297 = vsub.f32 %v90, %v296
    %v298 = vand.u32 %v297, 4294901760
    %v299 = vsub.f32 %v297, %v298
    %v300 = vand.u32 %v299, 4294901760
    %301 = vmatmul.mubr.f32.gmra.mxu0 %v300
    %v302 = vpop.f32.mrf.mxu0
    %v303 = vadd.f32 %v68, %v302
    %v304 = vpop.f32.mrf.mxu0
    %305 = vmatprep.mubr.f32.mxu0 0.0
    %v306 = vand.u32 %v93, 4294901760
    %v307 = vsub.f32 %v93, %v306
    %v308 = vand.u32 %v307, 4294901760
    %v309 = vsub.f32 %v307, %v308
    %v310 = vand.u32 %v309, 4294901760
    %311 = vmatmul.mubr.f32.gmra.mxu0 %v310
    %v312 = vpop.f32.mrf.mxu0
    %v313 = vadd.f32 %v68, %v312
    %v314 = vpop.f32.mrf.mxu0
    %315 = vmatprep.mubr.f32.mxu0 0.0
    %v316 = vand.u32 %v96, 4294901760
    %v317 = vsub.f32 %v96, %v316
    %v318 = vand.u32 %v317, 4294901760
    %v319 = vsub.f32 %v317, %v318
    %v320 = vand.u32 %v319, 4294901760
    %321 = vmatmul.mubr.f32.gmra.mxu0 %v320
    %v322 = vpop.f32.mrf.mxu0
    %v323 = vadd.f32 %v68, %v322
    %v324 = vpop.f32.mrf.mxu0
    %325 = vmatprep.mubr.f32.mxu0 0.0
    %v326 = vand.u32 %v99, 4294901760
    %v327 = vsub.f32 %v99, %v326
    %v328 = vand.u32 %v327, 4294901760
    %v329 = vsub.f32 %v327, %v328
    %v330 = vand.u32 %v329, 4294901760
    %331 = vmatmul.mubr.f32.gmra.mxu0 %v330
    %v332 = vpop.f32.mrf.mxu0
    %v333 = vadd.f32 %v68, %v332
    %v334 = vpop.f32.mrf.mxu0
    %335 = vmatprep.mubr.f32.mxu0 0.0
    %v336 = vand.u32 %v102, 4294901760
    %v337 = vsub.f32 %v102, %v336
    %v338 = vand.u32 %v337, 4294901760
    %v339 = vsub.f32 %v337, %v338
    %v340 = vand.u32 %v339, 4294901760
    %341 = vmatmul.mubr.f32.gmra.mxu0 %v340
    %v342 = vpop.f32.mrf.mxu0
    %v343 = vadd.f32 %v68, %v342
    %v344 = vpop.f32.mrf.mxu0
    %345 = vmatprep.mubr.f32.mxu0 0.0
    %v346 = vand.u32 %v105, 4294901760
    %v347 = vsub.f32 %v105, %v346
    %v348 = vand.u32 %v347, 4294901760
    %v349 = vsub.f32 %v347, %v348
    %v350 = vand.u32 %v349, 4294901760
    %351 = vmatmul.mubr.f32.gmra.mxu0 %v350
    %v352 = vpop.f32.mrf.mxu0
    %v353 = vadd.f32 %v68, %v352
    %v354 = vpop.f32.mrf.mxu0
    %355 = vmatprep.mubr.f32.mxu0 0.0
    %v356 = vand.u32 %v108, 4294901760
    %v357 = vsub.f32 %v108, %v356
    %v358 = vand.u32 %v357, 4294901760
    %v359 = vsub.f32 %v357, %v358
    %v360 = vand.u32 %v359, 4294901760
    %361 = vmatmul.mubr.f32.gmra.mxu0 %v360
    %v362 = vpop.f32.mrf.mxu0
    %v363 = vadd.f32 %v68, %v362
    %v364 = vpop.f32.mrf.mxu0
    %365 = vmatprep.mubr.f32.mxu0 0.0
    %v366 = vand.u32 %v111, 4294901760
    %v367 = vsub.f32 %v111, %v366
    %v368 = vand.u32 %v367, 4294901760
    %v369 = vsub.f32 %v367, %v368
    %v370 = vand.u32 %v369, 4294901760
    %371 = vmatmul.mubr.f32.gmra.mxu0 %v370
    %v372 = vpop.f32.mrf.mxu0
    %v373 = vadd.f32 %v68, %v372
    %v374 = vpop.f32.mrf.mxu0
    %375 = vmatprep.mubr.f32.mxu0 0.0
    %v376 = vand.u32 %v114, 4294901760
    %v377 = vsub.f32 %v114, %v376
    %v378 = vand.u32 %v377, 4294901760
    %v379 = vsub.f32 %v377, %v378
    %v380 = vand.u32 %v379, 4294901760
    %381 = vmatmul.mubr.f32.gmra.mxu0 %v380
    %v382 = vpop.f32.mrf.mxu0
    %v383 = vadd.f32 %v68, %v382
    %v384 = vpop.f32.mrf.mxu0
    %385 = vmatprep.mubr.f32.mxu0 0.0
    %v386 = vand.u32 %v117, 4294901760
    %v387 = vsub.f32 %v117, %v386
    %v388 = vand.u32 %v387, 4294901760
    %v389 = vsub.f32 %v387, %v388
    %v390 = vand.u32 %v389, 4294901760
    %391 = vmatmul.mubr.f32.gmra.mxu0 %v390
    %v392 = vpop.f32.mrf.mxu0
    %v393 = vadd.f32 %v68, %v392
    %v394 = vpop.f32.mrf.mxu0
    %395 = vmatprep.mubr.f32.mxu0 0.0
    %v396 = vand.u32 %v120, 4294901760
    %v397 = vsub.f32 %v120, %v396
    %v398 = vand.u32 %v397, 4294901760
    %v399 = vsub.f32 %v397, %v398
    %v400 = vand.u32 %v399, 4294901760
    %401 = vmatmul.mubr.f32.gmra.mxu0 %v400
    %v402 = vpop.f32.mrf.mxu0
    %v403 = vadd.f32 %v68, %v402
    %v404 = vpop.f32.mrf.mxu0
    %405 = vmatprep.mubr.f32.mxu0 0.0
    %v406 = vand.u32 %v123, 4294901760
    %v407 = vsub.f32 %v123, %v406
    %v408 = vand.u32 %v407, 4294901760
    %v409 = vsub.f32 %v407, %v408
    %v410 = vand.u32 %v409, 4294901760
    %411 = vmatmul.mubr.f32.gmra.mxu0 %v410
    %v412 = vpop.f32.mrf.mxu0
    %v413 = vadd.f32 %v68, %v412
    %v414 = vpop.f32.mrf.mxu0
    %415 = vmatprep.mubr.f32.mxu0 0.0
    %v416 = vand.u32 %v126, 4294901760
    %v417 = vsub.f32 %v126, %v416
    %v418 = vand.u32 %v417, 4294901760
    %v419 = vsub.f32 %v417, %v418
    %v420 = vand.u32 %v419, 4294901760
    %421 = vmatmul.mubr.f32.gmra.mxu0 %v420
    %v422 = vpop.f32.mrf.mxu0
    %v423 = vadd.f32 %v68, %v422
    %v424 = vpop.f32.mrf.mxu0
    %425 = vmatprep.mubr.f32.mxu0 0.0
    %v426 = vand.u32 %v129, 4294901760
    %v427 = vsub.f32 %v129, %v426
    %v428 = vand.u32 %v427, 4294901760
    %v429 = vsub.f32 %v427, %v428
    %v430 = vand.u32 %v429, 4294901760
    %431 = vmatmul.mubr.f32.gmra.mxu0 %v430
    %v432 = vpop.f32.mrf.mxu0
    %v433 = vadd.f32 %v68, %v432
    %v434 = vpop.f32.mrf.mxu0
    %435 = vmatprep.mubr.f32.mxu0 0.0
    %v436 = vand.u32 %v132, 4294901760
    %v437 = vsub.f32 %v132, %v436
    %v438 = vand.u32 %v437, 4294901760
    %v439 = vsub.f32 %v437, %v438
    %v440 = vand.u32 %v439, 4294901760
    %441 = vmatmul.mubr.f32.gmra.mxu0 %v440
    %v442 = vpop.f32.mrf.mxu0
    %v443 = vadd.f32 %v68, %v442
    %v444 = vpop.f32.mrf.mxu0
    %445 = vmatprep.mubr.f32.mxu0 0.0
    %v446 = vand.u32 %v135, 4294901760
    %v447 = vsub.f32 %v135, %v446
    %v448 = vand.u32 %v447, 4294901760
    %v449 = vsub.f32 %v447, %v448
    %v450 = vand.u32 %v449, 4294901760
    %451 = vmatmul.mubr.f32.gmra.mxu0 %v450
    %v452 = vpop.f32.mrf.mxu0
    %v453 = vadd.f32 %v68, %v452
    %v454 = vpop.f32.mrf.mxu0
    %455 = vmatprep.mubr.f32.mxu0 0.0
    %v456 = vand.u32 %v138, 4294901760
    %v457 = vsub.f32 %v138, %v456
    %v458 = vand.u32 %v457, 4294901760
    %v459 = vsub.f32 %v457, %v458
    %v460 = vand.u32 %v459, 4294901760
    %461 = vmatmul.mubr.f32.gmra.mxu0 %v460
    %v462 = vpop.f32.mrf.mxu0
    %v463 = vadd.f32 %v68, %v462
    %v464 = vpop.f32.mrf.mxu0
    %465 = vmatprep.mubr.f32.mxu0 0.0
    %v466 = vand.u32 %v141, 4294901760
    %v467 = vsub.f32 %v141, %v466
    %v468 = vand.u32 %v467, 4294901760
    %v469 = vsub.f32 %v467, %v468
    %v470 = vand.u32 %v469, 4294901760
    %471 = vmatmul.mubr.f32.gmra.mxu0 %v470
    %v472 = vpop.f32.mrf.mxu0
    %v473 = vadd.f32 %v68, %v472
    %v474 = vpop.f32.mrf.mxu0
    %475 = vmatprep.mubr.f32.mxu0 0.0
    %v476 = vand.u32 %v144, 4294901760
    %v477 = vsub.f32 %v144, %v476
    %v478 = vand.u32 %v477, 4294901760
    %v479 = vsub.f32 %v477, %v478
    %v480 = vand.u32 %v479, 4294901760
    %481 = vmatmul.mubr.f32.gmra.mxu0 %v480
    %v482 = vpop.f32.mrf.mxu0
    %v483 = vadd.f32 %v68, %v482
    %v484 = vpop.f32.mrf.mxu0
    %485 = vmatprep.mubr.f32.mxu0 0.0
    %v486 = vand.u32 %v147, 4294901760
    %v487 = vsub.f32 %v147, %v486
    %v488 = vand.u32 %v487, 4294901760
    %v489 = vsub.f32 %v487, %v488
    %v490 = vand.u32 %v489, 4294901760
    %491 = vmatmul.mubr.f32.gmra.mxu0 %v490
    %v492 = vpop.f32.mrf.mxu0
    %v493 = vadd.f32 %v68, %v492
    %v494 = vpop.f32.mrf.mxu0
    %495 = vmatprep.mubr.f32.mxu0 0.0
    %v496 = vand.u32 %v150, 4294901760
    %v497 = vsub.f32 %v150, %v496
    %v498 = vand.u32 %v497, 4294901760
    %v499 = vsub.f32 %v497, %v498
    %v500 = vand.u32 %v499, 4294901760
    %501 = vmatmul.mubr.f32.gmra.mxu0 %v500
    %v502 = vpop.f32.mrf.mxu0
    %v503 = vadd.f32 %v68, %v502
    %v504 = vpop.f32.mrf.mxu0
    %505 = vmatprep.mubr.f32.mxu0 0.0
    %v506 = vand.u32 %v153, 4294901760
    %v507 = vsub.f32 %v153, %v506
    %v508 = vand.u32 %v507, 4294901760
    %v509 = vsub.f32 %v507, %v508
    %v510 = vand.u32 %v509, 4294901760
    %511 = vmatmul.mubr.f32.gmra.mxu0 %v510
    %v512 = vpop.f32.mrf.mxu0
    %v513 = vadd.f32 %v68, %v512
    %v514 = vpop.f32.mrf.mxu0
    %515 = vmatprep.mubr.f32.mxu0 0.0
    %v516 = vand.u32 %v156, 4294901760
    %v517 = vsub.f32 %v156, %v516
    %v518 = vand.u32 %v517, 4294901760
    %v519 = vsub.f32 %v517, %v518
    %v520 = vand.u32 %v519, 4294901760
    %521 = vmatmul.mubr.f32.gmra.mxu0 %v520
    %v522 = vpop.f32.mrf.mxu0
    %v523 = vadd.f32 %v68, %v522
    %v524 = vpop.f32.mrf.mxu0
    %525 = vmatprep.mubr.f32.mxu0 0.0
    %v526 = vand.u32 %v159, 4294901760
    %v527 = vsub.f32 %v159, %v526
    %v528 = vand.u32 %v527, 4294901760
    %v529 = vsub.f32 %v527, %v528
    %v530 = vand.u32 %v529, 4294901760
    %531 = vmatmul.mubr.f32.gmra.mxu0 %v530
    %v532 = vpop.f32.mrf.mxu0
    %v533 = vadd.f32 %v68, %v532
    %v534 = vpop.f32.mrf.mxu0
    %535 = vmatprep.mubr.f32.mxu0 0.0
    %v536 = vand.u32 %v162, 4294901760
    %v537 = vsub.f32 %v162, %v536
    %v538 = vand.u32 %v537, 4294901760
    %v539 = vsub.f32 %v537, %v538
    %v540 = vand.u32 %v539, 4294901760
    %541 = vmatmul.mubr.f32.gmra.mxu0 %v540
    %v542 = vpop.f32.mrf.mxu0
    %v543 = vadd.f32 %v68, %v542
    %v544 = vpop.f32.mrf.mxu0
    %545 = vmatprep.mubr.f32.mxu0 0.0
    %v546 = vand.u32 %v165, 4294901760
    %v547 = vsub.f32 %v165, %v546
    %v548 = vand.u32 %v547, 4294901760
    %v549 = vsub.f32 %v547, %v548
    %v550 = vand.u32 %v549, 4294901760
    %551 = vmatmul.mubr.f32.gmra.mxu0 %v550
    %v552 = vpop.f32.mrf.mxu0
    %v553 = vadd.f32 %v68, %v552
    %v554 = vpop.f32.mrf.mxu0
    %555 = vdwg.mxu0
    %556 = vmatprep.subr.mxu0 0.0
    %557 = vmatpush1.msra.mxu0 0.0
    %558 = vmatprep.subr.mxu0 0.0
    %559 = vmatpush1.msra.mxu0 0.0
    %560 = vmatprep.subr.mxu0 0.0
    %561 = vmatpush1.msra.mxu0 0.0
    %562 = vmatprep.subr.mxu0 0.0
    %563 = vmatpush1.msra.mxu0 0.0
    %564 = vmatprep.subr.mxu0 0.0
    %565 = vmatpush1.msra.mxu0 0.0
    %566 = vmatprep.subr.mxu0 0.0
    %567 = vmatpush1.msra.mxu0 0.0
    %568 = vmatprep.subr.mxu0 0.0
    %569 = vmatpush1.msra.mxu0 0.0
    %570 = vmatprep.subr.mxu0 0.0
    %571 = vmatpush1.msra.mxu0 0.0
    %572 = vmatprep.subr.mxu0 0.0
    %573 = vmatpush1.msra.mxu0 0.0
    %574 = vmatprep.subr.mxu0 0.0
    %575 = vmatpush1.msra.mxu0 0.0
    %576 = vmatprep.subr.mxu0 0.0
    %577 = vmatpush1.msra.mxu0 0.0
    %578 = vmatprep.subr.mxu0 0.0
    %579 = vmatpush1.msra.mxu0 0.0
    %580 = vmatprep.subr.mxu0 0.0
    %v581 = vand.u32 %v62, 4294901760
    %v582 = vsub.f32 %v62, %v581
    %v583 = vand.u32 %v582, 4294901760
    %v584 = vsub.f32 %v582, %v583
    %v585 = vand.u32 %v584, 4294901760
    %586 = vmatpush1.msra.mxu0 %v585
    %587 = vmatprep.subr.mxu0 0.0
    %v588 = vand.u32 %v61, 4294901760
    %v589 = vsub.f32 %v61, %v588
    %v590 = vand.u32 %v589, 4294901760
    %v591 = vsub.f32 %v589, %v590
    %v592 = vand.u32 %v591, 4294901760
    %593 = vmatpush1.msra.mxu0 %v592
    %594 = vmatprep.subr.mxu0 0.0
    %v595 = vand.u32 %v60, 4294901760
    %v596 = vsub.f32 %v60, %v595
    %v597 = vand.u32 %v596, 4294901760
    %v598 = vsub.f32 %v596, %v597
    %v599 = vand.u32 %v598, 4294901760
    %600 = vmatpush1.msra.mxu0 %v599
    %601 = vmatprep.subr.mxu0 0.0
    %v602 = vand.u32 %v59, 4294901760
    %v603 = vsub.f32 %v59, %v602
    %v604 = vand.u32 %v603, 4294901760
    %v605 = vsub.f32 %v603, %v604
    %v606 = vand.u32 %v605, 4294901760
    %607 = vmatpush1.msra.mxu0 %v606
    %608 = vmatprep.subr.mxu0 0.0
    %609 = vmatpush2.msra.mxu0 0.0
    %610 = vmatprep.subr.mxu0 0.0
    %611 = vmatpush2.msra.mxu0 0.0
    %612 = vmatprep.subr.mxu0 0.0
    %613 = vmatpush2.msra.mxu0 0.0
    %614 = vmatprep.subr.mxu0 0.0
    %615 = vmatpush2.msra.mxu0 0.0
    %616 = vmatprep.subr.mxu0 0.0
    %617 = vmatpush2.msra.mxu0 0.0
    %618 = vmatprep.subr.mxu0 0.0
    %619 = vmatpush2.msra.mxu0 0.0
    %620 = vmatprep.subr.mxu0 0.0
    %621 = vmatpush2.msra.mxu0 0.0
    %622 = vmatprep.subr.mxu0 0.0
    %623 = vmatpush2.msra.mxu0 0.0
    %624 = vmatprep.subr.mxu0 0.0
    %625 = vmatpush2.msra.mxu0 0.0
    %626 = vmatprep.subr.mxu0 0.0
    %627 = vmatpush2.msra.mxu0 0.0
    %628 = vmatprep.subr.mxu0 0.0
    %629 = vmatpush2.msra.mxu0 0.0
    %630 = vmatprep.subr.mxu0 0.0
    %631 = vmatpush2.msra.mxu0 0.0
    %632 = vmatprep.subr.mxu0 0.0
    %633 = vmatpush2.msra.mxu0 0.0
    %634 = vmatprep.subr.mxu0 0.0
    %635 = vmatpush2.msra.mxu0 0.0
    %636 = vmatprep.subr.mxu0 0.0
    %637 = vmatpush2.msra.mxu0 0.0
    %638 = vmatprep.subr.mxu0 0.0
    %639 = vmatpush2.msra.mxu0 0.0
    %640 = vmatprep.mubr.f32.mxu0 0.0
    %v641 = vand.u32 %v72, 4294901760
    %642 = vmatmul.mubr.f32.gmra.mxu0 %v641
    %v643 = vpop.f32.mrf.mxu0
    %v644 = vadd.f32 %v243, %v643
    %v645 = vpop.f32.mrf.mxu0
    %646 = vmatprep.mubr.f32.mxu0 0.0
    %v647 = vand.u32 %v75, 4294901760
    %648 = vmatmul.mubr.f32.gmra.mxu0 %v647
    %v649 = vpop.f32.mrf.mxu0
    %v650 = vadd.f32 %v253, %v649
    %v651 = vpop.f32.mrf.mxu0
    %652 = vmatprep.mubr.f32.mxu0 0.0
    %v653 = vand.u32 %v78, 4294901760
    %654 = vmatmul.mubr.f32.gmra.mxu0 %v653
    %v655 = vpop.f32.mrf.mxu0
    %v656 = vadd.f32 %v263, %v655
    %v657 = vpop.f32.mrf.mxu0
    %658 = vmatprep.mubr.f32.mxu0 0.0
    %v659 = vand.u32 %v81, 4294901760
    %660 = vmatmul.mubr.f32.gmra.mxu0 %v659
    %v661 = vpop.f32.mrf.mxu0
    %v662 = vadd.f32 %v273, %v661
    %v663 = vpop.f32.mrf.mxu0
    %664 = vmatprep.mubr.f32.mxu0 0.0
    %v665 = vand.u32 %v84, 4294901760
    %666 = vmatmul.mubr.f32.gmra.mxu0 %v665
    %v667 = vpop.f32.mrf.mxu0
    %v668 = vadd.f32 %v283, %v667
    %v669 = vpop.f32.mrf.mxu0
    %670 = vmatprep.mubr.f32.mxu0 0.0
    %v671 = vand.u32 %v87, 4294901760
    %672 = vmatmul.mubr.f32.gmra.mxu0 %v671
    %v673 = vpop.f32.mrf.mxu0
    %v674 = vadd.f32 %v293, %v673
    %v675 = vpop.f32.mrf.mxu0
    %676 = vmatprep.mubr.f32.mxu0 0.0
    %v677 = vand.u32 %v90, 4294901760
    %678 = vmatmul.mubr.f32.gmra.mxu0 %v677
    %v679 = vpop.f32.mrf.mxu0
    %v680 = vadd.f32 %v303, %v679
    %v681 = vpop.f32.mrf.mxu0
    %682 = vmatprep.mubr.f32.mxu0 0.0
    %v683 = vand.u32 %v93, 4294901760
    %684 = vmatmul.mubr.f32.gmra.mxu0 %v683
    %v685 = vpop.f32.mrf.mxu0
    %v686 = vadd.f32 %v313, %v685
    %v687 = vpop.f32.mrf.mxu0
    %688 = vmatprep.mubr.f32.mxu0 0.0
    %v689 = vand.u32 %v96, 4294901760
    %690 = vmatmul.mubr.f32.gmra.mxu0 %v689
    %v691 = vpop.f32.mrf.mxu0
    %v692 = vadd.f32 %v323, %v691
    %v693 = vpop.f32.mrf.mxu0
    %694 = vmatprep.mubr.f32.mxu0 0.0
    %v695 = vand.u32 %v99, 4294901760
    %696 = vmatmul.mubr.f32.gmra.mxu0 %v695
    %v697 = vpop.f32.mrf.mxu0
    %v698 = vadd.f32 %v333, %v697
    %v699 = vpop.f32.mrf.mxu0
    %700 = vmatprep.mubr.f32.mxu0 0.0
    %v701 = vand.u32 %v102, 4294901760
    %702 = vmatmul.mubr.f32.gmra.mxu0 %v701
    %v703 = vpop.f32.mrf.mxu0
    %v704 = vadd.f32 %v343, %v703
    %v705 = vpop.f32.mrf.mxu0
    %706 = vmatprep.mubr.f32.mxu0 0.0
    %v707 = vand.u32 %v105, 4294901760
    %708 = vmatmul.mubr.f32.gmra.mxu0 %v707
    %v709 = vpop.f32.mrf.mxu0
    %v710 = vadd.f32 %v353, %v709
    %v711 = vpop.f32.mrf.mxu0
    %712 = vmatprep.mubr.f32.mxu0 0.0
    %v713 = vand.u32 %v108, 4294901760
    %714 = vmatmul.mubr.f32.gmra.mxu0 %v713
    %v715 = vpop.f32.mrf.mxu0
    %v716 = vadd.f32 %v363, %v715
    %v717 = vpop.f32.mrf.mxu0
    %718 = vmatprep.mubr.f32.mxu0 0.0
    %v719 = vand.u32 %v111, 4294901760
    %720 = vmatmul.mubr.f32.gmra.mxu0 %v719
    %v721 = vpop.f32.mrf.mxu0
    %v722 = vadd.f32 %v373, %v721
    %v723 = vpop.f32.mrf.mxu0
    %724 = vmatprep.mubr.f32.mxu0 0.0
    %v725 = vand.u32 %v114, 4294901760
    %726 = vmatmul.mubr.f32.gmra.mxu0 %v725
    %v727 = vpop.f32.mrf.mxu0
    %v728 = vadd.f32 %v383, %v727
    %v729 = vpop.f32.mrf.mxu0
    %730 = vmatprep.mubr.f32.mxu0 0.0
    %v731 = vand.u32 %v117, 4294901760
    %732 = vmatmul.mubr.f32.gmra.mxu0 %v731
    %v733 = vpop.f32.mrf.mxu0
    %v734 = vadd.f32 %v393, %v733
    %v735 = vpop.f32.mrf.mxu0
    %736 = vmatprep.mubr.f32.mxu0 0.0
    %v737 = vand.u32 %v120, 4294901760
    %738 = vmatmul.mubr.f32.gmra.mxu0 %v737
    %v739 = vpop.f32.mrf.mxu0
    %v740 = vadd.f32 %v403, %v739
    %v741 = vpop.f32.mrf.mxu0
    %742 = vmatprep.mubr.f32.mxu0 0.0
    %v743 = vand.u32 %v123, 4294901760
    %744 = vmatmul.mubr.f32.gmra.mxu0 %v743
    %v745 = vpop.f32.mrf.mxu0
    %v746 = vadd.f32 %v413, %v745
    %v747 = vpop.f32.mrf.mxu0
    %748 = vmatprep.mubr.f32.mxu0 0.0
    %v749 = vand.u32 %v126, 4294901760
    %750 = vmatmul.mubr.f32.gmra.mxu0 %v749
    %v751 = vpop.f32.mrf.mxu0
    %v752 = vadd.f32 %v423, %v751
    %v753 = vpop.f32.mrf.mxu0
    %754 = vmatprep.mubr.f32.mxu0 0.0
    %v755 = vand.u32 %v129, 4294901760
    %756 = vmatmul.mubr.f32.gmra.mxu0 %v755
    %v757 = vpop.f32.mrf.mxu0
    %v758 = vadd.f32 %v433, %v757
    %v759 = vpop.f32.mrf.mxu0
    %760 = vmatprep.mubr.f32.mxu0 0.0
    %v761 = vand.u32 %v132, 4294901760
    %762 = vmatmul.mubr.f32.gmra.mxu0 %v761
    %v763 = vpop.f32.mrf.mxu0
    %v764 = vadd.f32 %v443, %v763
    %v765 = vpop.f32.mrf.mxu0
    %766 = vmatprep.mubr.f32.mxu0 0.0
    %v767 = vand.u32 %v135, 4294901760
    %768 = vmatmul.mubr.f32.gmra.mxu0 %v767
    %v769 = vpop.f32.mrf.mxu0
    %v770 = vadd.f32 %v453, %v769
    %v771 = vpop.f32.mrf.mxu0
    %772 = vmatprep.mubr.f32.mxu0 0.0
    %v773 = vand.u32 %v138, 4294901760
    %774 = vmatmul.mubr.f32.gmra.mxu0 %v773
    %v775 = vpop.f32.mrf.mxu0
    %v776 = vadd.f32 %v463, %v775
    %v777 = vpop.f32.mrf.mxu0
    %778 = vmatprep.mubr.f32.mxu0 0.0
    %v779 = vand.u32 %v141, 4294901760
    %780 = vmatmul.mubr.f32.gmra.mxu0 %v779
    %v781 = vpop.f32.mrf.mxu0
    %v782 = vadd.f32 %v473, %v781
    %v783 = vpop.f32.mrf.mxu0
    %784 = vmatprep.mubr.f32.mxu0 0.0
    %v785 = vand.u32 %v144, 4294901760
    %786 = vmatmul.mubr.f32.gmra.mxu0 %v785
    %v787 = vpop.f32.mrf.mxu0
    %v788 = vadd.f32 %v483, %v787
    %v789 = vpop.f32.mrf.mxu0
    %790 = vmatprep.mubr.f32.mxu0 0.0
    %v791 = vand.u32 %v147, 4294901760
    %792 = vmatmul.mubr.f32.gmra.mxu0 %v791
    %v793 = vpop.f32.mrf.mxu0
    %v794 = vadd.f32 %v493, %v793
    %v795 = vpop.f32.mrf.mxu0
    %796 = vmatprep.mubr.f32.mxu0 0.0
    %v797 = vand.u32 %v150, 4294901760
    %798 = vmatmul.mubr.f32.gmra.mxu0 %v797
    %v799 = vpop.f32.mrf.mxu0
    %v800 = vadd.f32 %v503, %v799
    %v801 = vpop.f32.mrf.mxu0
    %802 = vmatprep.mubr.f32.mxu0 0.0
    %v803 = vand.u32 %v153, 4294901760
    %804 = vmatmul.mubr.f32.gmra.mxu0 %v803
    %v805 = vpop.f32.mrf.mxu0
    %v806 = vadd.f32 %v513, %v805
    %v807 = vpop.f32.mrf.mxu0
    %808 = vmatprep.mubr.f32.mxu0 0.0
    %v809 = vand.u32 %v156, 4294901760
    %810 = vmatmul.mubr.f32.gmra.mxu0 %v809
    %v811 = vpop.f32.mrf.mxu0
    %v812 = vadd.f32 %v523, %v811
    %v813 = vpop.f32.mrf.mxu0
    %814 = vmatprep.mubr.f32.mxu0 0.0
    %v815 = vand.u32 %v159, 4294901760
    %816 = vmatmul.mubr.f32.gmra.mxu0 %v815
    %v817 = vpop.f32.mrf.mxu0
    %v818 = vadd.f32 %v533, %v817
    %v819 = vpop.f32.mrf.mxu0
    %820 = vmatprep.mubr.f32.mxu0 0.0
    %v821 = vand.u32 %v162, 4294901760
    %822 = vmatmul.mubr.f32.gmra.mxu0 %v821
    %v823 = vpop.f32.mrf.mxu0
    %v824 = vadd.f32 %v543, %v823
    %v825 = vpop.f32.mrf.mxu0
    %826 = vmatprep.mubr.f32.mxu0 0.0
    %v827 = vand.u32 %v165, 4294901760
    %828 = vmatmul.mubr.f32.gmra.mxu0 %v827
    %v829 = vpop.f32.mrf.mxu0
    %v830 = vadd.f32 %v553, %v829
    %v831 = vpop.f32.mrf.mxu0
    %832 = vdwg.mxu0
    %833 = vmatprep.subr.mxu0 0.0
    %834 = vmatpush1.msra.mxu0 0.0
    %835 = vmatprep.subr.mxu0 0.0
    %836 = vmatpush1.msra.mxu0 0.0
    %837 = vmatprep.subr.mxu0 0.0
    %838 = vmatpush1.msra.mxu0 0.0
    %839 = vmatprep.subr.mxu0 0.0
    %840 = vmatpush1.msra.mxu0 0.0
    %841 = vmatprep.subr.mxu0 0.0
    %842 = vmatpush1.msra.mxu0 0.0
    %843 = vmatprep.subr.mxu0 0.0
    %844 = vmatpush1.msra.mxu0 0.0
    %845 = vmatprep.subr.mxu0 0.0
    %846 = vmatpush1.msra.mxu0 0.0
    %847 = vmatprep.subr.mxu0 0.0
    %848 = vmatpush1.msra.mxu0 0.0
    %849 = vmatprep.subr.mxu0 0.0
    %850 = vmatpush1.msra.mxu0 0.0
    %851 = vmatprep.subr.mxu0 0.0
    %852 = vmatpush1.msra.mxu0 0.0
    %853 = vmatprep.subr.mxu0 0.0
    %854 = vmatpush1.msra.mxu0 0.0
    %855 = vmatprep.subr.mxu0 0.0
    %856 = vmatpush1.msra.mxu0 0.0
    %857 = vmatprep.subr.mxu0 0.0
    %v858 = vand.u32 %v62, 4294901760
    %v859 = vsub.f32 %v62, %v858
    %860 = vmatpush1.msra.mxu0 %v859
    %861 = vmatprep.subr.mxu0 0.0
    %v862 = vand.u32 %v61, 4294901760
    %v863 = vsub.f32 %v61, %v862
    %864 = vmatpush1.msra.mxu0 %v863
    %865 = vmatprep.subr.mxu0 0.0
    %v866 = vand.u32 %v60, 4294901760
    %v867 = vsub.f32 %v60, %v866
    %868 = vmatpush1.msra.mxu0 %v867
    %869 = vmatprep.subr.mxu0 0.0
    %v870 = vand.u32 %v59, 4294901760
    %v871 = vsub.f32 %v59, %v870
    %872 = vmatpush1.msra.mxu0 %v871
    %873 = vmatprep.subr.mxu0 0.0
    %874 = vmatpush2.msra.mxu0 0.0
    %875 = vmatprep.subr.mxu0 0.0
    %876 = vmatpush2.msra.mxu0 0.0
    %877 = vmatprep.subr.mxu0 0.0
    %878 = vmatpush2.msra.mxu0 0.0
    %879 = vmatprep.subr.mxu0 0.0
    %880 = vmatpush2.msra.mxu0 0.0
    %881 = vmatprep.subr.mxu0 0.0
    %882 = vmatpush2.msra.mxu0 0.0
    %883 = vmatprep.subr.mxu0 0.0
    %884 = vmatpush2.msra.mxu0 0.0
    %885 = vmatprep.subr.mxu0 0.0
    %886 = vmatpush2.msra.mxu0 0.0
    %887 = vmatprep.subr.mxu0 0.0
    %888 = vmatpush2.msra.mxu0 0.0
    %889 = vmatprep.subr.mxu0 0.0
    %890 = vmatpush2.msra.mxu0 0.0
    %891 = vmatprep.subr.mxu0 0.0
    %892 = vmatpush2.msra.mxu0 0.0
    %893 = vmatprep.subr.mxu0 0.0
    %894 = vmatpush2.msra.mxu0 0.0
    %895 = vmatprep.subr.mxu0 0.0
    %896 = vmatpush2.msra.mxu0 0.0
    %897 = vmatprep.subr.mxu0 0.0
    %898 = vmatpush2.msra.mxu0 0.0
    %899 = vmatprep.subr.mxu0 0.0
    %900 = vmatpush2.msra.mxu0 0.0
    %901 = vmatprep.subr.mxu0 0.0
    %902 = vmatpush2.msra.mxu0 0.0
    %903 = vmatprep.subr.mxu0 0.0
    %904 = vmatpush2.msra.mxu0 0.0
    %905 = vmatprep.mubr.f32.mxu0 0.0
    %v906 = vand.u32 %v72, 4294901760
    %v907 = vsub.f32 %v72, %v906
    %908 = vmatmul.mubr.f32.gmra.mxu0 %v907
    %v909 = vpop.f32.mrf.mxu0
    %v910 = vadd.f32 %v644, %v909
    %v911 = vpop.f32.mrf.mxu0
    %912 = vmatprep.mubr.f32.mxu0 0.0
    %v913 = vand.u32 %v75, 4294901760
    %v914 = vsub.f32 %v75, %v913
    %915 = vmatmul.mubr.f32.gmra.mxu0 %v914
    %v916 = vpop.f32.mrf.mxu0
    %v917 = vadd.f32 %v650, %v916
    %v918 = vpop.f32.mrf.mxu0
    %919 = vmatprep.mubr.f32.mxu0 0.0
    %v920 = vand.u32 %v78, 4294901760
    %v921 = vsub.f32 %v78, %v920
    %922 = vmatmul.mubr.f32.gmra.mxu0 %v921
    %v923 = vpop.f32.mrf.mxu0
    %v924 = vadd.f32 %v656, %v923
    %v925 = vpop.f32.mrf.mxu0
    %926 = vmatprep.mubr.f32.mxu0 0.0
    %v927 = vand.u32 %v81, 4294901760
    %v928 = vsub.f32 %v81, %v927
    %929 = vmatmul.mubr.f32.gmra.mxu0 %v928
    %v930 = vpop.f32.mrf.mxu0
    %v931 = vadd.f32 %v662, %v930
    %v932 = vpop.f32.mrf.mxu0
    %933 = vmatprep.mubr.f32.mxu0 0.0
    %v934 = vand.u32 %v84, 4294901760
    %v935 = vsub.f32 %v84, %v934
    %936 = vmatmul.mubr.f32.gmra.mxu0 %v935
    %v937 = vpop.f32.mrf.mxu0
    %v938 = vadd.f32 %v668, %v937
    %v939 = vpop.f32.mrf.mxu0
    %940 = vmatprep.mubr.f32.mxu0 0.0
    %v941 = vand.u32 %v87, 4294901760
    %v942 = vsub.f32 %v87, %v941
    %943 = vmatmul.mubr.f32.gmra.mxu0 %v942
    %v944 = vpop.f32.mrf.mxu0
    %v945 = vadd.f32 %v674, %v944
    %v946 = vpop.f32.mrf.mxu0
    %947 = vmatprep.mubr.f32.mxu0 0.0
    %v948 = vand.u32 %v90, 4294901760
    %v949 = vsub.f32 %v90, %v948
    %950 = vmatmul.mubr.f32.gmra.mxu0 %v949
    %v951 = vpop.f32.mrf.mxu0
    %v952 = vadd.f32 %v680, %v951
    %v953 = vpop.f32.mrf.mxu0
    %954 = vmatprep.mubr.f32.mxu0 0.0
    %v955 = vand.u32 %v93, 4294901760
    %v956 = vsub.f32 %v93, %v955
    %957 = vmatmul.mubr.f32.gmra.mxu0 %v956
    %v958 = vpop.f32.mrf.mxu0
    %v959 = vadd.f32 %v686, %v958
    %v960 = vpop.f32.mrf.mxu0
    %961 = vmatprep.mubr.f32.mxu0 0.0
    %v962 = vand.u32 %v96, 4294901760
    %v963 = vsub.f32 %v96, %v962
    %964 = vmatmul.mubr.f32.gmra.mxu0 %v963
    %v965 = vpop.f32.mrf.mxu0
    %v966 = vadd.f32 %v692, %v965
    %v967 = vpop.f32.mrf.mxu0
    %968 = vmatprep.mubr.f32.mxu0 0.0
    %v969 = vand.u32 %v99, 4294901760
    %v970 = vsub.f32 %v99, %v969
    %971 = vmatmul.mubr.f32.gmra.mxu0 %v970
    %v972 = vpop.f32.mrf.mxu0
    %v973 = vadd.f32 %v698, %v972
    %v974 = vpop.f32.mrf.mxu0
    %975 = vmatprep.mubr.f32.mxu0 0.0
    %v976 = vand.u32 %v102, 4294901760
    %v977 = vsub.f32 %v102, %v976
    %978 = vmatmul.mubr.f32.gmra.mxu0 %v977
    %v979 = vpop.f32.mrf.mxu0
    %v980 = vadd.f32 %v704, %v979
    %v981 = vpop.f32.mrf.mxu0
    %982 = vmatprep.mubr.f32.mxu0 0.0
    %v983 = vand.u32 %v105, 4294901760
    %v984 = vsub.f32 %v105, %v983
    %985 = vmatmul.mubr.f32.gmra.mxu0 %v984
    %v986 = vpop.f32.mrf.mxu0
    %v987 = vadd.f32 %v710, %v986
    %v988 = vpop.f32.mrf.mxu0
    %989 = vmatprep.mubr.f32.mxu0 0.0
    %v990 = vand.u32 %v108, 4294901760
    %v991 = vsub.f32 %v108, %v990
    %992 = vmatmul.mubr.f32.gmra.mxu0 %v991
    %v993 = vpop.f32.mrf.mxu0
    %v994 = vadd.f32 %v716, %v993
    %v995 = vpop.f32.mrf.mxu0
    %996 = vmatprep.mubr.f32.mxu0 0.0
    %v997 = vand.u32 %v111, 4294901760
    %v998 = vsub.f32 %v111, %v997
    %999 = vmatmul.mubr.f32.gmra.mxu0 %v998
    %v1000 = vpop.f32.mrf.mxu0
    %v1001 = vadd.f32 %v722, %v1000
    %v1002 = vpop.f32.mrf.mxu0
    %1003 = vmatprep.mubr.f32.mxu0 0.0
    %v1004 = vand.u32 %v114, 4294901760
    %v1005 = vsub.f32 %v114, %v1004
    %1006 = vmatmul.mubr.f32.gmra.mxu0 %v1005
    %v1007 = vpop.f32.mrf.mxu0
    %v1008 = vadd.f32 %v728, %v1007
    %v1009 = vpop.f32.mrf.mxu0
    %1010 = vmatprep.mubr.f32.mxu0 0.0
    %v1011 = vand.u32 %v117, 4294901760
    %v1012 = vsub.f32 %v117, %v1011
    %1013 = vmatmul.mubr.f32.gmra.mxu0 %v1012
    %v1014 = vpop.f32.mrf.mxu0
    %v1015 = vadd.f32 %v734, %v1014
    %v1016 = vpop.f32.mrf.mxu0
    %1017 = vmatprep.mubr.f32.mxu0 0.0
    %v1018 = vand.u32 %v120, 4294901760
    %v1019 = vsub.f32 %v120, %v1018
    %1020 = vmatmul.mubr.f32.gmra.mxu0 %v1019
    %v1021 = vpop.f32.mrf.mxu0
    %v1022 = vadd.f32 %v740, %v1021
    %v1023 = vpop.f32.mrf.mxu0
    %1024 = vmatprep.mubr.f32.mxu0 0.0
    %v1025 = vand.u32 %v123, 4294901760
    %v1026 = vsub.f32 %v123, %v1025
    %1027 = vmatmul.mubr.f32.gmra.mxu0 %v1026
    %v1028 = vpop.f32.mrf.mxu0
    %v1029 = vadd.f32 %v746, %v1028
    %v1030 = vpop.f32.mrf.mxu0
    %1031 = vmatprep.mubr.f32.mxu0 0.0
    %v1032 = vand.u32 %v126, 4294901760
    %v1033 = vsub.f32 %v126, %v1032
    %1034 = vmatmul.mubr.f32.gmra.mxu0 %v1033
    %v1035 = vpop.f32.mrf.mxu0
    %v1036 = vadd.f32 %v752, %v1035
    %v1037 = vpop.f32.mrf.mxu0
    %1038 = vmatprep.mubr.f32.mxu0 0.0
    %v1039 = vand.u32 %v129, 4294901760
    %v1040 = vsub.f32 %v129, %v1039
    %1041 = vmatmul.mubr.f32.gmra.mxu0 %v1040
    %v1042 = vpop.f32.mrf.mxu0
    %v1043 = vadd.f32 %v758, %v1042
    %v1044 = vpop.f32.mrf.mxu0
    %1045 = vmatprep.mubr.f32.mxu0 0.0
    %v1046 = vand.u32 %v132, 4294901760
    %v1047 = vsub.f32 %v132, %v1046
    %1048 = vmatmul.mubr.f32.gmra.mxu0 %v1047
    %v1049 = vpop.f32.mrf.mxu0
    %v1050 = vadd.f32 %v764, %v1049
    %v1051 = vpop.f32.mrf.mxu0
    %1052 = vmatprep.mubr.f32.mxu0 0.0
    %v1053 = vand.u32 %v135, 4294901760
    %v1054 = vsub.f32 %v135, %v1053
    %1055 = vmatmul.mubr.f32.gmra.mxu0 %v1054
    %v1056 = vpop.f32.mrf.mxu0
    %v1057 = vadd.f32 %v770, %v1056
    %v1058 = vpop.f32.mrf.mxu0
    %1059 = vmatprep.mubr.f32.mxu0 0.0
    %v1060 = vand.u32 %v138, 4294901760
    %v1061 = vsub.f32 %v138, %v1060
    %1062 = vmatmul.mubr.f32.gmra.mxu0 %v1061
    %v1063 = vpop.f32.mrf.mxu0
    %v1064 = vadd.f32 %v776, %v1063
    %v1065 = vpop.f32.mrf.mxu0
    %1066 = vmatprep.mubr.f32.mxu0 0.0
    %v1067 = vand.u32 %v141, 4294901760
    %v1068 = vsub.f32 %v141, %v1067
    %1069 = vmatmul.mubr.f32.gmra.mxu0 %v1068
    %v1070 = vpop.f32.mrf.mxu0
    %v1071 = vadd.f32 %v782, %v1070
    %v1072 = vpop.f32.mrf.mxu0
    %1073 = vmatprep.mubr.f32.mxu0 0.0
    %v1074 = vand.u32 %v144, 4294901760
    %v1075 = vsub.f32 %v144, %v1074
    %1076 = vmatmul.mubr.f32.gmra.mxu0 %v1075
    %v1077 = vpop.f32.mrf.mxu0
    %v1078 = vadd.f32 %v788, %v1077
    %v1079 = vpop.f32.mrf.mxu0
    %1080 = vmatprep.mubr.f32.mxu0 0.0
    %v1081 = vand.u32 %v147, 4294901760
    %v1082 = vsub.f32 %v147, %v1081
    %1083 = vmatmul.mubr.f32.gmra.mxu0 %v1082
    %v1084 = vpop.f32.mrf.mxu0
    %v1085 = vadd.f32 %v794, %v1084
    %v1086 = vpop.f32.mrf.mxu0
    %1087 = vmatprep.mubr.f32.mxu0 0.0
    %v1088 = vand.u32 %v150, 4294901760
    %v1089 = vsub.f32 %v150, %v1088
    %1090 = vmatmul.mubr.f32.gmra.mxu0 %v1089
    %v1091 = vpop.f32.mrf.mxu0
    %v1092 = vadd.f32 %v800, %v1091
    %v1093 = vpop.f32.mrf.mxu0
    %1094 = vmatprep.mubr.f32.mxu0 0.0
    %v1095 = vand.u32 %v153, 4294901760
    %v1096 = vsub.f32 %v153, %v1095
    %1097 = vmatmul.mubr.f32.gmra.mxu0 %v1096
    %v1098 = vpop.f32.mrf.mxu0
    %v1099 = vadd.f32 %v806, %v1098
    %v1100 = vpop.f32.mrf.mxu0
    %1101 = vmatprep.mubr.f32.mxu0 0.0
    %v1102 = vand.u32 %v156, 4294901760
    %v1103 = vsub.f32 %v156, %v1102
    %1104 = vmatmul.mubr.f32.gmra.mxu0 %v1103
    %v1105 = vpop.f32.mrf.mxu0
    %v1106 = vadd.f32 %v812, %v1105
    %v1107 = vpop.f32.mrf.mxu0
    %1108 = vmatprep.mubr.f32.mxu0 0.0
    %v1109 = vand.u32 %v159, 4294901760
    %v1110 = vsub.f32 %v159, %v1109
    %1111 = vmatmul.mubr.f32.gmra.mxu0 %v1110
    %v1112 = vpop.f32.mrf.mxu0
    %v1113 = vadd.f32 %v818, %v1112
    %v1114 = vpop.f32.mrf.mxu0
    %1115 = vmatprep.mubr.f32.mxu0 0.0
    %v1116 = vand.u32 %v162, 4294901760
    %v1117 = vsub.f32 %v162, %v1116
    %1118 = vmatmul.mubr.f32.gmra.mxu0 %v1117
    %v1119 = vpop.f32.mrf.mxu0
    %v1120 = vadd.f32 %v824, %v1119
    %v1121 = vpop.f32.mrf.mxu0
    %1122 = vmatprep.mubr.f32.mxu0 0.0
    %v1123 = vand.u32 %v165, 4294901760
    %v1124 = vsub.f32 %v165, %v1123
    %1125 = vmatmul.mubr.f32.gmra.mxu0 %v1124
    %v1126 = vpop.f32.mrf.mxu0
    %v1127 = vadd.f32 %v830, %v1126
    %v1128 = vpop.f32.mrf.mxu0
    %1129 = vdwg.mxu0
    %1130 = vmatprep.subr.mxu0 0.0
    %1131 = vmatpush1.msra.mxu0 0.0
    %1132 = vmatprep.subr.mxu0 0.0
    %1133 = vmatpush1.msra.mxu0 0.0
    %1134 = vmatprep.subr.mxu0 0.0
    %1135 = vmatpush1.msra.mxu0 0.0
    %1136 = vmatprep.subr.mxu0 0.0
    %1137 = vmatpush1.msra.mxu0 0.0
    %1138 = vmatprep.subr.mxu0 0.0
    %1139 = vmatpush1.msra.mxu0 0.0
    %1140 = vmatprep.subr.mxu0 0.0
    %1141 = vmatpush1.msra.mxu0 0.0
    %1142 = vmatprep.subr.mxu0 0.0
    %1143 = vmatpush1.msra.mxu0 0.0
    %1144 = vmatprep.subr.mxu0 0.0
    %1145 = vmatpush1.msra.mxu0 0.0
    %1146 = vmatprep.subr.mxu0 0.0
    %1147 = vmatpush1.msra.mxu0 0.0
    %1148 = vmatprep.subr.mxu0 0.0
    %1149 = vmatpush1.msra.mxu0 0.0
    %1150 = vmatprep.subr.mxu0 0.0
    %1151 = vmatpush1.msra.mxu0 0.0
    %1152 = vmatprep.subr.mxu0 0.0
    %1153 = vmatpush1.msra.mxu0 0.0
    %1154 = vmatprep.subr.mxu0 0.0
    %v1155 = vand.u32 %v62, 4294901760
    %1156 = vmatpush1.msra.mxu0 %v1155
    %1157 = vmatprep.subr.mxu0 0.0
    %v1158 = vand.u32 %v61, 4294901760
    %1159 = vmatpush1.msra.mxu0 %v1158
    %1160 = vmatprep.subr.mxu0 0.0
    %v1161 = vand.u32 %v60, 4294901760
    %1162 = vmatpush1.msra.mxu0 %v1161
    %1163 = vmatprep.subr.mxu0 0.0
    %v1164 = vand.u32 %v59, 4294901760
    %1165 = vmatpush1.msra.mxu0 %v1164
    %1166 = vmatprep.subr.mxu0 0.0
    %1167 = vmatpush2.msra.mxu0 0.0
    %1168 = vmatprep.subr.mxu0 0.0
    %1169 = vmatpush2.msra.mxu0 0.0
    %1170 = vmatprep.subr.mxu0 0.0
    %1171 = vmatpush2.msra.mxu0 0.0
    %1172 = vmatprep.subr.mxu0 0.0
    %1173 = vmatpush2.msra.mxu0 0.0
    %1174 = vmatprep.subr.mxu0 0.0
    %1175 = vmatpush2.msra.mxu0 0.0
    %1176 = vmatprep.subr.mxu0 0.0
    %1177 = vmatpush2.msra.mxu0 0.0
    %1178 = vmatprep.subr.mxu0 0.0
    %1179 = vmatpush2.msra.mxu0 0.0
    %1180 = vmatprep.subr.mxu0 0.0
    %1181 = vmatpush2.msra.mxu0 0.0
    %1182 = vmatprep.subr.mxu0 0.0
    %1183 = vmatpush2.msra.mxu0 0.0
    %1184 = vmatprep.subr.mxu0 0.0
    %1185 = vmatpush2.msra.mxu0 0.0
    %1186 = vmatprep.subr.mxu0 0.0
    %1187 = vmatpush2.msra.mxu0 0.0
    %1188 = vmatprep.subr.mxu0 0.0
    %1189 = vmatpush2.msra.mxu0 0.0
    %1190 = vmatprep.subr.mxu0 0.0
    %1191 = vmatpush2.msra.mxu0 0.0
    %1192 = vmatprep.subr.mxu0 0.0
    %1193 = vmatpush2.msra.mxu0 0.0
    %1194 = vmatprep.subr.mxu0 0.0
    %1195 = vmatpush2.msra.mxu0 0.0
    %1196 = vmatprep.subr.mxu0 0.0
    %1197 = vmatpush2.msra.mxu0 0.0
    %1198 = vmatprep.mubr.f32.mxu0 0.0
    %v1199 = vand.u32 %v72, 4294901760
    %v1200 = vsub.f32 %v72, %v1199
    %v1201 = vand.u32 %v1200, 4294901760
    %1202 = vmatmul.mubr.f32.gmra.mxu0 %v1201
    %v1203 = vpop.f32.mrf.mxu0
    %v1204 = vadd.f32 %v910, %v1203
    %v1205 = vpop.f32.mrf.mxu0
    %1206 = vmatprep.mubr.f32.mxu0 0.0
    %v1207 = vand.u32 %v75, 4294901760
    %v1208 = vsub.f32 %v75, %v1207
    %v1209 = vand.u32 %v1208, 4294901760
    %1210 = vmatmul.mubr.f32.gmra.mxu0 %v1209
    %v1211 = vpop.f32.mrf.mxu0
    %v1212 = vadd.f32 %v917, %v1211
    %v1213 = vpop.f32.mrf.mxu0
    %1214 = vmatprep.mubr.f32.mxu0 0.0
    %v1215 = vand.u32 %v78, 4294901760
    %v1216 = vsub.f32 %v78, %v1215
    %v1217 = vand.u32 %v1216, 4294901760
    %1218 = vmatmul.mubr.f32.gmra.mxu0 %v1217
    %v1219 = vpop.f32.mrf.mxu0
    %v1220 = vadd.f32 %v924, %v1219
    %v1221 = vpop.f32.mrf.mxu0
    %1222 = vmatprep.mubr.f32.mxu0 0.0
    %v1223 = vand.u32 %v81, 4294901760
    %v1224 = vsub.f32 %v81, %v1223
    %v1225 = vand.u32 %v1224, 4294901760
    %1226 = vmatmul.mubr.f32.gmra.mxu0 %v1225
    %v1227 = vpop.f32.mrf.mxu0
    %v1228 = vadd.f32 %v931, %v1227
    %v1229 = vpop.f32.mrf.mxu0
    %1230 = vmatprep.mubr.f32.mxu0 0.0
    %v1231 = vand.u32 %v84, 4294901760
    %v1232 = vsub.f32 %v84, %v1231
    %v1233 = vand.u32 %v1232, 4294901760
    %1234 = vmatmul.mubr.f32.gmra.mxu0 %v1233
    %v1235 = vpop.f32.mrf.mxu0
    %v1236 = vadd.f32 %v938, %v1235
    %v1237 = vpop.f32.mrf.mxu0
    %1238 = vmatprep.mubr.f32.mxu0 0.0
    %v1239 = vand.u32 %v87, 4294901760
    %v1240 = vsub.f32 %v87, %v1239
    %v1241 = vand.u32 %v1240, 4294901760
    %1242 = vmatmul.mubr.f32.gmra.mxu0 %v1241
    %v1243 = vpop.f32.mrf.mxu0
    %v1244 = vadd.f32 %v945, %v1243
    %v1245 = vpop.f32.mrf.mxu0
    %1246 = vmatprep.mubr.f32.mxu0 0.0
    %v1247 = vand.u32 %v90, 4294901760
    %v1248 = vsub.f32 %v90, %v1247
    %v1249 = vand.u32 %v1248, 4294901760
    %1250 = vmatmul.mubr.f32.gmra.mxu0 %v1249
    %v1251 = vpop.f32.mrf.mxu0
    %v1252 = vadd.f32 %v952, %v1251
    %v1253 = vpop.f32.mrf.mxu0
    %1254 = vmatprep.mubr.f32.mxu0 0.0
    %v1255 = vand.u32 %v93, 4294901760
    %v1256 = vsub.f32 %v93, %v1255
    %v1257 = vand.u32 %v1256, 4294901760
    %1258 = vmatmul.mubr.f32.gmra.mxu0 %v1257
    %v1259 = vpop.f32.mrf.mxu0
    %v1260 = vadd.f32 %v959, %v1259
    %v1261 = vpop.f32.mrf.mxu0
    %1262 = vmatprep.mubr.f32.mxu0 0.0
    %v1263 = vand.u32 %v96, 4294901760
    %v1264 = vsub.f32 %v96, %v1263
    %v1265 = vand.u32 %v1264, 4294901760
    %1266 = vmatmul.mubr.f32.gmra.mxu0 %v1265
    %v1267 = vpop.f32.mrf.mxu0
    %v1268 = vadd.f32 %v966, %v1267
    %v1269 = vpop.f32.mrf.mxu0
    %1270 = vmatprep.mubr.f32.mxu0 0.0
    %v1271 = vand.u32 %v99, 4294901760
    %v1272 = vsub.f32 %v99, %v1271
    %v1273 = vand.u32 %v1272, 4294901760
    %1274 = vmatmul.mubr.f32.gmra.mxu0 %v1273
    %v1275 = vpop.f32.mrf.mxu0
    %v1276 = vadd.f32 %v973, %v1275
    %v1277 = vpop.f32.mrf.mxu0
    %1278 = vmatprep.mubr.f32.mxu0 0.0
    %v1279 = vand.u32 %v102, 4294901760
    %v1280 = vsub.f32 %v102, %v1279
    %v1281 = vand.u32 %v1280, 4294901760
    %1282 = vmatmul.mubr.f32.gmra.mxu0 %v1281
    %v1283 = vpop.f32.mrf.mxu0
    %v1284 = vadd.f32 %v980, %v1283
    %v1285 = vpop.f32.mrf.mxu0
    %1286 = vmatprep.mubr.f32.mxu0 0.0
    %v1287 = vand.u32 %v105, 4294901760
    %v1288 = vsub.f32 %v105, %v1287
    %v1289 = vand.u32 %v1288, 4294901760
    %1290 = vmatmul.mubr.f32.gmra.mxu0 %v1289
    %v1291 = vpop.f32.mrf.mxu0
    %v1292 = vadd.f32 %v987, %v1291
    %v1293 = vpop.f32.mrf.mxu0
    %1294 = vmatprep.mubr.f32.mxu0 0.0
    %v1295 = vand.u32 %v108, 4294901760
    %v1296 = vsub.f32 %v108, %v1295
    %v1297 = vand.u32 %v1296, 4294901760
    %1298 = vmatmul.mubr.f32.gmra.mxu0 %v1297
    %v1299 = vpop.f32.mrf.mxu0
    %v1300 = vadd.f32 %v994, %v1299
    %v1301 = vpop.f32.mrf.mxu0
    %1302 = vmatprep.mubr.f32.mxu0 0.0
    %v1303 = vand.u32 %v111, 4294901760
    %v1304 = vsub.f32 %v111, %v1303
    %v1305 = vand.u32 %v1304, 4294901760
    %1306 = vmatmul.mubr.f32.gmra.mxu0 %v1305
    %v1307 = vpop.f32.mrf.mxu0
    %v1308 = vadd.f32 %v1001, %v1307
    %v1309 = vpop.f32.mrf.mxu0
    %1310 = vmatprep.mubr.f32.mxu0 0.0
    %v1311 = vand.u32 %v114, 4294901760
    %v1312 = vsub.f32 %v114, %v1311
    %v1313 = vand.u32 %v1312, 4294901760
    %1314 = vmatmul.mubr.f32.gmra.mxu0 %v1313
    %v1315 = vpop.f32.mrf.mxu0
    %v1316 = vadd.f32 %v1008, %v1315
    %v1317 = vpop.f32.mrf.mxu0
    %1318 = vmatprep.mubr.f32.mxu0 0.0
    %v1319 = vand.u32 %v117, 4294901760
    %v1320 = vsub.f32 %v117, %v1319
    %v1321 = vand.u32 %v1320, 4294901760
    %1322 = vmatmul.mubr.f32.gmra.mxu0 %v1321
    %v1323 = vpop.f32.mrf.mxu0
    %v1324 = vadd.f32 %v1015, %v1323
    %v1325 = vpop.f32.mrf.mxu0
    %1326 = vmatprep.mubr.f32.mxu0 0.0
    %v1327 = vand.u32 %v120, 4294901760
    %v1328 = vsub.f32 %v120, %v1327
    %v1329 = vand.u32 %v1328, 4294901760
    %1330 = vmatmul.mubr.f32.gmra.mxu0 %v1329
    %v1331 = vpop.f32.mrf.mxu0
    %v1332 = vadd.f32 %v1022, %v1331
    %v1333 = vpop.f32.mrf.mxu0
    %1334 = vmatprep.mubr.f32.mxu0 0.0
    %v1335 = vand.u32 %v123, 4294901760
    %v1336 = vsub.f32 %v123, %v1335
    %v1337 = vand.u32 %v1336, 4294901760
    %1338 = vmatmul.mubr.f32.gmra.mxu0 %v1337
    %v1339 = vpop.f32.mrf.mxu0
    %v1340 = vadd.f32 %v1029, %v1339
    %v1341 = vpop.f32.mrf.mxu0
    %1342 = vmatprep.mubr.f32.mxu0 0.0
    %v1343 = vand.u32 %v126, 4294901760
    %v1344 = vsub.f32 %v126, %v1343
    %v1345 = vand.u32 %v1344, 4294901760
    %1346 = vmatmul.mubr.f32.gmra.mxu0 %v1345
    %v1347 = vpop.f32.mrf.mxu0
    %v1348 = vadd.f32 %v1036, %v1347
    %v1349 = vpop.f32.mrf.mxu0
    %1350 = vmatprep.mubr.f32.mxu0 0.0
    %v1351 = vand.u32 %v129, 4294901760
    %v1352 = vsub.f32 %v129, %v1351
    %v1353 = vand.u32 %v1352, 4294901760
    %1354 = vmatmul.mubr.f32.gmra.mxu0 %v1353
    %v1355 = vpop.f32.mrf.mxu0
    %v1356 = vadd.f32 %v1043, %v1355
    %v1357 = vpop.f32.mrf.mxu0
    %1358 = vmatprep.mubr.f32.mxu0 0.0
    %v1359 = vand.u32 %v132, 4294901760
    %v1360 = vsub.f32 %v132, %v1359
    %v1361 = vand.u32 %v1360, 4294901760
    %1362 = vmatmul.mubr.f32.gmra.mxu0 %v1361
    %v1363 = vpop.f32.mrf.mxu0
    %v1364 = vadd.f32 %v1050, %v1363
    %v1365 = vpop.f32.mrf.mxu0
    %1366 = vmatprep.mubr.f32.mxu0 0.0
    %v1367 = vand.u32 %v135, 4294901760
    %v1368 = vsub.f32 %v135, %v1367
    %v1369 = vand.u32 %v1368, 4294901760
    %1370 = vmatmul.mubr.f32.gmra.mxu0 %v1369
    %v1371 = vpop.f32.mrf.mxu0
    %v1372 = vadd.f32 %v1057, %v1371
    %v1373 = vpop.f32.mrf.mxu0
    %1374 = vmatprep.mubr.f32.mxu0 0.0
    %v1375 = vand.u32 %v138, 4294901760
    %v1376 = vsub.f32 %v138, %v1375
    %v1377 = vand.u32 %v1376, 4294901760
    %1378 = vmatmul.mubr.f32.gmra.mxu0 %v1377
    %v1379 = vpop.f32.mrf.mxu0
    %v1380 = vadd.f32 %v1064, %v1379
    %v1381 = vpop.f32.mrf.mxu0
    %1382 = vmatprep.mubr.f32.mxu0 0.0
    %v1383 = vand.u32 %v141, 4294901760
    %v1384 = vsub.f32 %v141, %v1383
    %v1385 = vand.u32 %v1384, 4294901760
    %1386 = vmatmul.mubr.f32.gmra.mxu0 %v1385
    %v1387 = vpop.f32.mrf.mxu0
    %v1388 = vadd.f32 %v1071, %v1387
    %v1389 = vpop.f32.mrf.mxu0
    %1390 = vmatprep.mubr.f32.mxu0 0.0
    %v1391 = vand.u32 %v144, 4294901760
    %v1392 = vsub.f32 %v144, %v1391
    %v1393 = vand.u32 %v1392, 4294901760
    %1394 = vmatmul.mubr.f32.gmra.mxu0 %v1393
    %v1395 = vpop.f32.mrf.mxu0
    %v1396 = vadd.f32 %v1078, %v1395
    %v1397 = vpop.f32.mrf.mxu0
    %1398 = vmatprep.mubr.f32.mxu0 0.0
    %v1399 = vand.u32 %v147, 4294901760
    %v1400 = vsub.f32 %v147, %v1399
    %v1401 = vand.u32 %v1400, 4294901760
    %1402 = vmatmul.mubr.f32.gmra.mxu0 %v1401
    %v1403 = vpop.f32.mrf.mxu0
    %v1404 = vadd.f32 %v1085, %v1403
    %v1405 = vpop.f32.mrf.mxu0
    %1406 = vmatprep.mubr.f32.mxu0 0.0
    %v1407 = vand.u32 %v150, 4294901760
    %v1408 = vsub.f32 %v150, %v1407
    %v1409 = vand.u32 %v1408, 4294901760
    %1410 = vmatmul.mubr.f32.gmra.mxu0 %v1409
    %v1411 = vpop.f32.mrf.mxu0
    %v1412 = vadd.f32 %v1092, %v1411
    %v1413 = vpop.f32.mrf.mxu0
    %1414 = vmatprep.mubr.f32.mxu0 0.0
    %v1415 = vand.u32 %v153, 4294901760
    %v1416 = vsub.f32 %v153, %v1415
    %v1417 = vand.u32 %v1416, 4294901760
    %1418 = vmatmul.mubr.f32.gmra.mxu0 %v1417
    %v1419 = vpop.f32.mrf.mxu0
    %v1420 = vadd.f32 %v1099, %v1419
    %v1421 = vpop.f32.mrf.mxu0
    %1422 = vmatprep.mubr.f32.mxu0 0.0
    %v1423 = vand.u32 %v156, 4294901760
    %v1424 = vsub.f32 %v156, %v1423
    %v1425 = vand.u32 %v1424, 4294901760
    %1426 = vmatmul.mubr.f32.gmra.mxu0 %v1425
    %v1427 = vpop.f32.mrf.mxu0
    %v1428 = vadd.f32 %v1106, %v1427
    %v1429 = vpop.f32.mrf.mxu0
    %1430 = vmatprep.mubr.f32.mxu0 0.0
    %v1431 = vand.u32 %v159, 4294901760
    %v1432 = vsub.f32 %v159, %v1431
    %v1433 = vand.u32 %v1432, 4294901760
    %1434 = vmatmul.mubr.f32.gmra.mxu0 %v1433
    %v1435 = vpop.f32.mrf.mxu0
    %v1436 = vadd.f32 %v1113, %v1435
    %v1437 = vpop.f32.mrf.mxu0
    %1438 = vmatprep.mubr.f32.mxu0 0.0
    %v1439 = vand.u32 %v162, 4294901760
    %v1440 = vsub.f32 %v162, %v1439
    %v1441 = vand.u32 %v1440, 4294901760
    %1442 = vmatmul.mubr.f32.gmra.mxu0 %v1441
    %v1443 = vpop.f32.mrf.mxu0
    %v1444 = vadd.f32 %v1120, %v1443
    %v1445 = vpop.f32.mrf.mxu0
    %1446 = vmatprep.mubr.f32.mxu0 0.0
    %v1447 = vand.u32 %v165, 4294901760
    %v1448 = vsub.f32 %v165, %v1447
    %v1449 = vand.u32 %v1448, 4294901760
    %1450 = vmatmul.mubr.f32.gmra.mxu0 %v1449
    %v1451 = vpop.f32.mrf.mxu0
    %v1452 = vadd.f32 %v1127, %v1451
    %v1453 = vpop.f32.mrf.mxu0
    %1454 = vdwg.mxu0
    %1455 = vmatprep.subr.mxu0 0.0
    %1456 = vmatpush1.msra.mxu0 0.0
    %1457 = vmatprep.subr.mxu0 0.0
    %1458 = vmatpush1.msra.mxu0 0.0
    %1459 = vmatprep.subr.mxu0 0.0
    %1460 = vmatpush1.msra.mxu0 0.0
    %1461 = vmatprep.subr.mxu0 0.0
    %1462 = vmatpush1.msra.mxu0 0.0
    %1463 = vmatprep.subr.mxu0 0.0
    %1464 = vmatpush1.msra.mxu0 0.0
    %1465 = vmatprep.subr.mxu0 0.0
    %1466 = vmatpush1.msra.mxu0 0.0
    %1467 = vmatprep.subr.mxu0 0.0
    %1468 = vmatpush1.msra.mxu0 0.0
    %1469 = vmatprep.subr.mxu0 0.0
    %1470 = vmatpush1.msra.mxu0 0.0
    %1471 = vmatprep.subr.mxu0 0.0
    %1472 = vmatpush1.msra.mxu0 0.0
    %1473 = vmatprep.subr.mxu0 0.0
    %1474 = vmatpush1.msra.mxu0 0.0
    %1475 = vmatprep.subr.mxu0 0.0
    %1476 = vmatpush1.msra.mxu0 0.0
    %1477 = vmatprep.subr.mxu0 0.0
    %1478 = vmatpush1.msra.mxu0 0.0
    %1479 = vmatprep.subr.mxu0 0.0
    %v1480 = vand.u32 %v62, 4294901760
    %v1481 = vsub.f32 %v62, %v1480
    %v1482 = vand.u32 %v1481, 4294901760
    %1483 = vmatpush1.msra.mxu0 %v1482
    %1484 = vmatprep.subr.mxu0 0.0
    %v1485 = vand.u32 %v61, 4294901760
    %v1486 = vsub.f32 %v61, %v1485
    %v1487 = vand.u32 %v1486, 4294901760
    %1488 = vmatpush1.msra.mxu0 %v1487
    %1489 = vmatprep.subr.mxu0 0.0
    %v1490 = vand.u32 %v60, 4294901760
    %v1491 = vsub.f32 %v60, %v1490
    %v1492 = vand.u32 %v1491, 4294901760
    %1493 = vmatpush1.msra.mxu0 %v1492
    %1494 = vmatprep.subr.mxu0 0.0
    %v1495 = vand.u32 %v59, 4294901760
    %v1496 = vsub.f32 %v59, %v1495
    %v1497 = vand.u32 %v1496, 4294901760
    %1498 = vmatpush1.msra.mxu0 %v1497
    %1499 = vmatprep.subr.mxu0 0.0
    %1500 = vmatpush2.msra.mxu0 0.0
    %1501 = vmatprep.subr.mxu0 0.0
    %1502 = vmatpush2.msra.mxu0 0.0
    %1503 = vmatprep.subr.mxu0 0.0
    %1504 = vmatpush2.msra.mxu0 0.0
    %1505 = vmatprep.subr.mxu0 0.0
    %1506 = vmatpush2.msra.mxu0 0.0
    %1507 = vmatprep.subr.mxu0 0.0
    %1508 = vmatpush2.msra.mxu0 0.0
    %1509 = vmatprep.subr.mxu0 0.0
    %1510 = vmatpush2.msra.mxu0 0.0
    %1511 = vmatprep.subr.mxu0 0.0
    %1512 = vmatpush2.msra.mxu0 0.0
    %1513 = vmatprep.subr.mxu0 0.0
    %1514 = vmatpush2.msra.mxu0 0.0
    %1515 = vmatprep.subr.mxu0 0.0
    %1516 = vmatpush2.msra.mxu0 0.0
    %1517 = vmatprep.subr.mxu0 0.0
    %1518 = vmatpush2.msra.mxu0 0.0
    %1519 = vmatprep.subr.mxu0 0.0
    %1520 = vmatpush2.msra.mxu0 0.0
    %1521 = vmatprep.subr.mxu0 0.0
    %1522 = vmatpush2.msra.mxu0 0.0
    %1523 = vmatprep.subr.mxu0 0.0
    %1524 = vmatpush2.msra.mxu0 0.0
    %1525 = vmatprep.subr.mxu0 0.0
    %1526 = vmatpush2.msra.mxu0 0.0
    %1527 = vmatprep.subr.mxu0 0.0
    %1528 = vmatpush2.msra.mxu0 0.0
    %1529 = vmatprep.subr.mxu0 0.0
    %1530 = vmatpush2.msra.mxu0 0.0
    %1531 = vmatprep.mubr.f32.mxu0 0.0
    %v1532 = vand.u32 %v72, 4294901760
    %1533 = vmatmul.mubr.f32.gmra.mxu0 %v1532
    %v1534 = vpop.f32.mrf.mxu0
    %v1535 = vadd.f32 %v1204, %v1534
    %v1536 = vpop.f32.mrf.mxu0
    %1537 = vmatprep.mubr.f32.mxu0 0.0
    %v1538 = vand.u32 %v75, 4294901760
    %1539 = vmatmul.mubr.f32.gmra.mxu0 %v1538
    %v1540 = vpop.f32.mrf.mxu0
    %v1541 = vadd.f32 %v1212, %v1540
    %v1542 = vpop.f32.mrf.mxu0
    %1543 = vmatprep.mubr.f32.mxu0 0.0
    %v1544 = vand.u32 %v78, 4294901760
    %1545 = vmatmul.mubr.f32.gmra.mxu0 %v1544
    %v1546 = vpop.f32.mrf.mxu0
    %v1547 = vadd.f32 %v1220, %v1546
    %v1548 = vpop.f32.mrf.mxu0
    %1549 = vmatprep.mubr.f32.mxu0 0.0
    %v1550 = vand.u32 %v81, 4294901760
    %1551 = vmatmul.mubr.f32.gmra.mxu0 %v1550
    %v1552 = vpop.f32.mrf.mxu0
    %v1553 = vadd.f32 %v1228, %v1552
    %v1554 = vpop.f32.mrf.mxu0
    %1555 = vmatprep.mubr.f32.mxu0 0.0
    %v1556 = vand.u32 %v84, 4294901760
    %1557 = vmatmul.mubr.f32.gmra.mxu0 %v1556
    %v1558 = vpop.f32.mrf.mxu0
    %v1559 = vadd.f32 %v1236, %v1558
    %v1560 = vpop.f32.mrf.mxu0
    %1561 = vmatprep.mubr.f32.mxu0 0.0
    %v1562 = vand.u32 %v87, 4294901760
    %1563 = vmatmul.mubr.f32.gmra.mxu0 %v1562
    %v1564 = vpop.f32.mrf.mxu0
    %v1565 = vadd.f32 %v1244, %v1564
    %v1566 = vpop.f32.mrf.mxu0
    %1567 = vmatprep.mubr.f32.mxu0 0.0
    %v1568 = vand.u32 %v90, 4294901760
    %1569 = vmatmul.mubr.f32.gmra.mxu0 %v1568
    %v1570 = vpop.f32.mrf.mxu0
    %v1571 = vadd.f32 %v1252, %v1570
    %v1572 = vpop.f32.mrf.mxu0
    %1573 = vmatprep.mubr.f32.mxu0 0.0
    %v1574 = vand.u32 %v93, 4294901760
    %1575 = vmatmul.mubr.f32.gmra.mxu0 %v1574
    %v1576 = vpop.f32.mrf.mxu0
    %v1577 = vadd.f32 %v1260, %v1576
    %v1578 = vpop.f32.mrf.mxu0
    %1579 = vmatprep.mubr.f32.mxu0 0.0
    %v1580 = vand.u32 %v96, 4294901760
    %1581 = vmatmul.mubr.f32.gmra.mxu0 %v1580
    %v1582 = vpop.f32.mrf.mxu0
    %v1583 = vadd.f32 %v1268, %v1582
    %v1584 = vpop.f32.mrf.mxu0
    %1585 = vmatprep.mubr.f32.mxu0 0.0
    %v1586 = vand.u32 %v99, 4294901760
    %1587 = vmatmul.mubr.f32.gmra.mxu0 %v1586
    %v1588 = vpop.f32.mrf.mxu0
    %v1589 = vadd.f32 %v1276, %v1588
    %v1590 = vpop.f32.mrf.mxu0
    %1591 = vmatprep.mubr.f32.mxu0 0.0
    %v1592 = vand.u32 %v102, 4294901760
    %1593 = vmatmul.mubr.f32.gmra.mxu0 %v1592
    %v1594 = vpop.f32.mrf.mxu0
    %v1595 = vadd.f32 %v1284, %v1594
    %v1596 = vpop.f32.mrf.mxu0
    %1597 = vmatprep.mubr.f32.mxu0 0.0
    %v1598 = vand.u32 %v105, 4294901760
    %1599 = vmatmul.mubr.f32.gmra.mxu0 %v1598
    %v1600 = vpop.f32.mrf.mxu0
    %v1601 = vadd.f32 %v1292, %v1600
    %v1602 = vpop.f32.mrf.mxu0
    %1603 = vmatprep.mubr.f32.mxu0 0.0
    %v1604 = vand.u32 %v108, 4294901760
    %1605 = vmatmul.mubr.f32.gmra.mxu0 %v1604
    %v1606 = vpop.f32.mrf.mxu0
    %v1607 = vadd.f32 %v1300, %v1606
    %v1608 = vpop.f32.mrf.mxu0
    %1609 = vmatprep.mubr.f32.mxu0 0.0
    %v1610 = vand.u32 %v111, 4294901760
    %1611 = vmatmul.mubr.f32.gmra.mxu0 %v1610
    %v1612 = vpop.f32.mrf.mxu0
    %v1613 = vadd.f32 %v1308, %v1612
    %v1614 = vpop.f32.mrf.mxu0
    %1615 = vmatprep.mubr.f32.mxu0 0.0
    %v1616 = vand.u32 %v114, 4294901760
    %1617 = vmatmul.mubr.f32.gmra.mxu0 %v1616
    %v1618 = vpop.f32.mrf.mxu0
    %v1619 = vadd.f32 %v1316, %v1618
    %v1620 = vpop.f32.mrf.mxu0
    %1621 = vmatprep.mubr.f32.mxu0 0.0
    %v1622 = vand.u32 %v117, 4294901760
    %1623 = vmatmul.mubr.f32.gmra.mxu0 %v1622
    %v1624 = vpop.f32.mrf.mxu0
    %v1625 = vadd.f32 %v1324, %v1624
    %v1626 = vpop.f32.mrf.mxu0
    %1627 = vmatprep.mubr.f32.mxu0 0.0
    %v1628 = vand.u32 %v120, 4294901760
    %1629 = vmatmul.mubr.f32.gmra.mxu0 %v1628
    %v1630 = vpop.f32.mrf.mxu0
    %v1631 = vadd.f32 %v1332, %v1630
    %v1632 = vpop.f32.mrf.mxu0
    %1633 = vmatprep.mubr.f32.mxu0 0.0
    %v1634 = vand.u32 %v123, 4294901760
    %1635 = vmatmul.mubr.f32.gmra.mxu0 %v1634
    %v1636 = vpop.f32.mrf.mxu0
    %v1637 = vadd.f32 %v1340, %v1636
    %v1638 = vpop.f32.mrf.mxu0
    %1639 = vmatprep.mubr.f32.mxu0 0.0
    %v1640 = vand.u32 %v126, 4294901760
    %1641 = vmatmul.mubr.f32.gmra.mxu0 %v1640
    %v1642 = vpop.f32.mrf.mxu0
    %v1643 = vadd.f32 %v1348, %v1642
    %v1644 = vpop.f32.mrf.mxu0
    %1645 = vmatprep.mubr.f32.mxu0 0.0
    %v1646 = vand.u32 %v129, 4294901760
    %1647 = vmatmul.mubr.f32.gmra.mxu0 %v1646
    %v1648 = vpop.f32.mrf.mxu0
    %v1649 = vadd.f32 %v1356, %v1648
    %v1650 = vpop.f32.mrf.mxu0
    %1651 = vmatprep.mubr.f32.mxu0 0.0
    %v1652 = vand.u32 %v132, 4294901760
    %1653 = vmatmul.mubr.f32.gmra.mxu0 %v1652
    %v1654 = vpop.f32.mrf.mxu0
    %v1655 = vadd.f32 %v1364, %v1654
    %v1656 = vpop.f32.mrf.mxu0
    %1657 = vmatprep.mubr.f32.mxu0 0.0
    %v1658 = vand.u32 %v135, 4294901760
    %1659 = vmatmul.mubr.f32.gmra.mxu0 %v1658
    %v1660 = vpop.f32.mrf.mxu0
    %v1661 = vadd.f32 %v1372, %v1660
    %v1662 = vpop.f32.mrf.mxu0
    %1663 = vmatprep.mubr.f32.mxu0 0.0
    %v1664 = vand.u32 %v138, 4294901760
    %1665 = vmatmul.mubr.f32.gmra.mxu0 %v1664
    %v1666 = vpop.f32.mrf.mxu0
    %v1667 = vadd.f32 %v1380, %v1666
    %v1668 = vpop.f32.mrf.mxu0
    %1669 = vmatprep.mubr.f32.mxu0 0.0
    %v1670 = vand.u32 %v141, 4294901760
    %1671 = vmatmul.mubr.f32.gmra.mxu0 %v1670
    %v1672 = vpop.f32.mrf.mxu0
    %v1673 = vadd.f32 %v1388, %v1672
    %v1674 = vpop.f32.mrf.mxu0
    %1675 = vmatprep.mubr.f32.mxu0 0.0
    %v1676 = vand.u32 %v144, 4294901760
    %1677 = vmatmul.mubr.f32.gmra.mxu0 %v1676
    %v1678 = vpop.f32.mrf.mxu0
    %v1679 = vadd.f32 %v1396, %v1678
    %v1680 = vpop.f32.mrf.mxu0
    %1681 = vmatprep.mubr.f32.mxu0 0.0
    %v1682 = vand.u32 %v147, 4294901760
    %1683 = vmatmul.mubr.f32.gmra.mxu0 %v1682
    %v1684 = vpop.f32.mrf.mxu0
    %v1685 = vadd.f32 %v1404, %v1684
    %v1686 = vpop.f32.mrf.mxu0
    %1687 = vmatprep.mubr.f32.mxu0 0.0
    %v1688 = vand.u32 %v150, 4294901760
    %1689 = vmatmul.mubr.f32.gmra.mxu0 %v1688
    %v1690 = vpop.f32.mrf.mxu0
    %v1691 = vadd.f32 %v1412, %v1690
    %v1692 = vpop.f32.mrf.mxu0
    %1693 = vmatprep.mubr.f32.mxu0 0.0
    %v1694 = vand.u32 %v153, 4294901760
    %1695 = vmatmul.mubr.f32.gmra.mxu0 %v1694
    %v1696 = vpop.f32.mrf.mxu0
    %v1697 = vadd.f32 %v1420, %v1696
    %v1698 = vpop.f32.mrf.mxu0
    %1699 = vmatprep.mubr.f32.mxu0 0.0
    %v1700 = vand.u32 %v156, 4294901760
    %1701 = vmatmul.mubr.f32.gmra.mxu0 %v1700
    %v1702 = vpop.f32.mrf.mxu0
    %v1703 = vadd.f32 %v1428, %v1702
    %v1704 = vpop.f32.mrf.mxu0
    %1705 = vmatprep.mubr.f32.mxu0 0.0
    %v1706 = vand.u32 %v159, 4294901760
    %1707 = vmatmul.mubr.f32.gmra.mxu0 %v1706
    %v1708 = vpop.f32.mrf.mxu0
    %v1709 = vadd.f32 %v1436, %v1708
    %v1710 = vpop.f32.mrf.mxu0
    %1711 = vmatprep.mubr.f32.mxu0 0.0
    %v1712 = vand.u32 %v162, 4294901760
    %1713 = vmatmul.mubr.f32.gmra.mxu0 %v1712
    %v1714 = vpop.f32.mrf.mxu0
    %v1715 = vadd.f32 %v1444, %v1714
    %v1716 = vpop.f32.mrf.mxu0
    %1717 = vmatprep.mubr.f32.mxu0 0.0
    %v1718 = vand.u32 %v165, 4294901760
    %1719 = vmatmul.mubr.f32.gmra.mxu0 %v1718
    %v1720 = vpop.f32.mrf.mxu0
    %v1721 = vadd.f32 %v1452, %v1720
    %v1722 = vpop.f32.mrf.mxu0
    %1723 = vdwg.mxu0
    %1724 = vmatprep.subr.mxu0 0.0
    %1725 = vmatpush1.msra.mxu0 0.0
    %1726 = vmatprep.subr.mxu0 0.0
    %1727 = vmatpush1.msra.mxu0 0.0
    %1728 = vmatprep.subr.mxu0 0.0
    %1729 = vmatpush1.msra.mxu0 0.0
    %1730 = vmatprep.subr.mxu0 0.0
    %1731 = vmatpush1.msra.mxu0 0.0
    %1732 = vmatprep.subr.mxu0 0.0
    %1733 = vmatpush1.msra.mxu0 0.0
    %1734 = vmatprep.subr.mxu0 0.0
    %1735 = vmatpush1.msra.mxu0 0.0
    %1736 = vmatprep.subr.mxu0 0.0
    %1737 = vmatpush1.msra.mxu0 0.0
    %1738 = vmatprep.subr.mxu0 0.0
    %1739 = vmatpush1.msra.mxu0 0.0
    %1740 = vmatprep.subr.mxu0 0.0
    %1741 = vmatpush1.msra.mxu0 0.0
    %1742 = vmatprep.subr.mxu0 0.0
    %1743 = vmatpush1.msra.mxu0 0.0
    %1744 = vmatprep.subr.mxu0 0.0
    %1745 = vmatpush1.msra.mxu0 0.0
    %1746 = vmatprep.subr.mxu0 0.0
    %1747 = vmatpush1.msra.mxu0 0.0
    %1748 = vmatprep.subr.mxu0 0.0
    %v1749 = vand.u32 %v62, 4294901760
    %1750 = vmatpush1.msra.mxu0 %v1749
    %1751 = vmatprep.subr.mxu0 0.0
    %v1752 = vand.u32 %v61, 4294901760
    %1753 = vmatpush1.msra.mxu0 %v1752
    %1754 = vmatprep.subr.mxu0 0.0
    %v1755 = vand.u32 %v60, 4294901760
    %1756 = vmatpush1.msra.mxu0 %v1755
    %1757 = vmatprep.subr.mxu0 0.0
    %v1758 = vand.u32 %v59, 4294901760
    %1759 = vmatpush1.msra.mxu0 %v1758
    %1760 = vmatprep.subr.mxu0 0.0
    %1761 = vmatpush2.msra.mxu0 0.0
    %1762 = vmatprep.subr.mxu0 0.0
    %1763 = vmatpush2.msra.mxu0 0.0
    %1764 = vmatprep.subr.mxu0 0.0
    %1765 = vmatpush2.msra.mxu0 0.0
    %1766 = vmatprep.subr.mxu0 0.0
    %1767 = vmatpush2.msra.mxu0 0.0
    %1768 = vmatprep.subr.mxu0 0.0
    %1769 = vmatpush2.msra.mxu0 0.0
    %1770 = vmatprep.subr.mxu0 0.0
    %1771 = vmatpush2.msra.mxu0 0.0
    %1772 = vmatprep.subr.mxu0 0.0
    %1773 = vmatpush2.msra.mxu0 0.0
    %1774 = vmatprep.subr.mxu0 0.0
    %1775 = vmatpush2.msra.mxu0 0.0
    %1776 = vmatprep.subr.mxu0 0.0
    %1777 = vmatpush2.msra.mxu0 0.0
    %1778 = vmatprep.subr.mxu0 0.0
    %1779 = vmatpush2.msra.mxu0 0.0
    %1780 = vmatprep.subr.mxu0 0.0
    %1781 = vmatpush2.msra.mxu0 0.0
    %1782 = vmatprep.subr.mxu0 0.0
    %1783 = vmatpush2.msra.mxu0 0.0
    %1784 = vmatprep.subr.mxu0 0.0
    %1785 = vmatpush2.msra.mxu0 0.0
    %1786 = vmatprep.subr.mxu0 0.0
    %1787 = vmatpush2.msra.mxu0 0.0
    %1788 = vmatprep.subr.mxu0 0.0
    %1789 = vmatpush2.msra.mxu0 0.0
    %1790 = vmatprep.subr.mxu0 0.0
    %1791 = vmatpush2.msra.mxu0 0.0
    %1792 = vmatprep.mubr.f32.mxu0 0.0
    %v1793 = vand.u32 %v72, 4294901760
    %1794 = vmatmul.mubr.f32.gmra.mxu0 %v1793
    %v1795 = vpop.f32.mrf.mxu0
    %v1796 = vadd.f32 %v1535, %v1795
    %v1797 = vpop.f32.mrf.mxu0
    %1798 = vmatprep.mubr.f32.mxu0 0.0
    %v1799 = vand.u32 %v75, 4294901760
    %1800 = vmatmul.mubr.f32.gmra.mxu0 %v1799
    %v1801 = vpop.f32.mrf.mxu0
    %v1802 = vadd.f32 %v1541, %v1801
    %v1803 = vpop.f32.mrf.mxu0
    %1804 = vmatprep.mubr.f32.mxu0 0.0
    %v1805 = vand.u32 %v78, 4294901760
    %1806 = vmatmul.mubr.f32.gmra.mxu0 %v1805
    %v1807 = vpop.f32.mrf.mxu0
    %v1808 = vadd.f32 %v1547, %v1807
    %v1809 = vpop.f32.mrf.mxu0
    %1810 = vmatprep.mubr.f32.mxu0 0.0
    %v1811 = vand.u32 %v81, 4294901760
    %1812 = vmatmul.mubr.f32.gmra.mxu0 %v1811
    %v1813 = vpop.f32.mrf.mxu0
    %v1814 = vadd.f32 %v1553, %v1813
    %v1815 = vpop.f32.mrf.mxu0
    %1816 = vmatprep.mubr.f32.mxu0 0.0
    %v1817 = vand.u32 %v84, 4294901760
    %1818 = vmatmul.mubr.f32.gmra.mxu0 %v1817
    %v1819 = vpop.f32.mrf.mxu0
    %v1820 = vadd.f32 %v1559, %v1819
    %v1821 = vpop.f32.mrf.mxu0
    %1822 = vmatprep.mubr.f32.mxu0 0.0
    %v1823 = vand.u32 %v87, 4294901760
    %1824 = vmatmul.mubr.f32.gmra.mxu0 %v1823
    %v1825 = vpop.f32.mrf.mxu0
    %v1826 = vadd.f32 %v1565, %v1825
    %v1827 = vpop.f32.mrf.mxu0
    %1828 = vmatprep.mubr.f32.mxu0 0.0
    %v1829 = vand.u32 %v90, 4294901760
    %1830 = vmatmul.mubr.f32.gmra.mxu0 %v1829
    %v1831 = vpop.f32.mrf.mxu0
    %v1832 = vadd.f32 %v1571, %v1831
    %v1833 = vpop.f32.mrf.mxu0
    %1834 = vmatprep.mubr.f32.mxu0 0.0
    %v1835 = vand.u32 %v93, 4294901760
    %1836 = vmatmul.mubr.f32.gmra.mxu0 %v1835
    %v1837 = vpop.f32.mrf.mxu0
    %v1838 = vadd.f32 %v1577, %v1837
    %v1839 = vpop.f32.mrf.mxu0
    %1840 = vmatprep.mubr.f32.mxu0 0.0
    %v1841 = vand.u32 %v96, 4294901760
    %1842 = vmatmul.mubr.f32.gmra.mxu0 %v1841
    %v1843 = vpop.f32.mrf.mxu0
    %v1844 = vadd.f32 %v1583, %v1843
    %v1845 = vpop.f32.mrf.mxu0
    %1846 = vmatprep.mubr.f32.mxu0 0.0
    %v1847 = vand.u32 %v99, 4294901760
    %1848 = vmatmul.mubr.f32.gmra.mxu0 %v1847
    %v1849 = vpop.f32.mrf.mxu0
    %v1850 = vadd.f32 %v1589, %v1849
    %v1851 = vpop.f32.mrf.mxu0
    %1852 = vmatprep.mubr.f32.mxu0 0.0
    %v1853 = vand.u32 %v102, 4294901760
    %1854 = vmatmul.mubr.f32.gmra.mxu0 %v1853
    %v1855 = vpop.f32.mrf.mxu0
    %v1856 = vadd.f32 %v1595, %v1855
    %v1857 = vpop.f32.mrf.mxu0
    %1858 = vmatprep.mubr.f32.mxu0 0.0
    %v1859 = vand.u32 %v105, 4294901760
    %1860 = vmatmul.mubr.f32.gmra.mxu0 %v1859
    %v1861 = vpop.f32.mrf.mxu0
    %v1862 = vadd.f32 %v1601, %v1861
    %v1863 = vpop.f32.mrf.mxu0
    %1864 = vmatprep.mubr.f32.mxu0 0.0
    %v1865 = vand.u32 %v108, 4294901760
    %1866 = vmatmul.mubr.f32.gmra.mxu0 %v1865
    %v1867 = vpop.f32.mrf.mxu0
    %v1868 = vadd.f32 %v1607, %v1867
    %v1869 = vpop.f32.mrf.mxu0
    %1870 = vmatprep.mubr.f32.mxu0 0.0
    %v1871 = vand.u32 %v111, 4294901760
    %1872 = vmatmul.mubr.f32.gmra.mxu0 %v1871
    %v1873 = vpop.f32.mrf.mxu0
    %v1874 = vadd.f32 %v1613, %v1873
    %v1875 = vpop.f32.mrf.mxu0
    %1876 = vmatprep.mubr.f32.mxu0 0.0
    %v1877 = vand.u32 %v114, 4294901760
    %1878 = vmatmul.mubr.f32.gmra.mxu0 %v1877
    %v1879 = vpop.f32.mrf.mxu0
    %v1880 = vadd.f32 %v1619, %v1879
    %v1881 = vpop.f32.mrf.mxu0
    %1882 = vmatprep.mubr.f32.mxu0 0.0
    %v1883 = vand.u32 %v117, 4294901760
    %1884 = vmatmul.mubr.f32.gmra.mxu0 %v1883
    %v1885 = vpop.f32.mrf.mxu0
    %v1886 = vadd.f32 %v1625, %v1885
    %v1887 = vpop.f32.mrf.mxu0
    %1888 = vmatprep.mubr.f32.mxu0 0.0
    %v1889 = vand.u32 %v120, 4294901760
    %1890 = vmatmul.mubr.f32.gmra.mxu0 %v1889
    %v1891 = vpop.f32.mrf.mxu0
    %v1892 = vadd.f32 %v1631, %v1891
    %v1893 = vpop.f32.mrf.mxu0
    %1894 = vmatprep.mubr.f32.mxu0 0.0
    %v1895 = vand.u32 %v123, 4294901760
    %1896 = vmatmul.mubr.f32.gmra.mxu0 %v1895
    %v1897 = vpop.f32.mrf.mxu0
    %v1898 = vadd.f32 %v1637, %v1897
    %v1899 = vpop.f32.mrf.mxu0
    %1900 = vmatprep.mubr.f32.mxu0 0.0
    %v1901 = vand.u32 %v126, 4294901760
    %1902 = vmatmul.mubr.f32.gmra.mxu0 %v1901
    %v1903 = vpop.f32.mrf.mxu0
    %v1904 = vadd.f32 %v1643, %v1903
    %v1905 = vpop.f32.mrf.mxu0
    %1906 = vmatprep.mubr.f32.mxu0 0.0
    %v1907 = vand.u32 %v129, 4294901760
    %1908 = vmatmul.mubr.f32.gmra.mxu0 %v1907
    %v1909 = vpop.f32.mrf.mxu0
    %v1910 = vadd.f32 %v1649, %v1909
    %v1911 = vpop.f32.mrf.mxu0
    %1912 = vmatprep.mubr.f32.mxu0 0.0
    %v1913 = vand.u32 %v132, 4294901760
    %1914 = vmatmul.mubr.f32.gmra.mxu0 %v1913
    %v1915 = vpop.f32.mrf.mxu0
    %v1916 = vadd.f32 %v1655, %v1915
    %v1917 = vpop.f32.mrf.mxu0
    %1918 = vmatprep.mubr.f32.mxu0 0.0
    %v1919 = vand.u32 %v135, 4294901760
    %1920 = vmatmul.mubr.f32.gmra.mxu0 %v1919
    %v1921 = vpop.f32.mrf.mxu0
    %v1922 = vadd.f32 %v1661, %v1921
    %v1923 = vpop.f32.mrf.mxu0
    %1924 = vmatprep.mubr.f32.mxu0 0.0
    %v1925 = vand.u32 %v138, 4294901760
    %1926 = vmatmul.mubr.f32.gmra.mxu0 %v1925
    %v1927 = vpop.f32.mrf.mxu0
    %v1928 = vadd.f32 %v1667, %v1927
    %v1929 = vpop.f32.mrf.mxu0
    %1930 = vmatprep.mubr.f32.mxu0 0.0
    %v1931 = vand.u32 %v141, 4294901760
    %1932 = vmatmul.mubr.f32.gmra.mxu0 %v1931
    %v1933 = vpop.f32.mrf.mxu0
    %v1934 = vadd.f32 %v1673, %v1933
    %v1935 = vpop.f32.mrf.mxu0
    %1936 = vmatprep.mubr.f32.mxu0 0.0
    %v1937 = vand.u32 %v144, 4294901760
    %1938 = vmatmul.mubr.f32.gmra.mxu0 %v1937
    %v1939 = vpop.f32.mrf.mxu0
    %v1940 = vadd.f32 %v1679, %v1939
    %v1941 = vpop.f32.mrf.mxu0
    %1942 = vmatprep.mubr.f32.mxu0 0.0
    %v1943 = vand.u32 %v147, 4294901760
    %1944 = vmatmul.mubr.f32.gmra.mxu0 %v1943
    %v1945 = vpop.f32.mrf.mxu0
    %v1946 = vadd.f32 %v1685, %v1945
    %v1947 = vpop.f32.mrf.mxu0
    %1948 = vmatprep.mubr.f32.mxu0 0.0
    %v1949 = vand.u32 %v150, 4294901760
    %1950 = vmatmul.mubr.f32.gmra.mxu0 %v1949
    %v1951 = vpop.f32.mrf.mxu0
    %v1952 = vadd.f32 %v1691, %v1951
    %v1953 = vpop.f32.mrf.mxu0
    %1954 = vmatprep.mubr.f32.mxu0 0.0
    %v1955 = vand.u32 %v153, 4294901760
    %1956 = vmatmul.mubr.f32.gmra.mxu0 %v1955
    %v1957 = vpop.f32.mrf.mxu0
    %v1958 = vadd.f32 %v1697, %v1957
    %v1959 = vpop.f32.mrf.mxu0
    %1960 = vmatprep.mubr.f32.mxu0 0.0
    %v1961 = vand.u32 %v156, 4294901760
    %1962 = vmatmul.mubr.f32.gmra.mxu0 %v1961
    %v1963 = vpop.f32.mrf.mxu0
    %v1964 = vadd.f32 %v1703, %v1963
    %v1965 = vpop.f32.mrf.mxu0
    %1966 = vmatprep.mubr.f32.mxu0 0.0
    %v1967 = vand.u32 %v159, 4294901760
    %1968 = vmatmul.mubr.f32.gmra.mxu0 %v1967
    %v1969 = vpop.f32.mrf.mxu0
    %v1970 = vadd.f32 %v1709, %v1969
    %v1971 = vpop.f32.mrf.mxu0
    %1972 = vmatprep.mubr.f32.mxu0 0.0
    %v1973 = vand.u32 %v162, 4294901760
    %1974 = vmatmul.mubr.f32.gmra.mxu0 %v1973
    %v1975 = vpop.f32.mrf.mxu0
    %v1976 = vadd.f32 %v1715, %v1975
    %v1977 = vpop.f32.mrf.mxu0
    %1978 = vmatprep.mubr.f32.mxu0 0.0
    %v1979 = vand.u32 %v165, 4294901760
    %1980 = vmatmul.mubr.f32.gmra.mxu0 %v1979
    %v1981 = vpop.f32.mrf.mxu0
    %v1982 = vadd.f32 %v1721, %v1981
    %v1983 = vpop.f32.mrf.mxu0
    %1984 = vdwg.mxu0
    %v1985 = vmax.f32 %v1796, 0.0
    %v1986 = vmax.f32 %v1802, 0.0
    %v1987 = vmax.f32 %v1808, 0.0
    %v1988 = vmax.f32 %v1814, 0.0
    %v1989 = vmax.f32 %v1820, 0.0
    %v1990 = vmax.f32 %v1826, 0.0
    %v1991 = vmax.f32 %v1832, 0.0
    %v1992 = vmax.f32 %v1838, 0.0
    %v1993 = vmax.f32 %v1844, 0.0
    %v1994 = vmax.f32 %v1850, 0.0
    %v1995 = vmax.f32 %v1856, 0.0
    %v1996 = vmax.f32 %v1862, 0.0
    %v1997 = vmax.f32 %v1868, 0.0
    %v1998 = vmax.f32 %v1874, 0.0
    %v1999 = vmax.f32 %v1880, 0.0
    %v2000 = vmax.f32 %v1886, 0.0
    %v2001 = vmax.f32 %v1892, 0.0
    %v2002 = vmax.f32 %v1898, 0.0
    %v2003 = vmax.f32 %v1904, 0.0
    %v2004 = vmax.f32 %v1910, 0.0
    %v2005 = vmax.f32 %v1916, 0.0
    %v2006 = vmax.f32 %v1922, 0.0
    %v2007 = vmax.f32 %v1928, 0.0
    %v2008 = vmax.f32 %v1934, 0.0
    %v2009 = vmax.f32 %v1940, 0.0
    %v2010 = vmax.f32 %v1946, 0.0
    %v2011 = vmax.f32 %v1952, 0.0
    %v2012 = vmax.f32 %v1958, 0.0
    %v2013 = vmax.f32 %v1964, 0.0
    %v2014 = vmax.f32 %v1970, 0.0
    %v2015 = vmax.f32 %v1976, 0.0
    %v2016 = vmax.f32 %v1982, 0.0
    %v2017 = vld [vmem:[%s3] sm:$0xff]
    %v2018 = vld [vmem:[%s3 + $0x8] sm:$0xff]
    %v2019 = vld [vmem:[%s3 + $0x10] sm:$0xff]
    %v2020 = vld [vmem:[%s3 + $0x18] sm:$0xff]
    %v2021 = vld [vmem:[%s3 + $0x20] sm:$0xff]
    %v2022 = vld [vmem:[%s3 + $0x28] sm:$0xff]
    %v2023 = vld [vmem:[%s3 + $0x30] sm:$0xff]
    %v2024 = vld [vmem:[%s3 + $0x38] sm:$0xff]
    %v2025 = vld [vmem:[%s4] sm:$0x1]
    %v2027 = vlaneseq
    %v2028 = vshrl.u32 %v2027, 7
    %v2029 = vsub.s32 0, %v2028
    %v2030 = vrot.slane %v2025, %v2029
    %vm2032 = vcmask 523264
    %v2034 = vsel %vm2032, %v1985, 0
    %v2037 = vsel %vm2032, %v1986, 0
    %v2040 = vsel %vm2032, %v1987, 0
    %v2043 = vsel %vm2032, %v1988, 0
    %v2046 = vsel %vm2032, %v1989, 0
    %v2049 = vsel %vm2032, %v1990, 0
    %v2052 = vsel %vm2032, %v1991, 0
    %v2055 = vsel %vm2032, %v1992, 0
    %v2058 = vsel %vm2032, %v1993, 0
    %v2061 = vsel %vm2032, %v1994, 0
    %v2064 = vsel %vm2032, %v1995, 0
    %v2067 = vsel %vm2032, %v1996, 0
    %v2070 = vsel %vm2032, %v1997, 0
    %v2073 = vsel %vm2032, %v1998, 0
    %v2076 = vsel %vm2032, %v1999, 0
    %v2079 = vsel %vm2032, %v2000, 0
    %v2082 = vsel %vm2032, %v2001, 0
    %v2085 = vsel %vm2032, %v2002, 0
    %v2088 = vsel %vm2032, %v2003, 0
    %v2091 = vsel %vm2032, %v2004, 0
    %v2094 = vsel %vm2032, %v2005, 0
    %v2097 = vsel %vm2032, %v2006, 0
    %v2100 = vsel %vm2032, %v2007, 0
    %v2103 = vsel %vm2032, %v2008, 0
    %v2106 = vsel %vm2032, %v2009, 0
    %v2109 = vsel %vm2032, %v2010, 0
    %v2112 = vsel %vm2032, %v2011, 0
    %v2115 = vsel %vm2032, %v2012, 0
    %v2118 = vsel %vm2032, %v2013, 0
    %v2121 = vsel %vm2032, %v2014, 0
    %v2124 = vsel %vm2032, %v2015, 0
    %v2127 = vsel %vm2032, %v2016, 0
    %2129 = vmatprep.subr.mxu0 0.0
    %2130 = vmatpush1.msra.mxu0 0.0
    %2131 = vmatprep.subr.mxu0 0.0
    %2132 = vmatpush1.msra.mxu0 0.0
    %2133 = vmatprep.subr.mxu0 0.0
    %2134 = vmatpush1.msra.mxu0 0.0
    %2135 = vmatprep.subr.mxu0 0.0
    %2136 = vmatpush1.msra.mxu0 0.0
    %2137 = vmatprep.subr.mxu0 0.0
    %2138 = vmatpush1.msra.mxu0 0.0
    %2139 = vmatprep.subr.mxu0 0.0
    %2140 = vmatpush1.msra.mxu0 0.0
    %2141 = vmatprep.subr.mxu0 0.0
    %2142 = vmatpush1.msra.mxu0 0.0
    %2143 = vmatprep.subr.mxu0 0.0
    %2144 = vmatpush1.msra.mxu0 0.0
    %2145 = vmatprep.subr.mxu0 0.0
    %v2146 = vand.u32 %v2024, 4294901760
    %2147 = vmatpush1.msra.mxu0 %v2146
    %2148 = vmatprep.subr.mxu0 0.0
    %v2149 = vand.u32 %v2023, 4294901760
    %2150 = vmatpush1.msra.mxu0 %v2149
    %2151 = vmatprep.subr.mxu0 0.0
    %v2152 = vand.u32 %v2022, 4294901760
    %2153 = vmatpush1.msra.mxu0 %v2152
    %2154 = vmatprep.subr.mxu0 0.0
    %v2155 = vand.u32 %v2021, 4294901760
    %2156 = vmatpush1.msra.mxu0 %v2155
    %2157 = vmatprep.subr.mxu0 0.0
    %v2158 = vand.u32 %v2020, 4294901760
    %2159 = vmatpush1.msra.mxu0 %v2158
    %2160 = vmatprep.subr.mxu0 0.0
    %v2161 = vand.u32 %v2019, 4294901760
    %2162 = vmatpush1.msra.mxu0 %v2161
    %2163 = vmatprep.subr.mxu0 0.0
    %v2164 = vand.u32 %v2018, 4294901760
    %2165 = vmatpush1.msra.mxu0 %v2164
    %2166 = vmatprep.subr.mxu0 0.0
    %v2167 = vand.u32 %v2017, 4294901760
    %2168 = vmatpush1.msra.mxu0 %v2167
    %2169 = vmatprep.subr.mxu0 0.0
    %2170 = vmatpush2.msra.mxu0 0.0
    %2171 = vmatprep.subr.mxu0 0.0
    %2172 = vmatpush2.msra.mxu0 0.0
    %2173 = vmatprep.subr.mxu0 0.0
    %2174 = vmatpush2.msra.mxu0 0.0
    %2175 = vmatprep.subr.mxu0 0.0
    %2176 = vmatpush2.msra.mxu0 0.0
    %2177 = vmatprep.subr.mxu0 0.0
    %2178 = vmatpush2.msra.mxu0 0.0
    %2179 = vmatprep.subr.mxu0 0.0
    %2180 = vmatpush2.msra.mxu0 0.0
    %2181 = vmatprep.subr.mxu0 0.0
    %2182 = vmatpush2.msra.mxu0 0.0
    %2183 = vmatprep.subr.mxu0 0.0
    %2184 = vmatpush2.msra.mxu0 0.0
    %2185 = vmatprep.subr.mxu0 0.0
    %2186 = vmatpush2.msra.mxu0 0.0
    %2187 = vmatprep.subr.mxu0 0.0
    %2188 = vmatpush2.msra.mxu0 0.0
    %2189 = vmatprep.subr.mxu0 0.0
    %2190 = vmatpush2.msra.mxu0 0.0
    %2191 = vmatprep.subr.mxu0 0.0
    %2192 = vmatpush2.msra.mxu0 0.0
    %2193 = vmatprep.subr.mxu0 0.0
    %2194 = vmatpush2.msra.mxu0 0.0
    %2195 = vmatprep.subr.mxu0 0.0
    %2196 = vmatpush2.msra.mxu0 0.0
    %2197 = vmatprep.subr.mxu0 0.0
    %2198 = vmatpush2.msra.mxu0 0.0
    %2199 = vmatprep.subr.mxu0 0.0
    %2200 = vmatpush2.msra.mxu0 0.0
    %2201 = vmatprep.mubr.f32.mxu0 0.0
    %v2202 = vand.u32 %v2034, 4294901760
    %v2203 = vsub.f32 %v2034, %v2202
    %v2204 = vand.u32 %v2203, 4294901760
    %v2205 = vsub.f32 %v2203, %v2204
    %v2206 = vand.u32 %v2205, 4294901760
    %2207 = vmatmul.mubr.f32.gmra.mxu0 %v2206
    %v2208 = vpop.f32.mrf.mxu0
    %v2209 = vadd.f32 %v2030, %v2208
    %v2210 = vpop.f32.mrf.mxu0
    %2211 = vmatprep.mubr.f32.mxu0 0.0
    %v2212 = vand.u32 %v2037, 4294901760
    %v2213 = vsub.f32 %v2037, %v2212
    %v2214 = vand.u32 %v2213, 4294901760
    %v2215 = vsub.f32 %v2213, %v2214
    %v2216 = vand.u32 %v2215, 4294901760
    %2217 = vmatmul.mubr.f32.gmra.mxu0 %v2216
    %v2218 = vpop.f32.mrf.mxu0
    %v2219 = vadd.f32 %v2030, %v2218
    %v2220 = vpop.f32.mrf.mxu0
    %2221 = vmatprep.mubr.f32.mxu0 0.0
    %v2222 = vand.u32 %v2040, 4294901760
    %v2223 = vsub.f32 %v2040, %v2222
    %v2224 = vand.u32 %v2223, 4294901760
    %v2225 = vsub.f32 %v2223, %v2224
    %v2226 = vand.u32 %v2225, 4294901760
    %2227 = vmatmul.mubr.f32.gmra.mxu0 %v2226
    %v2228 = vpop.f32.mrf.mxu0
    %v2229 = vadd.f32 %v2030, %v2228
    %v2230 = vpop.f32.mrf.mxu0
    %2231 = vmatprep.mubr.f32.mxu0 0.0
    %v2232 = vand.u32 %v2043, 4294901760
    %v2233 = vsub.f32 %v2043, %v2232
    %v2234 = vand.u32 %v2233, 4294901760
    %v2235 = vsub.f32 %v2233, %v2234
    %v2236 = vand.u32 %v2235, 4294901760
    %2237 = vmatmul.mubr.f32.gmra.mxu0 %v2236
    %v2238 = vpop.f32.mrf.mxu0
    %v2239 = vadd.f32 %v2030, %v2238
    %v2240 = vpop.f32.mrf.mxu0
    %2241 = vmatprep.mubr.f32.mxu0 0.0
    %v2242 = vand.u32 %v2046, 4294901760
    %v2243 = vsub.f32 %v2046, %v2242
    %v2244 = vand.u32 %v2243, 4294901760
    %v2245 = vsub.f32 %v2243, %v2244
    %v2246 = vand.u32 %v2245, 4294901760
    %2247 = vmatmul.mubr.f32.gmra.mxu0 %v2246
    %v2248 = vpop.f32.mrf.mxu0
    %v2249 = vadd.f32 %v2030, %v2248
    %v2250 = vpop.f32.mrf.mxu0
    %2251 = vmatprep.mubr.f32.mxu0 0.0
    %v2252 = vand.u32 %v2049, 4294901760
    %v2253 = vsub.f32 %v2049, %v2252
    %v2254 = vand.u32 %v2253, 4294901760
    %v2255 = vsub.f32 %v2253, %v2254
    %v2256 = vand.u32 %v2255, 4294901760
    %2257 = vmatmul.mubr.f32.gmra.mxu0 %v2256
    %v2258 = vpop.f32.mrf.mxu0
    %v2259 = vadd.f32 %v2030, %v2258
    %v2260 = vpop.f32.mrf.mxu0
    %2261 = vmatprep.mubr.f32.mxu0 0.0
    %v2262 = vand.u32 %v2052, 4294901760
    %v2263 = vsub.f32 %v2052, %v2262
    %v2264 = vand.u32 %v2263, 4294901760
    %v2265 = vsub.f32 %v2263, %v2264
    %v2266 = vand.u32 %v2265, 4294901760
    %2267 = vmatmul.mubr.f32.gmra.mxu0 %v2266
    %v2268 = vpop.f32.mrf.mxu0
    %v2269 = vadd.f32 %v2030, %v2268
    %v2270 = vpop.f32.mrf.mxu0
    %2271 = vmatprep.mubr.f32.mxu0 0.0
    %v2272 = vand.u32 %v2055, 4294901760
    %v2273 = vsub.f32 %v2055, %v2272
    %v2274 = vand.u32 %v2273, 4294901760
    %v2275 = vsub.f32 %v2273, %v2274
    %v2276 = vand.u32 %v2275, 4294901760
    %2277 = vmatmul.mubr.f32.gmra.mxu0 %v2276
    %v2278 = vpop.f32.mrf.mxu0
    %v2279 = vadd.f32 %v2030, %v2278
    %v2280 = vpop.f32.mrf.mxu0
    %2281 = vmatprep.mubr.f32.mxu0 0.0
    %v2282 = vand.u32 %v2058, 4294901760
    %v2283 = vsub.f32 %v2058, %v2282
    %v2284 = vand.u32 %v2283, 4294901760
    %v2285 = vsub.f32 %v2283, %v2284
    %v2286 = vand.u32 %v2285, 4294901760
    %2287 = vmatmul.mubr.f32.gmra.mxu0 %v2286
    %v2288 = vpop.f32.mrf.mxu0
    %v2289 = vadd.f32 %v2030, %v2288
    %v2290 = vpop.f32.mrf.mxu0
    %2291 = vmatprep.mubr.f32.mxu0 0.0
    %v2292 = vand.u32 %v2061, 4294901760
    %v2293 = vsub.f32 %v2061, %v2292
    %v2294 = vand.u32 %v2293, 4294901760
    %v2295 = vsub.f32 %v2293, %v2294
    %v2296 = vand.u32 %v2295, 4294901760
    %2297 = vmatmul.mubr.f32.gmra.mxu0 %v2296
    %v2298 = vpop.f32.mrf.mxu0
    %v2299 = vadd.f32 %v2030, %v2298
    %v2300 = vpop.f32.mrf.mxu0
    %2301 = vmatprep.mubr.f32.mxu0 0.0
    %v2302 = vand.u32 %v2064, 4294901760
    %v2303 = vsub.f32 %v2064, %v2302
    %v2304 = vand.u32 %v2303, 4294901760
    %v2305 = vsub.f32 %v2303, %v2304
    %v2306 = vand.u32 %v2305, 4294901760
    %2307 = vmatmul.mubr.f32.gmra.mxu0 %v2306
    %v2308 = vpop.f32.mrf.mxu0
    %v2309 = vadd.f32 %v2030, %v2308
    %v2310 = vpop.f32.mrf.mxu0
    %2311 = vmatprep.mubr.f32.mxu0 0.0
    %v2312 = vand.u32 %v2067, 4294901760
    %v2313 = vsub.f32 %v2067, %v2312
    %v2314 = vand.u32 %v2313, 4294901760
    %v2315 = vsub.f32 %v2313, %v2314
    %v2316 = vand.u32 %v2315, 4294901760
    %2317 = vmatmul.mubr.f32.gmra.mxu0 %v2316
    %v2318 = vpop.f32.mrf.mxu0
    %v2319 = vadd.f32 %v2030, %v2318
    %v2320 = vpop.f32.mrf.mxu0
    %2321 = vmatprep.mubr.f32.mxu0 0.0
    %v2322 = vand.u32 %v2070, 4294901760
    %v2323 = vsub.f32 %v2070, %v2322
    %v2324 = vand.u32 %v2323, 4294901760
    %v2325 = vsub.f32 %v2323, %v2324
    %v2326 = vand.u32 %v2325, 4294901760
    %2327 = vmatmul.mubr.f32.gmra.mxu0 %v2326
    %v2328 = vpop.f32.mrf.mxu0
    %v2329 = vadd.f32 %v2030, %v2328
    %v2330 = vpop.f32.mrf.mxu0
    %2331 = vmatprep.mubr.f32.mxu0 0.0
    %v2332 = vand.u32 %v2073, 4294901760
    %v2333 = vsub.f32 %v2073, %v2332
    %v2334 = vand.u32 %v2333, 4294901760
    %v2335 = vsub.f32 %v2333, %v2334
    %v2336 = vand.u32 %v2335, 4294901760
    %2337 = vmatmul.mubr.f32.gmra.mxu0 %v2336
    %v2338 = vpop.f32.mrf.mxu0
    %v2339 = vadd.f32 %v2030, %v2338
    %v2340 = vpop.f32.mrf.mxu0
    %2341 = vmatprep.mubr.f32.mxu0 0.0
    %v2342 = vand.u32 %v2076, 4294901760
    %v2343 = vsub.f32 %v2076, %v2342
    %v2344 = vand.u32 %v2343, 4294901760
    %v2345 = vsub.f32 %v2343, %v2344
    %v2346 = vand.u32 %v2345, 4294901760
    %2347 = vmatmul.mubr.f32.gmra.mxu0 %v2346
    %v2348 = vpop.f32.mrf.mxu0
    %v2349 = vadd.f32 %v2030, %v2348
    %v2350 = vpop.f32.mrf.mxu0
    %2351 = vmatprep.mubr.f32.mxu0 0.0
    %v2352 = vand.u32 %v2079, 4294901760
    %v2353 = vsub.f32 %v2079, %v2352
    %v2354 = vand.u32 %v2353, 4294901760
    %v2355 = vsub.f32 %v2353, %v2354
    %v2356 = vand.u32 %v2355, 4294901760
    %2357 = vmatmul.mubr.f32.gmra.mxu0 %v2356
    %v2358 = vpop.f32.mrf.mxu0
    %v2359 = vadd.f32 %v2030, %v2358
    %v2360 = vpop.f32.mrf.mxu0
    %2361 = vmatprep.mubr.f32.mxu0 0.0
    %v2362 = vand.u32 %v2082, 4294901760
    %v2363 = vsub.f32 %v2082, %v2362
    %v2364 = vand.u32 %v2363, 4294901760
    %v2365 = vsub.f32 %v2363, %v2364
    %v2366 = vand.u32 %v2365, 4294901760
    %2367 = vmatmul.mubr.f32.gmra.mxu0 %v2366
    %v2368 = vpop.f32.mrf.mxu0
    %v2369 = vadd.f32 %v2030, %v2368
    %v2370 = vpop.f32.mrf.mxu0
    %2371 = vmatprep.mubr.f32.mxu0 0.0
    %v2372 = vand.u32 %v2085, 4294901760
    %v2373 = vsub.f32 %v2085, %v2372
    %v2374 = vand.u32 %v2373, 4294901760
    %v2375 = vsub.f32 %v2373, %v2374
    %v2376 = vand.u32 %v2375, 4294901760
    %2377 = vmatmul.mubr.f32.gmra.mxu0 %v2376
    %v2378 = vpop.f32.mrf.mxu0
    %v2379 = vadd.f32 %v2030, %v2378
    %v2380 = vpop.f32.mrf.mxu0
    %2381 = vmatprep.mubr.f32.mxu0 0.0
    %v2382 = vand.u32 %v2088, 4294901760
    %v2383 = vsub.f32 %v2088, %v2382
    %v2384 = vand.u32 %v2383, 4294901760
    %v2385 = vsub.f32 %v2383, %v2384
    %v2386 = vand.u32 %v2385, 4294901760
    %2387 = vmatmul.mubr.f32.gmra.mxu0 %v2386
    %v2388 = vpop.f32.mrf.mxu0
    %v2389 = vadd.f32 %v2030, %v2388
    %v2390 = vpop.f32.mrf.mxu0
    %2391 = vmatprep.mubr.f32.mxu0 0.0
    %v2392 = vand.u32 %v2091, 4294901760
    %v2393 = vsub.f32 %v2091, %v2392
    %v2394 = vand.u32 %v2393, 4294901760
    %v2395 = vsub.f32 %v2393, %v2394
    %v2396 = vand.u32 %v2395, 4294901760
    %2397 = vmatmul.mubr.f32.gmra.mxu0 %v2396
    %v2398 = vpop.f32.mrf.mxu0
    %v2399 = vadd.f32 %v2030, %v2398
    %v2400 = vpop.f32.mrf.mxu0
    %2401 = vmatprep.mubr.f32.mxu0 0.0
    %v2402 = vand.u32 %v2094, 4294901760
    %v2403 = vsub.f32 %v2094, %v2402
    %v2404 = vand.u32 %v2403, 4294901760
    %v2405 = vsub.f32 %v2403, %v2404
    %v2406 = vand.u32 %v2405, 4294901760
    %2407 = vmatmul.mubr.f32.gmra.mxu0 %v2406
    %v2408 = vpop.f32.mrf.mxu0
    %v2409 = vadd.f32 %v2030, %v2408
    %v2410 = vpop.f32.mrf.mxu0
    %2411 = vmatprep.mubr.f32.mxu0 0.0
    %v2412 = vand.u32 %v2097, 4294901760
    %v2413 = vsub.f32 %v2097, %v2412
    %v2414 = vand.u32 %v2413, 4294901760
    %v2415 = vsub.f32 %v2413, %v2414
    %v2416 = vand.u32 %v2415, 4294901760
    %2417 = vmatmul.mubr.f32.gmra.mxu0 %v2416
    %v2418 = vpop.f32.mrf.mxu0
    %v2419 = vadd.f32 %v2030, %v2418
    %v2420 = vpop.f32.mrf.mxu0
    %2421 = vmatprep.mubr.f32.mxu0 0.0
    %v2422 = vand.u32 %v2100, 4294901760
    %v2423 = vsub.f32 %v2100, %v2422
    %v2424 = vand.u32 %v2423, 4294901760
    %v2425 = vsub.f32 %v2423, %v2424
    %v2426 = vand.u32 %v2425, 4294901760
    %2427 = vmatmul.mubr.f32.gmra.mxu0 %v2426
    %v2428 = vpop.f32.mrf.mxu0
    %v2429 = vadd.f32 %v2030, %v2428
    %v2430 = vpop.f32.mrf.mxu0
    %2431 = vmatprep.mubr.f32.mxu0 0.0
    %v2432 = vand.u32 %v2103, 4294901760
    %v2433 = vsub.f32 %v2103, %v2432
    %v2434 = vand.u32 %v2433, 4294901760
    %v2435 = vsub.f32 %v2433, %v2434
    %v2436 = vand.u32 %v2435, 4294901760
    %2437 = vmatmul.mubr.f32.gmra.mxu0 %v2436
    %v2438 = vpop.f32.mrf.mxu0
    %v2439 = vadd.f32 %v2030, %v2438
    %v2440 = vpop.f32.mrf.mxu0
    %2441 = vmatprep.mubr.f32.mxu0 0.0
    %v2442 = vand.u32 %v2106, 4294901760
    %v2443 = vsub.f32 %v2106, %v2442
    %v2444 = vand.u32 %v2443, 4294901760
    %v2445 = vsub.f32 %v2443, %v2444
    %v2446 = vand.u32 %v2445, 4294901760
    %2447 = vmatmul.mubr.f32.gmra.mxu0 %v2446
    %v2448 = vpop.f32.mrf.mxu0
    %v2449 = vadd.f32 %v2030, %v2448
    %v2450 = vpop.f32.mrf.mxu0
    %2451 = vmatprep.mubr.f32.mxu0 0.0
    %v2452 = vand.u32 %v2109, 4294901760
    %v2453 = vsub.f32 %v2109, %v2452
    %v2454 = vand.u32 %v2453, 4294901760
    %v2455 = vsub.f32 %v2453, %v2454
    %v2456 = vand.u32 %v2455, 4294901760
    %2457 = vmatmul.mubr.f32.gmra.mxu0 %v2456
    %v2458 = vpop.f32.mrf.mxu0
    %v2459 = vadd.f32 %v2030, %v2458
    %v2460 = vpop.f32.mrf.mxu0
    %2461 = vmatprep.mubr.f32.mxu0 0.0
    %v2462 = vand.u32 %v2112, 4294901760
    %v2463 = vsub.f32 %v2112, %v2462
    %v2464 = vand.u32 %v2463, 4294901760
    %v2465 = vsub.f32 %v2463, %v2464
    %v2466 = vand.u32 %v2465, 4294901760
    %2467 = vmatmul.mubr.f32.gmra.mxu0 %v2466
    %v2468 = vpop.f32.mrf.mxu0
    %v2469 = vadd.f32 %v2030, %v2468
    %v2470 = vpop.f32.mrf.mxu0
    %2471 = vmatprep.mubr.f32.mxu0 0.0
    %v2472 = vand.u32 %v2115, 4294901760
    %v2473 = vsub.f32 %v2115, %v2472
    %v2474 = vand.u32 %v2473, 4294901760
    %v2475 = vsub.f32 %v2473, %v2474
    %v2476 = vand.u32 %v2475, 4294901760
    %2477 = vmatmul.mubr.f32.gmra.mxu0 %v2476
    %v2478 = vpop.f32.mrf.mxu0
    %v2479 = vadd.f32 %v2030, %v2478
    %v2480 = vpop.f32.mrf.mxu0
    %2481 = vmatprep.mubr.f32.mxu0 0.0
    %v2482 = vand.u32 %v2118, 4294901760
    %v2483 = vsub.f32 %v2118, %v2482
    %v2484 = vand.u32 %v2483, 4294901760
    %v2485 = vsub.f32 %v2483, %v2484
    %v2486 = vand.u32 %v2485, 4294901760
    %2487 = vmatmul.mubr.f32.gmra.mxu0 %v2486
    %v2488 = vpop.f32.mrf.mxu0
    %v2489 = vadd.f32 %v2030, %v2488
    %v2490 = vpop.f32.mrf.mxu0
    %2491 = vmatprep.mubr.f32.mxu0 0.0
    %v2492 = vand.u32 %v2121, 4294901760
    %v2493 = vsub.f32 %v2121, %v2492
    %v2494 = vand.u32 %v2493, 4294901760
    %v2495 = vsub.f32 %v2493, %v2494
    %v2496 = vand.u32 %v2495, 4294901760
    %2497 = vmatmul.mubr.f32.gmra.mxu0 %v2496
    %v2498 = vpop.f32.mrf.mxu0
    %v2499 = vadd.f32 %v2030, %v2498
    %v2500 = vpop.f32.mrf.mxu0
    %2501 = vmatprep.mubr.f32.mxu0 0.0
    %v2502 = vand.u32 %v2124, 4294901760
    %v2503 = vsub.f32 %v2124, %v2502
    %v2504 = vand.u32 %v2503, 4294901760
    %v2505 = vsub.f32 %v2503, %v2504
    %v2506 = vand.u32 %v2505, 4294901760
    %2507 = vmatmul.mubr.f32.gmra.mxu0 %v2506
    %v2508 = vpop.f32.mrf.mxu0
    %v2509 = vadd.f32 %v2030, %v2508
    %v2510 = vpop.f32.mrf.mxu0
    %2511 = vmatprep.mubr.f32.mxu0 0.0
    %v2512 = vand.u32 %v2127, 4294901760
    %v2513 = vsub.f32 %v2127, %v2512
    %v2514 = vand.u32 %v2513, 4294901760
    %v2515 = vsub.f32 %v2513, %v2514
    %v2516 = vand.u32 %v2515, 4294901760
    %2517 = vmatmul.mubr.f32.gmra.mxu0 %v2516
    %v2518 = vpop.f32.mrf.mxu0
    %v2519 = vadd.f32 %v2030, %v2518
    %v2520 = vpop.f32.mrf.mxu0
    %2521 = vdwg.mxu0
    %2522 = vmatprep.subr.mxu0 0.0
    %2523 = vmatpush1.msra.mxu0 0.0
    %2524 = vmatprep.subr.mxu0 0.0
    %2525 = vmatpush1.msra.mxu0 0.0
    %2526 = vmatprep.subr.mxu0 0.0
    %2527 = vmatpush1.msra.mxu0 0.0
    %2528 = vmatprep.subr.mxu0 0.0
    %2529 = vmatpush1.msra.mxu0 0.0
    %2530 = vmatprep.subr.mxu0 0.0
    %2531 = vmatpush1.msra.mxu0 0.0
    %2532 = vmatprep.subr.mxu0 0.0
    %2533 = vmatpush1.msra.mxu0 0.0
    %2534 = vmatprep.subr.mxu0 0.0
    %2535 = vmatpush1.msra.mxu0 0.0
    %2536 = vmatprep.subr.mxu0 0.0
    %2537 = vmatpush1.msra.mxu0 0.0
    %2538 = vmatprep.subr.mxu0 0.0
    %v2539 = vand.u32 %v2024, 4294901760
    %v2540 = vsub.f32 %v2024, %v2539
    %v2541 = vand.u32 %v2540, 4294901760
    %v2542 = vsub.f32 %v2540, %v2541
    %v2543 = vand.u32 %v2542, 4294901760
    %2544 = vmatpush1.msra.mxu0 %v2543
    %2545 = vmatprep.subr.mxu0 0.0
    %v2546 = vand.u32 %v2023, 4294901760
    %v2547 = vsub.f32 %v2023, %v2546
    %v2548 = vand.u32 %v2547, 4294901760
    %v2549 = vsub.f32 %v2547, %v2548
    %v2550 = vand.u32 %v2549, 4294901760
    %2551 = vmatpush1.msra.mxu0 %v2550
    %2552 = vmatprep.subr.mxu0 0.0
    %v2553 = vand.u32 %v2022, 4294901760
    %v2554 = vsub.f32 %v2022, %v2553
    %v2555 = vand.u32 %v2554, 4294901760
    %v2556 = vsub.f32 %v2554, %v2555
    %v2557 = vand.u32 %v2556, 4294901760
    %2558 = vmatpush1.msra.mxu0 %v2557
    %2559 = vmatprep.subr.mxu0 0.0
    %v2560 = vand.u32 %v2021, 4294901760
    %v2561 = vsub.f32 %v2021, %v2560
    %v2562 = vand.u32 %v2561, 4294901760
    %v2563 = vsub.f32 %v2561, %v2562
    %v2564 = vand.u32 %v2563, 4294901760
    %2565 = vmatpush1.msra.mxu0 %v2564
    %2566 = vmatprep.subr.mxu0 0.0
    %v2567 = vand.u32 %v2020, 4294901760
    %v2568 = vsub.f32 %v2020, %v2567
    %v2569 = vand.u32 %v2568, 4294901760
    %v2570 = vsub.f32 %v2568, %v2569
    %v2571 = vand.u32 %v2570, 4294901760
    %2572 = vmatpush1.msra.mxu0 %v2571
    %2573 = vmatprep.subr.mxu0 0.0
    %v2574 = vand.u32 %v2019, 4294901760
    %v2575 = vsub.f32 %v2019, %v2574
    %v2576 = vand.u32 %v2575, 4294901760
    %v2577 = vsub.f32 %v2575, %v2576
    %v2578 = vand.u32 %v2577, 4294901760
    %2579 = vmatpush1.msra.mxu0 %v2578
    %2580 = vmatprep.subr.mxu0 0.0
    %v2581 = vand.u32 %v2018, 4294901760
    %v2582 = vsub.f32 %v2018, %v2581
    %v2583 = vand.u32 %v2582, 4294901760
    %v2584 = vsub.f32 %v2582, %v2583
    %v2585 = vand.u32 %v2584, 4294901760
    %2586 = vmatpush1.msra.mxu0 %v2585
    %2587 = vmatprep.subr.mxu0 0.0
    %v2588 = vand.u32 %v2017, 4294901760
    %v2589 = vsub.f32 %v2017, %v2588
    %v2590 = vand.u32 %v2589, 4294901760
    %v2591 = vsub.f32 %v2589, %v2590
    %v2592 = vand.u32 %v2591, 4294901760
    %2593 = vmatpush1.msra.mxu0 %v2592
    %2594 = vmatprep.subr.mxu0 0.0
    %2595 = vmatpush2.msra.mxu0 0.0
    %2596 = vmatprep.subr.mxu0 0.0
    %2597 = vmatpush2.msra.mxu0 0.0
    %2598 = vmatprep.subr.mxu0 0.0
    %2599 = vmatpush2.msra.mxu0 0.0
    %2600 = vmatprep.subr.mxu0 0.0
    %2601 = vmatpush2.msra.mxu0 0.0
    %2602 = vmatprep.subr.mxu0 0.0
    %2603 = vmatpush2.msra.mxu0 0.0
    %2604 = vmatprep.subr.mxu0 0.0
    %2605 = vmatpush2.msra.mxu0 0.0
    %2606 = vmatprep.subr.mxu0 0.0
    %2607 = vmatpush2.msra.mxu0 0.0
    %2608 = vmatprep.subr.mxu0 0.0
    %2609 = vmatpush2.msra.mxu0 0.0
    %2610 = vmatprep.subr.mxu0 0.0
    %2611 = vmatpush2.msra.mxu0 0.0
    %2612 = vmatprep.subr.mxu0 0.0
    %2613 = vmatpush2.msra.mxu0 0.0
    %2614 = vmatprep.subr.mxu0 0.0
    %2615 = vmatpush2.msra.mxu0 0.0
    %2616 = vmatprep.subr.mxu0 0.0
    %2617 = vmatpush2.msra.mxu0 0.0
    %2618 = vmatprep.subr.mxu0 0.0
    %2619 = vmatpush2.msra.mxu0 0.0
    %2620 = vmatprep.subr.mxu0 0.0
    %2621 = vmatpush2.msra.mxu0 0.0
    %2622 = vmatprep.subr.mxu0 0.0
    %2623 = vmatpush2.msra.mxu0 0.0
    %2624 = vmatprep.subr.mxu0 0.0
    %2625 = vmatpush2.msra.mxu0 0.0
    %2626 = vmatprep.mubr.f32.mxu0 0.0
    %v2627 = vand.u32 %v2034, 4294901760
    %2628 = vmatmul.mubr.f32.gmra.mxu0 %v2627
    %v2629 = vpop.f32.mrf.mxu0
    %v2630 = vadd.f32 %v2209, %v2629
    %v2631 = vpop.f32.mrf.mxu0
    %2632 = vmatprep.mubr.f32.mxu0 0.0
    %v2633 = vand.u32 %v2037, 4294901760
    %2634 = vmatmul.mubr.f32.gmra.mxu0 %v2633
    %v2635 = vpop.f32.mrf.mxu0
    %v2636 = vadd.f32 %v2219, %v2635
    %v2637 = vpop.f32.mrf.mxu0
    %2638 = vmatprep.mubr.f32.mxu0 0.0
    %v2639 = vand.u32 %v2040, 4294901760
    %2640 = vmatmul.mubr.f32.gmra.mxu0 %v2639
    %v2641 = vpop.f32.mrf.mxu0
    %v2642 = vadd.f32 %v2229, %v2641
    %v2643 = vpop.f32.mrf.mxu0
    %2644 = vmatprep.mubr.f32.mxu0 0.0
    %v2645 = vand.u32 %v2043, 4294901760
    %2646 = vmatmul.mubr.f32.gmra.mxu0 %v2645
    %v2647 = vpop.f32.mrf.mxu0
    %v2648 = vadd.f32 %v2239, %v2647
    %v2649 = vpop.f32.mrf.mxu0
    %2650 = vmatprep.mubr.f32.mxu0 0.0
    %v2651 = vand.u32 %v2046, 4294901760
    %2652 = vmatmul.mubr.f32.gmra.mxu0 %v2651
    %v2653 = vpop.f32.mrf.mxu0
    %v2654 = vadd.f32 %v2249, %v2653
    %v2655 = vpop.f32.mrf.mxu0
    %2656 = vmatprep.mubr.f32.mxu0 0.0
    %v2657 = vand.u32 %v2049, 4294901760
    %2658 = vmatmul.mubr.f32.gmra.mxu0 %v2657
    %v2659 = vpop.f32.mrf.mxu0
    %v2660 = vadd.f32 %v2259, %v2659
    %v2661 = vpop.f32.mrf.mxu0
    %2662 = vmatprep.mubr.f32.mxu0 0.0
    %v2663 = vand.u32 %v2052, 4294901760
    %2664 = vmatmul.mubr.f32.gmra.mxu0 %v2663
    %v2665 = vpop.f32.mrf.mxu0
    %v2666 = vadd.f32 %v2269, %v2665
    %v2667 = vpop.f32.mrf.mxu0
    %2668 = vmatprep.mubr.f32.mxu0 0.0
    %v2669 = vand.u32 %v2055, 4294901760
    %2670 = vmatmul.mubr.f32.gmra.mxu0 %v2669
    %v2671 = vpop.f32.mrf.mxu0
    %v2672 = vadd.f32 %v2279, %v2671
    %v2673 = vpop.f32.mrf.mxu0
    %2674 = vmatprep.mubr.f32.mxu0 0.0
    %v2675 = vand.u32 %v2058, 4294901760
    %2676 = vmatmul.mubr.f32.gmra.mxu0 %v2675
    %v2677 = vpop.f32.mrf.mxu0
    %v2678 = vadd.f32 %v2289, %v2677
    %v2679 = vpop.f32.mrf.mxu0
    %2680 = vmatprep.mubr.f32.mxu0 0.0
    %v2681 = vand.u32 %v2061, 4294901760
    %2682 = vmatmul.mubr.f32.gmra.mxu0 %v2681
    %v2683 = vpop.f32.mrf.mxu0
    %v2684 = vadd.f32 %v2299, %v2683
    %v2685 = vpop.f32.mrf.mxu0
    %2686 = vmatprep.mubr.f32.mxu0 0.0
    %v2687 = vand.u32 %v2064, 4294901760
    %2688 = vmatmul.mubr.f32.gmra.mxu0 %v2687
    %v2689 = vpop.f32.mrf.mxu0
    %v2690 = vadd.f32 %v2309, %v2689
    %v2691 = vpop.f32.mrf.mxu0
    %2692 = vmatprep.mubr.f32.mxu0 0.0
    %v2693 = vand.u32 %v2067, 4294901760
    %2694 = vmatmul.mubr.f32.gmra.mxu0 %v2693
    %v2695 = vpop.f32.mrf.mxu0
    %v2696 = vadd.f32 %v2319, %v2695
    %v2697 = vpop.f32.mrf.mxu0
    %2698 = vmatprep.mubr.f32.mxu0 0.0
    %v2699 = vand.u32 %v2070, 4294901760
    %2700 = vmatmul.mubr.f32.gmra.mxu0 %v2699
    %v2701 = vpop.f32.mrf.mxu0
    %v2702 = vadd.f32 %v2329, %v2701
    %v2703 = vpop.f32.mrf.mxu0
    %2704 = vmatprep.mubr.f32.mxu0 0.0
    %v2705 = vand.u32 %v2073, 4294901760
    %2706 = vmatmul.mubr.f32.gmra.mxu0 %v2705
    %v2707 = vpop.f32.mrf.mxu0
    %v2708 = vadd.f32 %v2339, %v2707
    %v2709 = vpop.f32.mrf.mxu0
    %2710 = vmatprep.mubr.f32.mxu0 0.0
    %v2711 = vand.u32 %v2076, 4294901760
    %2712 = vmatmul.mubr.f32.gmra.mxu0 %v2711
    %v2713 = vpop.f32.mrf.mxu0
    %v2714 = vadd.f32 %v2349, %v2713
    %v2715 = vpop.f32.mrf.mxu0
    %2716 = vmatprep.mubr.f32.mxu0 0.0
    %v2717 = vand.u32 %v2079, 4294901760
    %2718 = vmatmul.mubr.f32.gmra.mxu0 %v2717
    %v2719 = vpop.f32.mrf.mxu0
    %v2720 = vadd.f32 %v2359, %v2719
    %v2721 = vpop.f32.mrf.mxu0
    %2722 = vmatprep.mubr.f32.mxu0 0.0
    %v2723 = vand.u32 %v2082, 4294901760
    %2724 = vmatmul.mubr.f32.gmra.mxu0 %v2723
    %v2725 = vpop.f32.mrf.mxu0
    %v2726 = vadd.f32 %v2369, %v2725
    %v2727 = vpop.f32.mrf.mxu0
    %2728 = vmatprep.mubr.f32.mxu0 0.0
    %v2729 = vand.u32 %v2085, 4294901760
    %2730 = vmatmul.mubr.f32.gmra.mxu0 %v2729
    %v2731 = vpop.f32.mrf.mxu0
    %v2732 = vadd.f32 %v2379, %v2731
    %v2733 = vpop.f32.mrf.mxu0
    %2734 = vmatprep.mubr.f32.mxu0 0.0
    %v2735 = vand.u32 %v2088, 4294901760
    %2736 = vmatmul.mubr.f32.gmra.mxu0 %v2735
    %v2737 = vpop.f32.mrf.mxu0
    %v2738 = vadd.f32 %v2389, %v2737
    %v2739 = vpop.f32.mrf.mxu0
    %2740 = vmatprep.mubr.f32.mxu0 0.0
    %v2741 = vand.u32 %v2091, 4294901760
    %2742 = vmatmul.mubr.f32.gmra.mxu0 %v2741
    %v2743 = vpop.f32.mrf.mxu0
    %v2744 = vadd.f32 %v2399, %v2743
    %v2745 = vpop.f32.mrf.mxu0
    %2746 = vmatprep.mubr.f32.mxu0 0.0
    %v2747 = vand.u32 %v2094, 4294901760
    %2748 = vmatmul.mubr.f32.gmra.mxu0 %v2747
    %v2749 = vpop.f32.mrf.mxu0
    %v2750 = vadd.f32 %v2409, %v2749
    %v2751 = vpop.f32.mrf.mxu0
    %2752 = vmatprep.mubr.f32.mxu0 0.0
    %v2753 = vand.u32 %v2097, 4294901760
    %2754 = vmatmul.mubr.f32.gmra.mxu0 %v2753
    %v2755 = vpop.f32.mrf.mxu0
    %v2756 = vadd.f32 %v2419, %v2755
    %v2757 = vpop.f32.mrf.mxu0
    %2758 = vmatprep.mubr.f32.mxu0 0.0
    %v2759 = vand.u32 %v2100, 4294901760
    %2760 = vmatmul.mubr.f32.gmra.mxu0 %v2759
    %v2761 = vpop.f32.mrf.mxu0
    %v2762 = vadd.f32 %v2429, %v2761
    %v2763 = vpop.f32.mrf.mxu0
    %2764 = vmatprep.mubr.f32.mxu0 0.0
    %v2765 = vand.u32 %v2103, 4294901760
    %2766 = vmatmul.mubr.f32.gmra.mxu0 %v2765
    %v2767 = vpop.f32.mrf.mxu0
    %v2768 = vadd.f32 %v2439, %v2767
    %v2769 = vpop.f32.mrf.mxu0
    %2770 = vmatprep.mubr.f32.mxu0 0.0
    %v2771 = vand.u32 %v2106, 4294901760
    %2772 = vmatmul.mubr.f32.gmra.mxu0 %v2771
    %v2773 = vpop.f32.mrf.mxu0
    %v2774 = vadd.f32 %v2449, %v2773
    %v2775 = vpop.f32.mrf.mxu0
    %2776 = vmatprep.mubr.f32.mxu0 0.0
    %v2777 = vand.u32 %v2109, 4294901760
    %2778 = vmatmul.mubr.f32.gmra.mxu0 %v2777
    %v2779 = vpop.f32.mrf.mxu0
    %v2780 = vadd.f32 %v2459, %v2779
    %v2781 = vpop.f32.mrf.mxu0
    %2782 = vmatprep.mubr.f32.mxu0 0.0
    %v2783 = vand.u32 %v2112, 4294901760
    %2784 = vmatmul.mubr.f32.gmra.mxu0 %v2783
    %v2785 = vpop.f32.mrf.mxu0
    %v2786 = vadd.f32 %v2469, %v2785
    %v2787 = vpop.f32.mrf.mxu0
    %2788 = vmatprep.mubr.f32.mxu0 0.0
    %v2789 = vand.u32 %v2115, 4294901760
    %2790 = vmatmul.mubr.f32.gmra.mxu0 %v2789
    %v2791 = vpop.f32.mrf.mxu0
    %v2792 = vadd.f32 %v2479, %v2791
    %v2793 = vpop.f32.mrf.mxu0
    %2794 = vmatprep.mubr.f32.mxu0 0.0
    %v2795 = vand.u32 %v2118, 4294901760
    %2796 = vmatmul.mubr.f32.gmra.mxu0 %v2795
    %v2797 = vpop.f32.mrf.mxu0
    %v2798 = vadd.f32 %v2489, %v2797
    %v2799 = vpop.f32.mrf.mxu0
    %2800 = vmatprep.mubr.f32.mxu0 0.0
    %v2801 = vand.u32 %v2121, 4294901760
    %2802 = vmatmul.mubr.f32.gmra.mxu0 %v2801
    %v2803 = vpop.f32.mrf.mxu0
    %v2804 = vadd.f32 %v2499, %v2803
    %v2805 = vpop.f32.mrf.mxu0
    %2806 = vmatprep.mubr.f32.mxu0 0.0
    %v2807 = vand.u32 %v2124, 4294901760
    %2808 = vmatmul.mubr.f32.gmra.mxu0 %v2807
    %v2809 = vpop.f32.mrf.mxu0
    %v2810 = vadd.f32 %v2509, %v2809
    %v2811 = vpop.f32.mrf.mxu0
    %2812 = vmatprep.mubr.f32.mxu0 0.0
    %v2813 = vand.u32 %v2127, 4294901760
    %2814 = vmatmul.mubr.f32.gmra.mxu0 %v2813
    %v2815 = vpop.f32.mrf.mxu0
    %v2816 = vadd.f32 %v2519, %v2815
    %v2817 = vpop.f32.mrf.mxu0
    %2818 = vdwg.mxu0
    %2819 = vmatprep.subr.mxu0 0.0
    %2820 = vmatpush1.msra.mxu0 0.0
    %2821 = vmatprep.subr.mxu0 0.0
    %2822 = vmatpush1.msra.mxu0 0.0
    %2823 = vmatprep.subr.mxu0 0.0
    %2824 = vmatpush1.msra.mxu0 0.0
    %2825 = vmatprep.subr.mxu0 0.0
    %2826 = vmatpush1.msra.mxu0 0.0
    %2827 = vmatprep.subr.mxu0 0.0
    %2828 = vmatpush1.msra.mxu0 0.0
    %2829 = vmatprep.subr.mxu0 0.0
    %2830 = vmatpush1.msra.mxu0 0.0
    %2831 = vmatprep.subr.mxu0 0.0
    %2832 = vmatpush1.msra.mxu0 0.0
    %2833 = vmatprep.subr.mxu0 0.0
    %2834 = vmatpush1.msra.mxu0 0.0
    %2835 = vmatprep.subr.mxu0 0.0
    %v2836 = vand.u32 %v2024, 4294901760
    %v2837 = vsub.f32 %v2024, %v2836
    %2838 = vmatpush1.msra.mxu0 %v2837
    %2839 = vmatprep.subr.mxu0 0.0
    %v2840 = vand.u32 %v2023, 4294901760
    %v2841 = vsub.f32 %v2023, %v2840
    %2842 = vmatpush1.msra.mxu0 %v2841
    %2843 = vmatprep.subr.mxu0 0.0
    %v2844 = vand.u32 %v2022, 4294901760
    %v2845 = vsub.f32 %v2022, %v2844
    %2846 = vmatpush1.msra.mxu0 %v2845
    %2847 = vmatprep.subr.mxu0 0.0
    %v2848 = vand.u32 %v2021, 4294901760
    %v2849 = vsub.f32 %v2021, %v2848
    %2850 = vmatpush1.msra.mxu0 %v2849
    %2851 = vmatprep.subr.mxu0 0.0
    %v2852 = vand.u32 %v2020, 4294901760
    %v2853 = vsub.f32 %v2020, %v2852
    %2854 = vmatpush1.msra.mxu0 %v2853
    %2855 = vmatprep.subr.mxu0 0.0
    %v2856 = vand.u32 %v2019, 4294901760
    %v2857 = vsub.f32 %v2019, %v2856
    %2858 = vmatpush1.msra.mxu0 %v2857
    %2859 = vmatprep.subr.mxu0 0.0
    %v2860 = vand.u32 %v2018, 4294901760
    %v2861 = vsub.f32 %v2018, %v2860
    %2862 = vmatpush1.msra.mxu0 %v2861
    %2863 = vmatprep.subr.mxu0 0.0
    %v2864 = vand.u32 %v2017, 4294901760
    %v2865 = vsub.f32 %v2017, %v2864
    %2866 = vmatpush1.msra.mxu0 %v2865
    %2867 = vmatprep.subr.mxu0 0.0
    %2868 = vmatpush2.msra.mxu0 0.0
    %2869 = vmatprep.subr.mxu0 0.0
    %2870 = vmatpush2.msra.mxu0 0.0
    %2871 = vmatprep.subr.mxu0 0.0
    %2872 = vmatpush2.msra.mxu0 0.0
    %2873 = vmatprep.subr.mxu0 0.0
    %2874 = vmatpush2.msra.mxu0 0.0
    %2875 = vmatprep.subr.mxu0 0.0
    %2876 = vmatpush2.msra.mxu0 0.0
    %2877 = vmatprep.subr.mxu0 0.0
    %2878 = vmatpush2.msra.mxu0 0.0
    %2879 = vmatprep.subr.mxu0 0.0
    %2880 = vmatpush2.msra.mxu0 0.0
    %2881 = vmatprep.subr.mxu0 0.0
    %2882 = vmatpush2.msra.mxu0 0.0
    %2883 = vmatprep.subr.mxu0 0.0
    %2884 = vmatpush2.msra.mxu0 0.0
    %2885 = vmatprep.subr.mxu0 0.0
    %2886 = vmatpush2.msra.mxu0 0.0
    %2887 = vmatprep.subr.mxu0 0.0
    %2888 = vmatpush2.msra.mxu0 0.0
    %2889 = vmatprep.subr.mxu0 0.0
    %2890 = vmatpush2.msra.mxu0 0.0
    %2891 = vmatprep.subr.mxu0 0.0
    %2892 = vmatpush2.msra.mxu0 0.0
    %2893 = vmatprep.subr.mxu0 0.0
    %2894 = vmatpush2.msra.mxu0 0.0
    %2895 = vmatprep.subr.mxu0 0.0
    %2896 = vmatpush2.msra.mxu0 0.0
    %2897 = vmatprep.subr.mxu0 0.0
    %2898 = vmatpush2.msra.mxu0 0.0
    %2899 = vmatprep.mubr.f32.mxu0 0.0
    %v2900 = vand.u32 %v2034, 4294901760
    %v2901 = vsub.f32 %v2034, %v2900
    %2902 = vmatmul.mubr.f32.gmra.mxu0 %v2901
    %v2903 = vpop.f32.mrf.mxu0
    %v2904 = vadd.f32 %v2630, %v2903
    %v2905 = vpop.f32.mrf.mxu0
    %2906 = vmatprep.mubr.f32.mxu0 0.0
    %v2907 = vand.u32 %v2037, 4294901760
    %v2908 = vsub.f32 %v2037, %v2907
    %2909 = vmatmul.mubr.f32.gmra.mxu0 %v2908
    %v2910 = vpop.f32.mrf.mxu0
    %v2911 = vadd.f32 %v2636, %v2910
    %v2912 = vpop.f32.mrf.mxu0
    %2913 = vmatprep.mubr.f32.mxu0 0.0
    %v2914 = vand.u32 %v2040, 4294901760
    %v2915 = vsub.f32 %v2040, %v2914
    %2916 = vmatmul.mubr.f32.gmra.mxu0 %v2915
    %v2917 = vpop.f32.mrf.mxu0
    %v2918 = vadd.f32 %v2642, %v2917
    %v2919 = vpop.f32.mrf.mxu0
    %2920 = vmatprep.mubr.f32.mxu0 0.0
    %v2921 = vand.u32 %v2043, 4294901760
    %v2922 = vsub.f32 %v2043, %v2921
    %2923 = vmatmul.mubr.f32.gmra.mxu0 %v2922
    %v2924 = vpop.f32.mrf.mxu0
    %v2925 = vadd.f32 %v2648, %v2924
    %v2926 = vpop.f32.mrf.mxu0
    %2927 = vmatprep.mubr.f32.mxu0 0.0
    %v2928 = vand.u32 %v2046, 4294901760
    %v2929 = vsub.f32 %v2046, %v2928
    %2930 = vmatmul.mubr.f32.gmra.mxu0 %v2929
    %v2931 = vpop.f32.mrf.mxu0
    %v2932 = vadd.f32 %v2654, %v2931
    %v2933 = vpop.f32.mrf.mxu0
    %2934 = vmatprep.mubr.f32.mxu0 0.0
    %v2935 = vand.u32 %v2049, 4294901760
    %v2936 = vsub.f32 %v2049, %v2935
    %2937 = vmatmul.mubr.f32.gmra.mxu0 %v2936
    %v2938 = vpop.f32.mrf.mxu0
    %v2939 = vadd.f32 %v2660, %v2938
    %v2940 = vpop.f32.mrf.mxu0
    %2941 = vmatprep.mubr.f32.mxu0 0.0
    %v2942 = vand.u32 %v2052, 4294901760
    %v2943 = vsub.f32 %v2052, %v2942
    %2944 = vmatmul.mubr.f32.gmra.mxu0 %v2943
    %v2945 = vpop.f32.mrf.mxu0
    %v2946 = vadd.f32 %v2666, %v2945
    %v2947 = vpop.f32.mrf.mxu0
    %2948 = vmatprep.mubr.f32.mxu0 0.0
    %v2949 = vand.u32 %v2055, 4294901760
    %v2950 = vsub.f32 %v2055, %v2949
    %2951 = vmatmul.mubr.f32.gmra.mxu0 %v2950
    %v2952 = vpop.f32.mrf.mxu0
    %v2953 = vadd.f32 %v2672, %v2952
    %v2954 = vpop.f32.mrf.mxu0
    %2955 = vmatprep.mubr.f32.mxu0 0.0
    %v2956 = vand.u32 %v2058, 4294901760
    %v2957 = vsub.f32 %v2058, %v2956
    %2958 = vmatmul.mubr.f32.gmra.mxu0 %v2957
    %v2959 = vpop.f32.mrf.mxu0
    %v2960 = vadd.f32 %v2678, %v2959
    %v2961 = vpop.f32.mrf.mxu0
    %2962 = vmatprep.mubr.f32.mxu0 0.0
    %v2963 = vand.u32 %v2061, 4294901760
    %v2964 = vsub.f32 %v2061, %v2963
    %2965 = vmatmul.mubr.f32.gmra.mxu0 %v2964
    %v2966 = vpop.f32.mrf.mxu0
    %v2967 = vadd.f32 %v2684, %v2966
    %v2968 = vpop.f32.mrf.mxu0
    %2969 = vmatprep.mubr.f32.mxu0 0.0
    %v2970 = vand.u32 %v2064, 4294901760
    %v2971 = vsub.f32 %v2064, %v2970
    %2972 = vmatmul.mubr.f32.gmra.mxu0 %v2971
    %v2973 = vpop.f32.mrf.mxu0
    %v2974 = vadd.f32 %v2690, %v2973
    %v2975 = vpop.f32.mrf.mxu0
    %2976 = vmatprep.mubr.f32.mxu0 0.0
    %v2977 = vand.u32 %v2067, 4294901760
    %v2978 = vsub.f32 %v2067, %v2977
    %2979 = vmatmul.mubr.f32.gmra.mxu0 %v2978
    %v2980 = vpop.f32.mrf.mxu0
    %v2981 = vadd.f32 %v2696, %v2980
    %v2982 = vpop.f32.mrf.mxu0
    %2983 = vmatprep.mubr.f32.mxu0 0.0
    %v2984 = vand.u32 %v2070, 4294901760
    %v2985 = vsub.f32 %v2070, %v2984
    %2986 = vmatmul.mubr.f32.gmra.mxu0 %v2985
    %v2987 = vpop.f32.mrf.mxu0
    %v2988 = vadd.f32 %v2702, %v2987
    %v2989 = vpop.f32.mrf.mxu0
    %2990 = vmatprep.mubr.f32.mxu0 0.0
    %v2991 = vand.u32 %v2073, 4294901760
    %v2992 = vsub.f32 %v2073, %v2991
    %2993 = vmatmul.mubr.f32.gmra.mxu0 %v2992
    %v2994 = vpop.f32.mrf.mxu0
    %v2995 = vadd.f32 %v2708, %v2994
    %v2996 = vpop.f32.mrf.mxu0
    %2997 = vmatprep.mubr.f32.mxu0 0.0
    %v2998 = vand.u32 %v2076, 4294901760
    %v2999 = vsub.f32 %v2076, %v2998
    %3000 = vmatmul.mubr.f32.gmra.mxu0 %v2999
    %v3001 = vpop.f32.mrf.mxu0
    %v3002 = vadd.f32 %v2714, %v3001
    %v3003 = vpop.f32.mrf.mxu0
    %3004 = vmatprep.mubr.f32.mxu0 0.0
    %v3005 = vand.u32 %v2079, 4294901760
    %v3006 = vsub.f32 %v2079, %v3005
    %3007 = vmatmul.mubr.f32.gmra.mxu0 %v3006
    %v3008 = vpop.f32.mrf.mxu0
    %v3009 = vadd.f32 %v2720, %v3008
    %v3010 = vpop.f32.mrf.mxu0
    %3011 = vmatprep.mubr.f32.mxu0 0.0
    %v3012 = vand.u32 %v2082, 4294901760
    %v3013 = vsub.f32 %v2082, %v3012
    %3014 = vmatmul.mubr.f32.gmra.mxu0 %v3013
    %v3015 = vpop.f32.mrf.mxu0
    %v3016 = vadd.f32 %v2726, %v3015
    %v3017 = vpop.f32.mrf.mxu0
    %3018 = vmatprep.mubr.f32.mxu0 0.0
    %v3019 = vand.u32 %v2085, 4294901760
    %v3020 = vsub.f32 %v2085, %v3019
    %3021 = vmatmul.mubr.f32.gmra.mxu0 %v3020
    %v3022 = vpop.f32.mrf.mxu0
    %v3023 = vadd.f32 %v2732, %v3022
    %v3024 = vpop.f32.mrf.mxu0
    %3025 = vmatprep.mubr.f32.mxu0 0.0
    %v3026 = vand.u32 %v2088, 4294901760
    %v3027 = vsub.f32 %v2088, %v3026
    %3028 = vmatmul.mubr.f32.gmra.mxu0 %v3027
    %v3029 = vpop.f32.mrf.mxu0
    %v3030 = vadd.f32 %v2738, %v3029
    %v3031 = vpop.f32.mrf.mxu0
    %3032 = vmatprep.mubr.f32.mxu0 0.0
    %v3033 = vand.u32 %v2091, 4294901760
    %v3034 = vsub.f32 %v2091, %v3033
    %3035 = vmatmul.mubr.f32.gmra.mxu0 %v3034
    %v3036 = vpop.f32.mrf.mxu0
    %v3037 = vadd.f32 %v2744, %v3036
    %v3038 = vpop.f32.mrf.mxu0
    %3039 = vmatprep.mubr.f32.mxu0 0.0
    %v3040 = vand.u32 %v2094, 4294901760
    %v3041 = vsub.f32 %v2094, %v3040
    %3042 = vmatmul.mubr.f32.gmra.mxu0 %v3041
    %v3043 = vpop.f32.mrf.mxu0
    %v3044 = vadd.f32 %v2750, %v3043
    %v3045 = vpop.f32.mrf.mxu0
    %3046 = vmatprep.mubr.f32.mxu0 0.0
    %v3047 = vand.u32 %v2097, 4294901760
    %v3048 = vsub.f32 %v2097, %v3047
    %3049 = vmatmul.mubr.f32.gmra.mxu0 %v3048
    %v3050 = vpop.f32.mrf.mxu0
    %v3051 = vadd.f32 %v2756, %v3050
    %v3052 = vpop.f32.mrf.mxu0
    %3053 = vmatprep.mubr.f32.mxu0 0.0
    %v3054 = vand.u32 %v2100, 4294901760
    %v3055 = vsub.f32 %v2100, %v3054
    %3056 = vmatmul.mubr.f32.gmra.mxu0 %v3055
    %v3057 = vpop.f32.mrf.mxu0
    %v3058 = vadd.f32 %v2762, %v3057
    %v3059 = vpop.f32.mrf.mxu0
    %3060 = vmatprep.mubr.f32.mxu0 0.0
    %v3061 = vand.u32 %v2103, 4294901760
    %v3062 = vsub.f32 %v2103, %v3061
    %3063 = vmatmul.mubr.f32.gmra.mxu0 %v3062
    %v3064 = vpop.f32.mrf.mxu0
    %v3065 = vadd.f32 %v2768, %v3064
    %v3066 = vpop.f32.mrf.mxu0
    %3067 = vmatprep.mubr.f32.mxu0 0.0
    %v3068 = vand.u32 %v2106, 4294901760
    %v3069 = vsub.f32 %v2106, %v3068
    %3070 = vmatmul.mubr.f32.gmra.mxu0 %v3069
    %v3071 = vpop.f32.mrf.mxu0
    %v3072 = vadd.f32 %v2774, %v3071
    %v3073 = vpop.f32.mrf.mxu0
    %3074 = vmatprep.mubr.f32.mxu0 0.0
    %v3075 = vand.u32 %v2109, 4294901760
    %v3076 = vsub.f32 %v2109, %v3075
    %3077 = vmatmul.mubr.f32.gmra.mxu0 %v3076
    %v3078 = vpop.f32.mrf.mxu0
    %v3079 = vadd.f32 %v2780, %v3078
    %v3080 = vpop.f32.mrf.mxu0
    %3081 = vmatprep.mubr.f32.mxu0 0.0
    %v3082 = vand.u32 %v2112, 4294901760
    %v3083 = vsub.f32 %v2112, %v3082
    %3084 = vmatmul.mubr.f32.gmra.mxu0 %v3083
    %v3085 = vpop.f32.mrf.mxu0
    %v3086 = vadd.f32 %v2786, %v3085
    %v3087 = vpop.f32.mrf.mxu0
    %3088 = vmatprep.mubr.f32.mxu0 0.0
    %v3089 = vand.u32 %v2115, 4294901760
    %v3090 = vsub.f32 %v2115, %v3089
    %3091 = vmatmul.mubr.f32.gmra.mxu0 %v3090
    %v3092 = vpop.f32.mrf.mxu0
    %v3093 = vadd.f32 %v2792, %v3092
    %v3094 = vpop.f32.mrf.mxu0
    %3095 = vmatprep.mubr.f32.mxu0 0.0
    %v3096 = vand.u32 %v2118, 4294901760
    %v3097 = vsub.f32 %v2118, %v3096
    %3098 = vmatmul.mubr.f32.gmra.mxu0 %v3097
    %v3099 = vpop.f32.mrf.mxu0
    %v3100 = vadd.f32 %v2798, %v3099
    %v3101 = vpop.f32.mrf.mxu0
    %3102 = vmatprep.mubr.f32.mxu0 0.0
    %v3103 = vand.u32 %v2121, 4294901760
    %v3104 = vsub.f32 %v2121, %v3103
    %3105 = vmatmul.mubr.f32.gmra.mxu0 %v3104
    %v3106 = vpop.f32.mrf.mxu0
    %v3107 = vadd.f32 %v2804, %v3106
    %v3108 = vpop.f32.mrf.mxu0
    %3109 = vmatprep.mubr.f32.mxu0 0.0
    %v3110 = vand.u32 %v2124, 4294901760
    %v3111 = vsub.f32 %v2124, %v3110
    %3112 = vmatmul.mubr.f32.gmra.mxu0 %v3111
    %v3113 = vpop.f32.mrf.mxu0
    %v3114 = vadd.f32 %v2810, %v3113
    %v3115 = vpop.f32.mrf.mxu0
    %3116 = vmatprep.mubr.f32.mxu0 0.0
    %v3117 = vand.u32 %v2127, 4294901760
    %v3118 = vsub.f32 %v2127, %v3117
    %3119 = vmatmul.mubr.f32.gmra.mxu0 %v3118
    %v3120 = vpop.f32.mrf.mxu0
    %v3121 = vadd.f32 %v2816, %v3120
    %v3122 = vpop.f32.mrf.mxu0
    %3123 = vdwg.mxu0
    %3124 = vmatprep.subr.mxu0 0.0
    %3125 = vmatpush1.msra.mxu0 0.0
    %3126 = vmatprep.subr.mxu0 0.0
    %3127 = vmatpush1.msra.mxu0 0.0
    %3128 = vmatprep.subr.mxu0 0.0
    %3129 = vmatpush1.msra.mxu0 0.0
    %3130 = vmatprep.subr.mxu0 0.0
    %3131 = vmatpush1.msra.mxu0 0.0
    %3132 = vmatprep.subr.mxu0 0.0
    %3133 = vmatpush1.msra.mxu0 0.0
    %3134 = vmatprep.subr.mxu0 0.0
    %3135 = vmatpush1.msra.mxu0 0.0
    %3136 = vmatprep.subr.mxu0 0.0
    %3137 = vmatpush1.msra.mxu0 0.0
    %3138 = vmatprep.subr.mxu0 0.0
    %3139 = vmatpush1.msra.mxu0 0.0
    %3140 = vmatprep.subr.mxu0 0.0
    %v3141 = vand.u32 %v2024, 4294901760
    %3142 = vmatpush1.msra.mxu0 %v3141
    %3143 = vmatprep.subr.mxu0 0.0
    %v3144 = vand.u32 %v2023, 4294901760
    %3145 = vmatpush1.msra.mxu0 %v3144
    %3146 = vmatprep.subr.mxu0 0.0
    %v3147 = vand.u32 %v2022, 4294901760
    %3148 = vmatpush1.msra.mxu0 %v3147
    %3149 = vmatprep.subr.mxu0 0.0
    %v3150 = vand.u32 %v2021, 4294901760
    %3151 = vmatpush1.msra.mxu0 %v3150
    %3152 = vmatprep.subr.mxu0 0.0
    %v3153 = vand.u32 %v2020, 4294901760
    %3154 = vmatpush1.msra.mxu0 %v3153
    %3155 = vmatprep.subr.mxu0 0.0
    %v3156 = vand.u32 %v2019, 4294901760
    %3157 = vmatpush1.msra.mxu0 %v3156
    %3158 = vmatprep.subr.mxu0 0.0
    %v3159 = vand.u32 %v2018, 4294901760
    %3160 = vmatpush1.msra.mxu0 %v3159
    %3161 = vmatprep.subr.mxu0 0.0
    %v3162 = vand.u32 %v2017, 4294901760
    %3163 = vmatpush1.msra.mxu0 %v3162
    %3164 = vmatprep.subr.mxu0 0.0
    %3165 = vmatpush2.msra.mxu0 0.0
    %3166 = vmatprep.subr.mxu0 0.0
    %3167 = vmatpush2.msra.mxu0 0.0
    %3168 = vmatprep.subr.mxu0 0.0
    %3169 = vmatpush2.msra.mxu0 0.0
    %3170 = vmatprep.subr.mxu0 0.0
    %3171 = vmatpush2.msra.mxu0 0.0
    %3172 = vmatprep.subr.mxu0 0.0
    %3173 = vmatpush2.msra.mxu0 0.0
    %3174 = vmatprep.subr.mxu0 0.0
    %3175 = vmatpush2.msra.mxu0 0.0
    %3176 = vmatprep.subr.mxu0 0.0
    %3177 = vmatpush2.msra.mxu0 0.0
    %3178 = vmatprep.subr.mxu0 0.0
    %3179 = vmatpush2.msra.mxu0 0.0
    %3180 = vmatprep.subr.mxu0 0.0
    %3181 = vmatpush2.msra.mxu0 0.0
    %3182 = vmatprep.subr.mxu0 0.0
    %3183 = vmatpush2.msra.mxu0 0.0
    %3184 = vmatprep.subr.mxu0 0.0
    %3185 = vmatpush2.msra.mxu0 0.0
    %3186 = vmatprep.subr.mxu0 0.0
    %3187 = vmatpush2.msra.mxu0 0.0
    %3188 = vmatprep.subr.mxu0 0.0
    %3189 = vmatpush2.msra.mxu0 0.0
    %3190 = vmatprep.subr.mxu0 0.0
    %3191 = vmatpush2.msra.mxu0 0.0
    %3192 = vmatprep.subr.mxu0 0.0
    %3193 = vmatpush2.msra.mxu0 0.0
    %3194 = vmatprep.subr.mxu0 0.0
    %3195 = vmatpush2.msra.mxu0 0.0
    %3196 = vmatprep.mubr.f32.mxu0 0.0
    %v3197 = vand.u32 %v2034, 4294901760
    %v3198 = vsub.f32 %v2034, %v3197
    %v3199 = vand.u32 %v3198, 4294901760
    %3200 = vmatmul.mubr.f32.gmra.mxu0 %v3199
    %v3201 = vpop.f32.mrf.mxu0
    %v3202 = vadd.f32 %v2904, %v3201
    %v3203 = vpop.f32.mrf.mxu0
    %3204 = vmatprep.mubr.f32.mxu0 0.0
    %v3205 = vand.u32 %v2037, 4294901760
    %v3206 = vsub.f32 %v2037, %v3205
    %v3207 = vand.u32 %v3206, 4294901760
    %3208 = vmatmul.mubr.f32.gmra.mxu0 %v3207
    %v3209 = vpop.f32.mrf.mxu0
    %v3210 = vadd.f32 %v2911, %v3209
    %v3211 = vpop.f32.mrf.mxu0
    %3212 = vmatprep.mubr.f32.mxu0 0.0
    %v3213 = vand.u32 %v2040, 4294901760
    %v3214 = vsub.f32 %v2040, %v3213
    %v3215 = vand.u32 %v3214, 4294901760
    %3216 = vmatmul.mubr.f32.gmra.mxu0 %v3215
    %v3217 = vpop.f32.mrf.mxu0
    %v3218 = vadd.f32 %v2918, %v3217
    %v3219 = vpop.f32.mrf.mxu0
    %3220 = vmatprep.mubr.f32.mxu0 0.0
    %v3221 = vand.u32 %v2043, 4294901760
    %v3222 = vsub.f32 %v2043, %v3221
    %v3223 = vand.u32 %v3222, 4294901760
    %3224 = vmatmul.mubr.f32.gmra.mxu0 %v3223
    %v3225 = vpop.f32.mrf.mxu0
    %v3226 = vadd.f32 %v2925, %v3225
    %v3227 = vpop.f32.mrf.mxu0
    %3228 = vmatprep.mubr.f32.mxu0 0.0
    %v3229 = vand.u32 %v2046, 4294901760
    %v3230 = vsub.f32 %v2046, %v3229
    %v3231 = vand.u32 %v3230, 4294901760
    %3232 = vmatmul.mubr.f32.gmra.mxu0 %v3231
    %v3233 = vpop.f32.mrf.mxu0
    %v3234 = vadd.f32 %v2932, %v3233
    %v3235 = vpop.f32.mrf.mxu0
    %3236 = vmatprep.mubr.f32.mxu0 0.0
    %v3237 = vand.u32 %v2049, 4294901760
    %v3238 = vsub.f32 %v2049, %v3237
    %v3239 = vand.u32 %v3238, 4294901760
    %3240 = vmatmul.mubr.f32.gmra.mxu0 %v3239
    %v3241 = vpop.f32.mrf.mxu0
    %v3242 = vadd.f32 %v2939, %v3241
    %v3243 = vpop.f32.mrf.mxu0
    %3244 = vmatprep.mubr.f32.mxu0 0.0
    %v3245 = vand.u32 %v2052, 4294901760
    %v3246 = vsub.f32 %v2052, %v3245
    %v3247 = vand.u32 %v3246, 4294901760
    %3248 = vmatmul.mubr.f32.gmra.mxu0 %v3247
    %v3249 = vpop.f32.mrf.mxu0
    %v3250 = vadd.f32 %v2946, %v3249
    %v3251 = vpop.f32.mrf.mxu0
    %3252 = vmatprep.mubr.f32.mxu0 0.0
    %v3253 = vand.u32 %v2055, 4294901760
    %v3254 = vsub.f32 %v2055, %v3253
    %v3255 = vand.u32 %v3254, 4294901760
    %3256 = vmatmul.mubr.f32.gmra.mxu0 %v3255
    %v3257 = vpop.f32.mrf.mxu0
    %v3258 = vadd.f32 %v2953, %v3257
    %v3259 = vpop.f32.mrf.mxu0
    %3260 = vmatprep.mubr.f32.mxu0 0.0
    %v3261 = vand.u32 %v2058, 4294901760
    %v3262 = vsub.f32 %v2058, %v3261
    %v3263 = vand.u32 %v3262, 4294901760
    %3264 = vmatmul.mubr.f32.gmra.mxu0 %v3263
    %v3265 = vpop.f32.mrf.mxu0
    %v3266 = vadd.f32 %v2960, %v3265
    %v3267 = vpop.f32.mrf.mxu0
    %3268 = vmatprep.mubr.f32.mxu0 0.0
    %v3269 = vand.u32 %v2061, 4294901760
    %v3270 = vsub.f32 %v2061, %v3269
    %v3271 = vand.u32 %v3270, 4294901760
    %3272 = vmatmul.mubr.f32.gmra.mxu0 %v3271
    %v3273 = vpop.f32.mrf.mxu0
    %v3274 = vadd.f32 %v2967, %v3273
    %v3275 = vpop.f32.mrf.mxu0
    %3276 = vmatprep.mubr.f32.mxu0 0.0
    %v3277 = vand.u32 %v2064, 4294901760
    %v3278 = vsub.f32 %v2064, %v3277
    %v3279 = vand.u32 %v3278, 4294901760
    %3280 = vmatmul.mubr.f32.gmra.mxu0 %v3279
    %v3281 = vpop.f32.mrf.mxu0
    %v3282 = vadd.f32 %v2974, %v3281
    %v3283 = vpop.f32.mrf.mxu0
    %3284 = vmatprep.mubr.f32.mxu0 0.0
    %v3285 = vand.u32 %v2067, 4294901760
    %v3286 = vsub.f32 %v2067, %v3285
    %v3287 = vand.u32 %v3286, 4294901760
    %3288 = vmatmul.mubr.f32.gmra.mxu0 %v3287
    %v3289 = vpop.f32.mrf.mxu0
    %v3290 = vadd.f32 %v2981, %v3289
    %v3291 = vpop.f32.mrf.mxu0
    %3292 = vmatprep.mubr.f32.mxu0 0.0
    %v3293 = vand.u32 %v2070, 4294901760
    %v3294 = vsub.f32 %v2070, %v3293
    %v3295 = vand.u32 %v3294, 4294901760
    %3296 = vmatmul.mubr.f32.gmra.mxu0 %v3295
    %v3297 = vpop.f32.mrf.mxu0
    %v3298 = vadd.f32 %v2988, %v3297
    %v3299 = vpop.f32.mrf.mxu0
    %3300 = vmatprep.mubr.f32.mxu0 0.0
    %v3301 = vand.u32 %v2073, 4294901760
    %v3302 = vsub.f32 %v2073, %v3301
    %v3303 = vand.u32 %v3302, 4294901760
    %3304 = vmatmul.mubr.f32.gmra.mxu0 %v3303
    %v3305 = vpop.f32.mrf.mxu0
    %v3306 = vadd.f32 %v2995, %v3305
    %v3307 = vpop.f32.mrf.mxu0
    %3308 = vmatprep.mubr.f32.mxu0 0.0
    %v3309 = vand.u32 %v2076, 4294901760
    %v3310 = vsub.f32 %v2076, %v3309
    %v3311 = vand.u32 %v3310, 4294901760
    %3312 = vmatmul.mubr.f32.gmra.mxu0 %v3311
    %v3313 = vpop.f32.mrf.mxu0
    %v3314 = vadd.f32 %v3002, %v3313
    %v3315 = vpop.f32.mrf.mxu0
    %3316 = vmatprep.mubr.f32.mxu0 0.0
    %v3317 = vand.u32 %v2079, 4294901760
    %v3318 = vsub.f32 %v2079, %v3317
    %v3319 = vand.u32 %v3318, 4294901760
    %3320 = vmatmul.mubr.f32.gmra.mxu0 %v3319
    %v3321 = vpop.f32.mrf.mxu0
    %v3322 = vadd.f32 %v3009, %v3321
    %v3323 = vpop.f32.mrf.mxu0
    %3324 = vmatprep.mubr.f32.mxu0 0.0
    %v3325 = vand.u32 %v2082, 4294901760
    %v3326 = vsub.f32 %v2082, %v3325
    %v3327 = vand.u32 %v3326, 4294901760
    %3328 = vmatmul.mubr.f32.gmra.mxu0 %v3327
    %v3329 = vpop.f32.mrf.mxu0
    %v3330 = vadd.f32 %v3016, %v3329
    %v3331 = vpop.f32.mrf.mxu0
    %3332 = vmatprep.mubr.f32.mxu0 0.0
    %v3333 = vand.u32 %v2085, 4294901760
    %v3334 = vsub.f32 %v2085, %v3333
    %v3335 = vand.u32 %v3334, 4294901760
    %3336 = vmatmul.mubr.f32.gmra.mxu0 %v3335
    %v3337 = vpop.f32.mrf.mxu0
    %v3338 = vadd.f32 %v3023, %v3337
    %v3339 = vpop.f32.mrf.mxu0
    %3340 = vmatprep.mubr.f32.mxu0 0.0
    %v3341 = vand.u32 %v2088, 4294901760
    %v3342 = vsub.f32 %v2088, %v3341
    %v3343 = vand.u32 %v3342, 4294901760
    %3344 = vmatmul.mubr.f32.gmra.mxu0 %v3343
    %v3345 = vpop.f32.mrf.mxu0
    %v3346 = vadd.f32 %v3030, %v3345
    %v3347 = vpop.f32.mrf.mxu0
    %3348 = vmatprep.mubr.f32.mxu0 0.0
    %v3349 = vand.u32 %v2091, 4294901760
    %v3350 = vsub.f32 %v2091, %v3349
    %v3351 = vand.u32 %v3350, 4294901760
    %3352 = vmatmul.mubr.f32.gmra.mxu0 %v3351
    %v3353 = vpop.f32.mrf.mxu0
    %v3354 = vadd.f32 %v3037, %v3353
    %v3355 = vpop.f32.mrf.mxu0
    %3356 = vmatprep.mubr.f32.mxu0 0.0
    %v3357 = vand.u32 %v2094, 4294901760
    %v3358 = vsub.f32 %v2094, %v3357
    %v3359 = vand.u32 %v3358, 4294901760
    %3360 = vmatmul.mubr.f32.gmra.mxu0 %v3359
    %v3361 = vpop.f32.mrf.mxu0
    %v3362 = vadd.f32 %v3044, %v3361
    %v3363 = vpop.f32.mrf.mxu0
    %3364 = vmatprep.mubr.f32.mxu0 0.0
    %v3365 = vand.u32 %v2097, 4294901760
    %v3366 = vsub.f32 %v2097, %v3365
    %v3367 = vand.u32 %v3366, 4294901760
    %3368 = vmatmul.mubr.f32.gmra.mxu0 %v3367
    %v3369 = vpop.f32.mrf.mxu0
    %v3370 = vadd.f32 %v3051, %v3369
    %v3371 = vpop.f32.mrf.mxu0
    %3372 = vmatprep.mubr.f32.mxu0 0.0
    %v3373 = vand.u32 %v2100, 4294901760
    %v3374 = vsub.f32 %v2100, %v3373
    %v3375 = vand.u32 %v3374, 4294901760
    %3376 = vmatmul.mubr.f32.gmra.mxu0 %v3375
    %v3377 = vpop.f32.mrf.mxu0
    %v3378 = vadd.f32 %v3058, %v3377
    %v3379 = vpop.f32.mrf.mxu0
    %3380 = vmatprep.mubr.f32.mxu0 0.0
    %v3381 = vand.u32 %v2103, 4294901760
    %v3382 = vsub.f32 %v2103, %v3381
    %v3383 = vand.u32 %v3382, 4294901760
    %3384 = vmatmul.mubr.f32.gmra.mxu0 %v3383
    %v3385 = vpop.f32.mrf.mxu0
    %v3386 = vadd.f32 %v3065, %v3385
    %v3387 = vpop.f32.mrf.mxu0
    %3388 = vmatprep.mubr.f32.mxu0 0.0
    %v3389 = vand.u32 %v2106, 4294901760
    %v3390 = vsub.f32 %v2106, %v3389
    %v3391 = vand.u32 %v3390, 4294901760
    %3392 = vmatmul.mubr.f32.gmra.mxu0 %v3391
    %v3393 = vpop.f32.mrf.mxu0
    %v3394 = vadd.f32 %v3072, %v3393
    %v3395 = vpop.f32.mrf.mxu0
    %3396 = vmatprep.mubr.f32.mxu0 0.0
    %v3397 = vand.u32 %v2109, 4294901760
    %v3398 = vsub.f32 %v2109, %v3397
    %v3399 = vand.u32 %v3398, 4294901760
    %3400 = vmatmul.mubr.f32.gmra.mxu0 %v3399
    %v3401 = vpop.f32.mrf.mxu0
    %v3402 = vadd.f32 %v3079, %v3401
    %v3403 = vpop.f32.mrf.mxu0
    %3404 = vmatprep.mubr.f32.mxu0 0.0
    %v3405 = vand.u32 %v2112, 4294901760
    %v3406 = vsub.f32 %v2112, %v3405
    %v3407 = vand.u32 %v3406, 4294901760
    %3408 = vmatmul.mubr.f32.gmra.mxu0 %v3407
    %v3409 = vpop.f32.mrf.mxu0
    %v3410 = vadd.f32 %v3086, %v3409
    %v3411 = vpop.f32.mrf.mxu0
    %3412 = vmatprep.mubr.f32.mxu0 0.0
    %v3413 = vand.u32 %v2115, 4294901760
    %v3414 = vsub.f32 %v2115, %v3413
    %v3415 = vand.u32 %v3414, 4294901760
    %3416 = vmatmul.mubr.f32.gmra.mxu0 %v3415
    %v3417 = vpop.f32.mrf.mxu0
    %v3418 = vadd.f32 %v3093, %v3417
    %v3419 = vpop.f32.mrf.mxu0
    %3420 = vmatprep.mubr.f32.mxu0 0.0
    %v3421 = vand.u32 %v2118, 4294901760
    %v3422 = vsub.f32 %v2118, %v3421
    %v3423 = vand.u32 %v3422, 4294901760
    %3424 = vmatmul.mubr.f32.gmra.mxu0 %v3423
    %v3425 = vpop.f32.mrf.mxu0
    %v3426 = vadd.f32 %v3100, %v3425
    %v3427 = vpop.f32.mrf.mxu0
    %3428 = vmatprep.mubr.f32.mxu0 0.0
    %v3429 = vand.u32 %v2121, 4294901760
    %v3430 = vsub.f32 %v2121, %v3429
    %v3431 = vand.u32 %v3430, 4294901760
    %3432 = vmatmul.mubr.f32.gmra.mxu0 %v3431
    %v3433 = vpop.f32.mrf.mxu0
    %v3434 = vadd.f32 %v3107, %v3433
    %v3435 = vpop.f32.mrf.mxu0
    %3436 = vmatprep.mubr.f32.mxu0 0.0
    %v3437 = vand.u32 %v2124, 4294901760
    %v3438 = vsub.f32 %v2124, %v3437
    %v3439 = vand.u32 %v3438, 4294901760
    %3440 = vmatmul.mubr.f32.gmra.mxu0 %v3439
    %v3441 = vpop.f32.mrf.mxu0
    %v3442 = vadd.f32 %v3114, %v3441
    %v3443 = vpop.f32.mrf.mxu0
    %3444 = vmatprep.mubr.f32.mxu0 0.0
    %v3445 = vand.u32 %v2127, 4294901760
    %v3446 = vsub.f32 %v2127, %v3445
    %v3447 = vand.u32 %v3446, 4294901760
    %3448 = vmatmul.mubr.f32.gmra.mxu0 %v3447
    %v3449 = vpop.f32.mrf.mxu0
    %v3450 = vadd.f32 %v3121, %v3449
    %v3451 = vpop.f32.mrf.mxu0
    %3452 = vdwg.mxu0
    %3453 = vmatprep.subr.mxu0 0.0
    %3454 = vmatpush1.msra.mxu0 0.0
    %3455 = vmatprep.subr.mxu0 0.0
    %3456 = vmatpush1.msra.mxu0 0.0
    %3457 = vmatprep.subr.mxu0 0.0
    %3458 = vmatpush1.msra.mxu0 0.0
    %3459 = vmatprep.subr.mxu0 0.0
    %3460 = vmatpush1.msra.mxu0 0.0
    %3461 = vmatprep.subr.mxu0 0.0
    %3462 = vmatpush1.msra.mxu0 0.0
    %3463 = vmatprep.subr.mxu0 0.0
    %3464 = vmatpush1.msra.mxu0 0.0
    %3465 = vmatprep.subr.mxu0 0.0
    %3466 = vmatpush1.msra.mxu0 0.0
    %3467 = vmatprep.subr.mxu0 0.0
    %3468 = vmatpush1.msra.mxu0 0.0
    %3469 = vmatprep.subr.mxu0 0.0
    %v3470 = vand.u32 %v2024, 4294901760
    %v3471 = vsub.f32 %v2024, %v3470
    %v3472 = vand.u32 %v3471, 4294901760
    %3473 = vmatpush1.msra.mxu0 %v3472
    %3474 = vmatprep.subr.mxu0 0.0
    %v3475 = vand.u32 %v2023, 4294901760
    %v3476 = vsub.f32 %v2023, %v3475
    %v3477 = vand.u32 %v3476, 4294901760
    %3478 = vmatpush1.msra.mxu0 %v3477
    %3479 = vmatprep.subr.mxu0 0.0
    %v3480 = vand.u32 %v2022, 4294901760
    %v3481 = vsub.f32 %v2022, %v3480
    %v3482 = vand.u32 %v3481, 4294901760
    %3483 = vmatpush1.msra.mxu0 %v3482
    %3484 = vmatprep.subr.mxu0 0.0
    %v3485 = vand.u32 %v2021, 4294901760
    %v3486 = vsub.f32 %v2021, %v3485
    %v3487 = vand.u32 %v3486, 4294901760
    %3488 = vmatpush1.msra.mxu0 %v3487
    %3489 = vmatprep.subr.mxu0 0.0
    %v3490 = vand.u32 %v2020, 4294901760
    %v3491 = vsub.f32 %v2020, %v3490
    %v3492 = vand.u32 %v3491, 4294901760
    %3493 = vmatpush1.msra.mxu0 %v3492
    %3494 = vmatprep.subr.mxu0 0.0
    %v3495 = vand.u32 %v2019, 4294901760
    %v3496 = vsub.f32 %v2019, %v3495
    %v3497 = vand.u32 %v3496, 4294901760
    %3498 = vmatpush1.msra.mxu0 %v3497
    %3499 = vmatprep.subr.mxu0 0.0
    %v3500 = vand.u32 %v2018, 4294901760
    %v3501 = vsub.f32 %v2018, %v3500
    %v3502 = vand.u32 %v3501, 4294901760
    %3503 = vmatpush1.msra.mxu0 %v3502
    %3504 = vmatprep.subr.mxu0 0.0
    %v3505 = vand.u32 %v2017, 4294901760
    %v3506 = vsub.f32 %v2017, %v3505
    %v3507 = vand.u32 %v3506, 4294901760
    %3508 = vmatpush1.msra.mxu0 %v3507
    %3509 = vmatprep.subr.mxu0 0.0
    %3510 = vmatpush2.msra.mxu0 0.0
    %3511 = vmatprep.subr.mxu0 0.0
    %3512 = vmatpush2.msra.mxu0 0.0
    %3513 = vmatprep.subr.mxu0 0.0
    %3514 = vmatpush2.msra.mxu0 0.0
    %3515 = vmatprep.subr.mxu0 0.0
    %3516 = vmatpush2.msra.mxu0 0.0
    %3517 = vmatprep.subr.mxu0 0.0
    %3518 = vmatpush2.msra.mxu0 0.0
    %3519 = vmatprep.subr.mxu0 0.0
    %3520 = vmatpush2.msra.mxu0 0.0
    %3521 = vmatprep.subr.mxu0 0.0
    %3522 = vmatpush2.msra.mxu0 0.0
    %3523 = vmatprep.subr.mxu0 0.0
    %3524 = vmatpush2.msra.mxu0 0.0
    %3525 = vmatprep.subr.mxu0 0.0
    %3526 = vmatpush2.msra.mxu0 0.0
    %3527 = vmatprep.subr.mxu0 0.0
    %3528 = vmatpush2.msra.mxu0 0.0
    %3529 = vmatprep.subr.mxu0 0.0
    %3530 = vmatpush2.msra.mxu0 0.0
    %3531 = vmatprep.subr.mxu0 0.0
    %3532 = vmatpush2.msra.mxu0 0.0
    %3533 = vmatprep.subr.mxu0 0.0
    %3534 = vmatpush2.msra.mxu0 0.0
    %3535 = vmatprep.subr.mxu0 0.0
    %3536 = vmatpush2.msra.mxu0 0.0
    %3537 = vmatprep.subr.mxu0 0.0
    %3538 = vmatpush2.msra.mxu0 0.0
    %3539 = vmatprep.subr.mxu0 0.0
    %3540 = vmatpush2.msra.mxu0 0.0
    %3541 = vmatprep.mubr.f32.mxu0 0.0
    %v3542 = vand.u32 %v2034, 4294901760
    %3543 = vmatmul.mubr.f32.gmra.mxu0 %v3542
    %v3544 = vpop.f32.mrf.mxu0
    %v3545 = vadd.f32 %v3202, %v3544
    %v3546 = vpop.f32.mrf.mxu0
    %3547 = vmatprep.mubr.f32.mxu0 0.0
    %v3548 = vand.u32 %v2037, 4294901760
    %3549 = vmatmul.mubr.f32.gmra.mxu0 %v3548
    %v3550 = vpop.f32.mrf.mxu0
    %v3551 = vadd.f32 %v3210, %v3550
    %v3552 = vpop.f32.mrf.mxu0
    %3553 = vmatprep.mubr.f32.mxu0 0.0
    %v3554 = vand.u32 %v2040, 4294901760
    %3555 = vmatmul.mubr.f32.gmra.mxu0 %v3554
    %v3556 = vpop.f32.mrf.mxu0
    %v3557 = vadd.f32 %v3218, %v3556
    %v3558 = vpop.f32.mrf.mxu0
    %3559 = vmatprep.mubr.f32.mxu0 0.0
    %v3560 = vand.u32 %v2043, 4294901760
    %3561 = vmatmul.mubr.f32.gmra.mxu0 %v3560
    %v3562 = vpop.f32.mrf.mxu0
    %v3563 = vadd.f32 %v3226, %v3562
    %v3564 = vpop.f32.mrf.mxu0
    %3565 = vmatprep.mubr.f32.mxu0 0.0
    %v3566 = vand.u32 %v2046, 4294901760
    %3567 = vmatmul.mubr.f32.gmra.mxu0 %v3566
    %v3568 = vpop.f32.mrf.mxu0
    %v3569 = vadd.f32 %v3234, %v3568
    %v3570 = vpop.f32.mrf.mxu0
    %3571 = vmatprep.mubr.f32.mxu0 0.0
    %v3572 = vand.u32 %v2049, 4294901760
    %3573 = vmatmul.mubr.f32.gmra.mxu0 %v3572
    %v3574 = vpop.f32.mrf.mxu0
    %v3575 = vadd.f32 %v3242, %v3574
    %v3576 = vpop.f32.mrf.mxu0
    %3577 = vmatprep.mubr.f32.mxu0 0.0
    %v3578 = vand.u32 %v2052, 4294901760
    %3579 = vmatmul.mubr.f32.gmra.mxu0 %v3578
    %v3580 = vpop.f32.mrf.mxu0
    %v3581 = vadd.f32 %v3250, %v3580
    %v3582 = vpop.f32.mrf.mxu0
    %3583 = vmatprep.mubr.f32.mxu0 0.0
    %v3584 = vand.u32 %v2055, 4294901760
    %3585 = vmatmul.mubr.f32.gmra.mxu0 %v3584
    %v3586 = vpop.f32.mrf.mxu0
    %v3587 = vadd.f32 %v3258, %v3586
    %v3588 = vpop.f32.mrf.mxu0
    %3589 = vmatprep.mubr.f32.mxu0 0.0
    %v3590 = vand.u32 %v2058, 4294901760
    %3591 = vmatmul.mubr.f32.gmra.mxu0 %v3590
    %v3592 = vpop.f32.mrf.mxu0
    %v3593 = vadd.f32 %v3266, %v3592
    %v3594 = vpop.f32.mrf.mxu0
    %3595 = vmatprep.mubr.f32.mxu0 0.0
    %v3596 = vand.u32 %v2061, 4294901760
    %3597 = vmatmul.mubr.f32.gmra.mxu0 %v3596
    %v3598 = vpop.f32.mrf.mxu0
    %v3599 = vadd.f32 %v3274, %v3598
    %v3600 = vpop.f32.mrf.mxu0
    %3601 = vmatprep.mubr.f32.mxu0 0.0
    %v3602 = vand.u32 %v2064, 4294901760
    %3603 = vmatmul.mubr.f32.gmra.mxu0 %v3602
    %v3604 = vpop.f32.mrf.mxu0
    %v3605 = vadd.f32 %v3282, %v3604
    %v3606 = vpop.f32.mrf.mxu0
    %3607 = vmatprep.mubr.f32.mxu0 0.0
    %v3608 = vand.u32 %v2067, 4294901760
    %3609 = vmatmul.mubr.f32.gmra.mxu0 %v3608
    %v3610 = vpop.f32.mrf.mxu0
    %v3611 = vadd.f32 %v3290, %v3610
    %v3612 = vpop.f32.mrf.mxu0
    %3613 = vmatprep.mubr.f32.mxu0 0.0
    %v3614 = vand.u32 %v2070, 4294901760
    %3615 = vmatmul.mubr.f32.gmra.mxu0 %v3614
    %v3616 = vpop.f32.mrf.mxu0
    %v3617 = vadd.f32 %v3298, %v3616
    %v3618 = vpop.f32.mrf.mxu0
    %3619 = vmatprep.mubr.f32.mxu0 0.0
    %v3620 = vand.u32 %v2073, 4294901760
    %3621 = vmatmul.mubr.f32.gmra.mxu0 %v3620
    %v3622 = vpop.f32.mrf.mxu0
    %v3623 = vadd.f32 %v3306, %v3622
    %v3624 = vpop.f32.mrf.mxu0
    %3625 = vmatprep.mubr.f32.mxu0 0.0
    %v3626 = vand.u32 %v2076, 4294901760
    %3627 = vmatmul.mubr.f32.gmra.mxu0 %v3626
    %v3628 = vpop.f32.mrf.mxu0
    %v3629 = vadd.f32 %v3314, %v3628
    %v3630 = vpop.f32.mrf.mxu0
    %3631 = vmatprep.mubr.f32.mxu0 0.0
    %v3632 = vand.u32 %v2079, 4294901760
    %3633 = vmatmul.mubr.f32.gmra.mxu0 %v3632
    %v3634 = vpop.f32.mrf.mxu0
    %v3635 = vadd.f32 %v3322, %v3634
    %v3636 = vpop.f32.mrf.mxu0
    %3637 = vmatprep.mubr.f32.mxu0 0.0
    %v3638 = vand.u32 %v2082, 4294901760
    %3639 = vmatmul.mubr.f32.gmra.mxu0 %v3638
    %v3640 = vpop.f32.mrf.mxu0
    %v3641 = vadd.f32 %v3330, %v3640
    %v3642 = vpop.f32.mrf.mxu0
    %3643 = vmatprep.mubr.f32.mxu0 0.0
    %v3644 = vand.u32 %v2085, 4294901760
    %3645 = vmatmul.mubr.f32.gmra.mxu0 %v3644
    %v3646 = vpop.f32.mrf.mxu0
    %v3647 = vadd.f32 %v3338, %v3646
    %v3648 = vpop.f32.mrf.mxu0
    %3649 = vmatprep.mubr.f32.mxu0 0.0
    %v3650 = vand.u32 %v2088, 4294901760
    %3651 = vmatmul.mubr.f32.gmra.mxu0 %v3650
    %v3652 = vpop.f32.mrf.mxu0
    %v3653 = vadd.f32 %v3346, %v3652
    %v3654 = vpop.f32.mrf.mxu0
    %3655 = vmatprep.mubr.f32.mxu0 0.0
    %v3656 = vand.u32 %v2091, 4294901760
    %3657 = vmatmul.mubr.f32.gmra.mxu0 %v3656
    %v3658 = vpop.f32.mrf.mxu0
    %v3659 = vadd.f32 %v3354, %v3658
    %v3660 = vpop.f32.mrf.mxu0
    %3661 = vmatprep.mubr.f32.mxu0 0.0
    %v3662 = vand.u32 %v2094, 4294901760
    %3663 = vmatmul.mubr.f32.gmra.mxu0 %v3662
    %v3664 = vpop.f32.mrf.mxu0
    %v3665 = vadd.f32 %v3362, %v3664
    %v3666 = vpop.f32.mrf.mxu0
    %3667 = vmatprep.mubr.f32.mxu0 0.0
    %v3668 = vand.u32 %v2097, 4294901760
    %3669 = vmatmul.mubr.f32.gmra.mxu0 %v3668
    %v3670 = vpop.f32.mrf.mxu0
    %v3671 = vadd.f32 %v3370, %v3670
    %v3672 = vpop.f32.mrf.mxu0
    %3673 = vmatprep.mubr.f32.mxu0 0.0
    %v3674 = vand.u32 %v2100, 4294901760
    %3675 = vmatmul.mubr.f32.gmra.mxu0 %v3674
    %v3676 = vpop.f32.mrf.mxu0
    %v3677 = vadd.f32 %v3378, %v3676
    %v3678 = vpop.f32.mrf.mxu0
    %3679 = vmatprep.mubr.f32.mxu0 0.0
    %v3680 = vand.u32 %v2103, 4294901760
    %3681 = vmatmul.mubr.f32.gmra.mxu0 %v3680
    %v3682 = vpop.f32.mrf.mxu0
    %v3683 = vadd.f32 %v3386, %v3682
    %v3684 = vpop.f32.mrf.mxu0
    %3685 = vmatprep.mubr.f32.mxu0 0.0
    %v3686 = vand.u32 %v2106, 4294901760
    %3687 = vmatmul.mubr.f32.gmra.mxu0 %v3686
    %v3688 = vpop.f32.mrf.mxu0
    %v3689 = vadd.f32 %v3394, %v3688
    %v3690 = vpop.f32.mrf.mxu0
    %3691 = vmatprep.mubr.f32.mxu0 0.0
    %v3692 = vand.u32 %v2109, 4294901760
    %3693 = vmatmul.mubr.f32.gmra.mxu0 %v3692
    %v3694 = vpop.f32.mrf.mxu0
    %v3695 = vadd.f32 %v3402, %v3694
    %v3696 = vpop.f32.mrf.mxu0
    %3697 = vmatprep.mubr.f32.mxu0 0.0
    %v3698 = vand.u32 %v2112, 4294901760
    %3699 = vmatmul.mubr.f32.gmra.mxu0 %v3698
    %v3700 = vpop.f32.mrf.mxu0
    %v3701 = vadd.f32 %v3410, %v3700
    %v3702 = vpop.f32.mrf.mxu0
    %3703 = vmatprep.mubr.f32.mxu0 0.0
    %v3704 = vand.u32 %v2115, 4294901760
    %3705 = vmatmul.mubr.f32.gmra.mxu0 %v3704
    %v3706 = vpop.f32.mrf.mxu0
    %v3707 = vadd.f32 %v3418, %v3706
    %v3708 = vpop.f32.mrf.mxu0
    %3709 = vmatprep.mubr.f32.mxu0 0.0
    %v3710 = vand.u32 %v2118, 4294901760
    %3711 = vmatmul.mubr.f32.gmra.mxu0 %v3710
    %v3712 = vpop.f32.mrf.mxu0
    %v3713 = vadd.f32 %v3426, %v3712
    %v3714 = vpop.f32.mrf.mxu0
    %3715 = vmatprep.mubr.f32.mxu0 0.0
    %v3716 = vand.u32 %v2121, 4294901760
    %3717 = vmatmul.mubr.f32.gmra.mxu0 %v3716
    %v3718 = vpop.f32.mrf.mxu0
    %v3719 = vadd.f32 %v3434, %v3718
    %v3720 = vpop.f32.mrf.mxu0
    %3721 = vmatprep.mubr.f32.mxu0 0.0
    %v3722 = vand.u32 %v2124, 4294901760
    %3723 = vmatmul.mubr.f32.gmra.mxu0 %v3722
    %v3724 = vpop.f32.mrf.mxu0
    %v3725 = vadd.f32 %v3442, %v3724
    %v3726 = vpop.f32.mrf.mxu0
    %3727 = vmatprep.mubr.f32.mxu0 0.0
    %v3728 = vand.u32 %v2127, 4294901760
    %3729 = vmatmul.mubr.f32.gmra.mxu0 %v3728
    %v3730 = vpop.f32.mrf.mxu0
    %v3731 = vadd.f32 %v3450, %v3730
    %v3732 = vpop.f32.mrf.mxu0
    %3733 = vdwg.mxu0
    %3734 = vmatprep.subr.mxu0 0.0
    %3735 = vmatpush1.msra.mxu0 0.0
    %3736 = vmatprep.subr.mxu0 0.0
    %3737 = vmatpush1.msra.mxu0 0.0
    %3738 = vmatprep.subr.mxu0 0.0
    %3739 = vmatpush1.msra.mxu0 0.0
    %3740 = vmatprep.subr.mxu0 0.0
    %3741 = vmatpush1.msra.mxu0 0.0
    %3742 = vmatprep.subr.mxu0 0.0
    %3743 = vmatpush1.msra.mxu0 0.0
    %3744 = vmatprep.subr.mxu0 0.0
    %3745 = vmatpush1.msra.mxu0 0.0
    %3746 = vmatprep.subr.mxu0 0.0
    %3747 = vmatpush1.msra.mxu0 0.0
    %3748 = vmatprep.subr.mxu0 0.0
    %3749 = vmatpush1.msra.mxu0 0.0
    %3750 = vmatprep.subr.mxu0 0.0
    %v3751 = vand.u32 %v2024, 4294901760
    %3752 = vmatpush1.msra.mxu0 %v3751
    %3753 = vmatprep.subr.mxu0 0.0
    %v3754 = vand.u32 %v2023, 4294901760
    %3755 = vmatpush1.msra.mxu0 %v3754
    %3756 = vmatprep.subr.mxu0 0.0
    %v3757 = vand.u32 %v2022, 4294901760
    %3758 = vmatpush1.msra.mxu0 %v3757
    %3759 = vmatprep.subr.mxu0 0.0
    %v3760 = vand.u32 %v2021, 4294901760
    %3761 = vmatpush1.msra.mxu0 %v3760
    %3762 = vmatprep.subr.mxu0 0.0
    %v3763 = vand.u32 %v2020, 4294901760
    %3764 = vmatpush1.msra.mxu0 %v3763
    %3765 = vmatprep.subr.mxu0 0.0
    %v3766 = vand.u32 %v2019, 4294901760
    %3767 = vmatpush1.msra.mxu0 %v3766
    %3768 = vmatprep.subr.mxu0 0.0
    %v3769 = vand.u32 %v2018, 4294901760
    %3770 = vmatpush1.msra.mxu0 %v3769
    %3771 = vmatprep.subr.mxu0 0.0
    %v3772 = vand.u32 %v2017, 4294901760
    %3773 = vmatpush1.msra.mxu0 %v3772
    %3774 = vmatprep.subr.mxu0 0.0
    %3775 = vmatpush2.msra.mxu0 0.0
    %3776 = vmatprep.subr.mxu0 0.0
    %3777 = vmatpush2.msra.mxu0 0.0
    %3778 = vmatprep.subr.mxu0 0.0
    %3779 = vmatpush2.msra.mxu0 0.0
    %3780 = vmatprep.subr.mxu0 0.0
    %3781 = vmatpush2.msra.mxu0 0.0
    %3782 = vmatprep.subr.mxu0 0.0
    %3783 = vmatpush2.msra.mxu0 0.0
    %3784 = vmatprep.subr.mxu0 0.0
    %3785 = vmatpush2.msra.mxu0 0.0
    %3786 = vmatprep.subr.mxu0 0.0
    %3787 = vmatpush2.msra.mxu0 0.0
    %3788 = vmatprep.subr.mxu0 0.0
    %3789 = vmatpush2.msra.mxu0 0.0
    %3790 = vmatprep.subr.mxu0 0.0
    %3791 = vmatpush2.msra.mxu0 0.0
    %3792 = vmatprep.subr.mxu0 0.0
    %3793 = vmatpush2.msra.mxu0 0.0
    %3794 = vmatprep.subr.mxu0 0.0
    %3795 = vmatpush2.msra.mxu0 0.0
    %3796 = vmatprep.subr.mxu0 0.0
    %3797 = vmatpush2.msra.mxu0 0.0
    %3798 = vmatprep.subr.mxu0 0.0
    %3799 = vmatpush2.msra.mxu0 0.0
    %3800 = vmatprep.subr.mxu0 0.0
    %3801 = vmatpush2.msra.mxu0 0.0
    %3802 = vmatprep.subr.mxu0 0.0
    %3803 = vmatpush2.msra.mxu0 0.0
    %3804 = vmatprep.subr.mxu0 0.0
    %3805 = vmatpush2.msra.mxu0 0.0
    %3806 = vmatprep.mubr.f32.mxu0 0.0
    %v3807 = vand.u32 %v2034, 4294901760
    %3808 = vmatmul.mubr.f32.gmra.mxu0 %v3807
    %v3809 = vpop.f32.mrf.mxu0
    %v3810 = vadd.f32 %v3545, %v3809
    %v3811 = vpop.f32.mrf.mxu0
    %3812 = vmatprep.mubr.f32.mxu0 0.0
    %v3813 = vand.u32 %v2037, 4294901760
    %3814 = vmatmul.mubr.f32.gmra.mxu0 %v3813
    %v3815 = vpop.f32.mrf.mxu0
    %v3816 = vadd.f32 %v3551, %v3815
    %v3817 = vpop.f32.mrf.mxu0
    %3818 = vmatprep.mubr.f32.mxu0 0.0
    %v3819 = vand.u32 %v2040, 4294901760
    %3820 = vmatmul.mubr.f32.gmra.mxu0 %v3819
    %v3821 = vpop.f32.mrf.mxu0
    %v3822 = vadd.f32 %v3557, %v3821
    %v3823 = vpop.f32.mrf.mxu0
    %3824 = vmatprep.mubr.f32.mxu0 0.0
    %v3825 = vand.u32 %v2043, 4294901760
    %3826 = vmatmul.mubr.f32.gmra.mxu0 %v3825
    %v3827 = vpop.f32.mrf.mxu0
    %v3828 = vadd.f32 %v3563, %v3827
    %v3829 = vpop.f32.mrf.mxu0
    %3830 = vmatprep.mubr.f32.mxu0 0.0
    %v3831 = vand.u32 %v2046, 4294901760
    %3832 = vmatmul.mubr.f32.gmra.mxu0 %v3831
    %v3833 = vpop.f32.mrf.mxu0
    %v3834 = vadd.f32 %v3569, %v3833
    %v3835 = vpop.f32.mrf.mxu0
    %3836 = vmatprep.mubr.f32.mxu0 0.0
    %v3837 = vand.u32 %v2049, 4294901760
    %3838 = vmatmul.mubr.f32.gmra.mxu0 %v3837
    %v3839 = vpop.f32.mrf.mxu0
    %v3840 = vadd.f32 %v3575, %v3839
    %v3841 = vpop.f32.mrf.mxu0
    %3842 = vmatprep.mubr.f32.mxu0 0.0
    %v3843 = vand.u32 %v2052, 4294901760
    %3844 = vmatmul.mubr.f32.gmra.mxu0 %v3843
    %v3845 = vpop.f32.mrf.mxu0
    %v3846 = vadd.f32 %v3581, %v3845
    %v3847 = vpop.f32.mrf.mxu0
    %3848 = vmatprep.mubr.f32.mxu0 0.0
    %v3849 = vand.u32 %v2055, 4294901760
    %3850 = vmatmul.mubr.f32.gmra.mxu0 %v3849
    %v3851 = vpop.f32.mrf.mxu0
    %v3852 = vadd.f32 %v3587, %v3851
    %v3853 = vpop.f32.mrf.mxu0
    %3854 = vmatprep.mubr.f32.mxu0 0.0
    %v3855 = vand.u32 %v2058, 4294901760
    %3856 = vmatmul.mubr.f32.gmra.mxu0 %v3855
    %v3857 = vpop.f32.mrf.mxu0
    %v3858 = vadd.f32 %v3593, %v3857
    %v3859 = vpop.f32.mrf.mxu0
    %3860 = vmatprep.mubr.f32.mxu0 0.0
    %v3861 = vand.u32 %v2061, 4294901760
    %3862 = vmatmul.mubr.f32.gmra.mxu0 %v3861
    %v3863 = vpop.f32.mrf.mxu0
    %v3864 = vadd.f32 %v3599, %v3863
    %v3865 = vpop.f32.mrf.mxu0
    %3866 = vmatprep.mubr.f32.mxu0 0.0
    %v3867 = vand.u32 %v2064, 4294901760
    %3868 = vmatmul.mubr.f32.gmra.mxu0 %v3867
    %v3869 = vpop.f32.mrf.mxu0
    %v3870 = vadd.f32 %v3605, %v3869
    %v3871 = vpop.f32.mrf.mxu0
    %3872 = vmatprep.mubr.f32.mxu0 0.0
    %v3873 = vand.u32 %v2067, 4294901760
    %3874 = vmatmul.mubr.f32.gmra.mxu0 %v3873
    %v3875 = vpop.f32.mrf.mxu0
    %v3876 = vadd.f32 %v3611, %v3875
    %v3877 = vpop.f32.mrf.mxu0
    %3878 = vmatprep.mubr.f32.mxu0 0.0
    %v3879 = vand.u32 %v2070, 4294901760
    %3880 = vmatmul.mubr.f32.gmra.mxu0 %v3879
    %v3881 = vpop.f32.mrf.mxu0
    %v3882 = vadd.f32 %v3617, %v3881
    %v3883 = vpop.f32.mrf.mxu0
    %3884 = vmatprep.mubr.f32.mxu0 0.0
    %v3885 = vand.u32 %v2073, 4294901760
    %3886 = vmatmul.mubr.f32.gmra.mxu0 %v3885
    %v3887 = vpop.f32.mrf.mxu0
    %v3888 = vadd.f32 %v3623, %v3887
    %v3889 = vpop.f32.mrf.mxu0
    %3890 = vmatprep.mubr.f32.mxu0 0.0
    %v3891 = vand.u32 %v2076, 4294901760
    %3892 = vmatmul.mubr.f32.gmra.mxu0 %v3891
    %v3893 = vpop.f32.mrf.mxu0
    %v3894 = vadd.f32 %v3629, %v3893
    %v3895 = vpop.f32.mrf.mxu0
    %3896 = vmatprep.mubr.f32.mxu0 0.0
    %v3897 = vand.u32 %v2079, 4294901760
    %3898 = vmatmul.mubr.f32.gmra.mxu0 %v3897
    %v3899 = vpop.f32.mrf.mxu0
    %v3900 = vadd.f32 %v3635, %v3899
    %v3901 = vpop.f32.mrf.mxu0
    %3902 = vmatprep.mubr.f32.mxu0 0.0
    %v3903 = vand.u32 %v2082, 4294901760
    %3904 = vmatmul.mubr.f32.gmra.mxu0 %v3903
    %v3905 = vpop.f32.mrf.mxu0
    %v3906 = vadd.f32 %v3641, %v3905
    %v3907 = vpop.f32.mrf.mxu0
    %3908 = vmatprep.mubr.f32.mxu0 0.0
    %v3909 = vand.u32 %v2085, 4294901760
    %3910 = vmatmul.mubr.f32.gmra.mxu0 %v3909
    %v3911 = vpop.f32.mrf.mxu0
    %v3912 = vadd.f32 %v3647, %v3911
    %v3913 = vpop.f32.mrf.mxu0
    %3914 = vmatprep.mubr.f32.mxu0 0.0
    %v3915 = vand.u32 %v2088, 4294901760
    %3916 = vmatmul.mubr.f32.gmra.mxu0 %v3915
    %v3917 = vpop.f32.mrf.mxu0
    %v3918 = vadd.f32 %v3653, %v3917
    %v3919 = vpop.f32.mrf.mxu0
    %3920 = vmatprep.mubr.f32.mxu0 0.0
    %v3921 = vand.u32 %v2091, 4294901760
    %3922 = vmatmul.mubr.f32.gmra.mxu0 %v3921
    %v3923 = vpop.f32.mrf.mxu0
    %v3924 = vadd.f32 %v3659, %v3923
    %v3925 = vpop.f32.mrf.mxu0
    %3926 = vmatprep.mubr.f32.mxu0 0.0
    %v3927 = vand.u32 %v2094, 4294901760
    %3928 = vmatmul.mubr.f32.gmra.mxu0 %v3927
    %v3929 = vpop.f32.mrf.mxu0
    %v3930 = vadd.f32 %v3665, %v3929
    %v3931 = vpop.f32.mrf.mxu0
    %3932 = vmatprep.mubr.f32.mxu0 0.0
    %v3933 = vand.u32 %v2097, 4294901760
    %3934 = vmatmul.mubr.f32.gmra.mxu0 %v3933
    %v3935 = vpop.f32.mrf.mxu0
    %v3936 = vadd.f32 %v3671, %v3935
    %v3937 = vpop.f32.mrf.mxu0
    %3938 = vmatprep.mubr.f32.mxu0 0.0
    %v3939 = vand.u32 %v2100, 4294901760
    %3940 = vmatmul.mubr.f32.gmra.mxu0 %v3939
    %v3941 = vpop.f32.mrf.mxu0
    %v3942 = vadd.f32 %v3677, %v3941
    %v3943 = vpop.f32.mrf.mxu0
    %3944 = vmatprep.mubr.f32.mxu0 0.0
    %v3945 = vand.u32 %v2103, 4294901760
    %3946 = vmatmul.mubr.f32.gmra.mxu0 %v3945
    %v3947 = vpop.f32.mrf.mxu0
    %v3948 = vadd.f32 %v3683, %v3947
    %v3949 = vpop.f32.mrf.mxu0
    %3950 = vmatprep.mubr.f32.mxu0 0.0
    %v3951 = vand.u32 %v2106, 4294901760
    %3952 = vmatmul.mubr.f32.gmra.mxu0 %v3951
    %v3953 = vpop.f32.mrf.mxu0
    %v3954 = vadd.f32 %v3689, %v3953
    %v3955 = vpop.f32.mrf.mxu0
    %3956 = vmatprep.mubr.f32.mxu0 0.0
    %v3957 = vand.u32 %v2109, 4294901760
    %3958 = vmatmul.mubr.f32.gmra.mxu0 %v3957
    %v3959 = vpop.f32.mrf.mxu0
    %v3960 = vadd.f32 %v3695, %v3959
    %v3961 = vpop.f32.mrf.mxu0
    %3962 = vmatprep.mubr.f32.mxu0 0.0
    %v3963 = vand.u32 %v2112, 4294901760
    %3964 = vmatmul.mubr.f32.gmra.mxu0 %v3963
    %v3965 = vpop.f32.mrf.mxu0
    %v3966 = vadd.f32 %v3701, %v3965
    %v3967 = vpop.f32.mrf.mxu0
    %3968 = vmatprep.mubr.f32.mxu0 0.0
    %v3969 = vand.u32 %v2115, 4294901760
    %3970 = vmatmul.mubr.f32.gmra.mxu0 %v3969
    %v3971 = vpop.f32.mrf.mxu0
    %v3972 = vadd.f32 %v3707, %v3971
    %v3973 = vpop.f32.mrf.mxu0
    %3974 = vmatprep.mubr.f32.mxu0 0.0
    %v3975 = vand.u32 %v2118, 4294901760
    %3976 = vmatmul.mubr.f32.gmra.mxu0 %v3975
    %v3977 = vpop.f32.mrf.mxu0
    %v3978 = vadd.f32 %v3713, %v3977
    %v3979 = vpop.f32.mrf.mxu0
    %3980 = vmatprep.mubr.f32.mxu0 0.0
    %v3981 = vand.u32 %v2121, 4294901760
    %3982 = vmatmul.mubr.f32.gmra.mxu0 %v3981
    %v3983 = vpop.f32.mrf.mxu0
    %v3984 = vadd.f32 %v3719, %v3983
    %v3985 = vpop.f32.mrf.mxu0
    %3986 = vmatprep.mubr.f32.mxu0 0.0
    %v3987 = vand.u32 %v2124, 4294901760
    %3988 = vmatmul.mubr.f32.gmra.mxu0 %v3987
    %v3989 = vpop.f32.mrf.mxu0
    %v3990 = vadd.f32 %v3725, %v3989
    %v3991 = vpop.f32.mrf.mxu0
    %3992 = vmatprep.mubr.f32.mxu0 0.0
    %v3993 = vand.u32 %v2127, 4294901760
    %3994 = vmatmul.mubr.f32.gmra.mxu0 %v3993
    %v3995 = vpop.f32.mrf.mxu0
    %v3996 = vadd.f32 %v3731, %v3995
    %v3997 = vpop.f32.mrf.mxu0
    %3998 = vdwg.mxu0
    %v3999 = vmax.f32 %v3810, 0.0
    %v4000 = vmax.f32 %v3816, 0.0
    %v4001 = vmax.f32 %v3822, 0.0
    %v4002 = vmax.f32 %v3828, 0.0
    %v4003 = vmax.f32 %v3834, 0.0
    %v4004 = vmax.f32 %v3840, 0.0
    %v4005 = vmax.f32 %v3846, 0.0
    %v4006 = vmax.f32 %v3852, 0.0
    %v4007 = vmax.f32 %v3858, 0.0
    %v4008 = vmax.f32 %v3864, 0.0
    %v4009 = vmax.f32 %v3870, 0.0
    %v4010 = vmax.f32 %v3876, 0.0
    %v4011 = vmax.f32 %v3882, 0.0
    %v4012 = vmax.f32 %v3888, 0.0
    %v4013 = vmax.f32 %v3894, 0.0
    %v4014 = vmax.f32 %v3900, 0.0
    %v4015 = vmax.f32 %v3906, 0.0
    %v4016 = vmax.f32 %v3912, 0.0
    %v4017 = vmax.f32 %v3918, 0.0
    %v4018 = vmax.f32 %v3924, 0.0
    %v4019 = vmax.f32 %v3930, 0.0
    %v4020 = vmax.f32 %v3936, 0.0
    %v4021 = vmax.f32 %v3942, 0.0
    %v4022 = vmax.f32 %v3948, 0.0
    %v4023 = vmax.f32 %v3954, 0.0
    %v4024 = vmax.f32 %v3960, 0.0
    %v4025 = vmax.f32 %v3966, 0.0
    %v4026 = vmax.f32 %v3972, 0.0
    %v4027 = vmax.f32 %v3978, 0.0
    %v4028 = vmax.f32 %v3984, 0.0
    %v4029 = vmax.f32 %v3990, 0.0
    %v4030 = vmax.f32 %v3996, 0.0
    %v4031 = vld [vmem:[%s5] sm:$0xff]
    %v4032 = vld [vmem:[%s5 + $0x8] sm:$0xff]
    %v4033 = vld [vmem:[%s5 + $0x10] sm:$0xff]
    %v4034 = vld [vmem:[%s5 + $0x18] sm:$0xff]
    %v4035 = vld [vmem:[%s6] sm:$0x1]
    %v4037 = vlaneseq
    %v4038 = vshrl.u32 %v4037, 7
    %v4039 = vsub.s32 0, %v4038
    %v4040 = vrot.slane %v4035, %v4039
    %v4043 = vsel %vm70, %v3999, 0
    %v4046 = vsel %vm70, %v4000, 0
    %v4049 = vsel %vm70, %v4001, 0
    %v4052 = vsel %vm70, %v4002, 0
    %v4055 = vsel %vm70, %v4003, 0
    %v4058 = vsel %vm70, %v4004, 0
    %v4061 = vsel %vm70, %v4005, 0
    %v4064 = vsel %vm70, %v4006, 0
    %v4067 = vsel %vm70, %v4007, 0
    %v4070 = vsel %vm70, %v4008, 0
    %v4073 = vsel %vm70, %v4009, 0
    %v4076 = vsel %vm70, %v4010, 0
    %v4079 = vsel %vm70, %v4011, 0
    %v4082 = vsel %vm70, %v4012, 0
    %v4085 = vsel %vm70, %v4013, 0
    %v4088 = vsel %vm70, %v4014, 0
    %v4091 = vsel %vm70, %v4015, 0
    %v4094 = vsel %vm70, %v4016, 0
    %v4097 = vsel %vm70, %v4017, 0
    %v4100 = vsel %vm70, %v4018, 0
    %v4103 = vsel %vm70, %v4019, 0
    %v4106 = vsel %vm70, %v4020, 0
    %v4109 = vsel %vm70, %v4021, 0
    %v4112 = vsel %vm70, %v4022, 0
    %v4115 = vsel %vm70, %v4023, 0
    %v4118 = vsel %vm70, %v4024, 0
    %v4121 = vsel %vm70, %v4025, 0
    %v4124 = vsel %vm70, %v4026, 0
    %v4127 = vsel %vm70, %v4027, 0
    %v4130 = vsel %vm70, %v4028, 0
    %v4133 = vsel %vm70, %v4029, 0
    %v4136 = vsel %vm70, %v4030, 0
    %4138 = vmatprep.subr.mxu0 0.0
    %4139 = vmatpush1.msra.mxu0 0.0
    %4140 = vmatprep.subr.mxu0 0.0
    %4141 = vmatpush1.msra.mxu0 0.0
    %4142 = vmatprep.subr.mxu0 0.0
    %4143 = vmatpush1.msra.mxu0 0.0
    %4144 = vmatprep.subr.mxu0 0.0
    %4145 = vmatpush1.msra.mxu0 0.0
    %4146 = vmatprep.subr.mxu0 0.0
    %4147 = vmatpush1.msra.mxu0 0.0
    %4148 = vmatprep.subr.mxu0 0.0
    %4149 = vmatpush1.msra.mxu0 0.0
    %4150 = vmatprep.subr.mxu0 0.0
    %4151 = vmatpush1.msra.mxu0 0.0
    %4152 = vmatprep.subr.mxu0 0.0
    %4153 = vmatpush1.msra.mxu0 0.0
    %4154 = vmatprep.subr.mxu0 0.0
    %4155 = vmatpush1.msra.mxu0 0.0
    %4156 = vmatprep.subr.mxu0 0.0
    %4157 = vmatpush1.msra.mxu0 0.0
    %4158 = vmatprep.subr.mxu0 0.0
    %4159 = vmatpush1.msra.mxu0 0.0
    %4160 = vmatprep.subr.mxu0 0.0
    %4161 = vmatpush1.msra.mxu0 0.0
    %4162 = vmatprep.subr.mxu0 0.0
    %v4163 = vand.u32 %v4034, 4294901760
    %4164 = vmatpush1.msra.mxu0 %v4163
    %4165 = vmatprep.subr.mxu0 0.0
    %v4166 = vand.u32 %v4033, 4294901760
    %4167 = vmatpush1.msra.mxu0 %v4166
    %4168 = vmatprep.subr.mxu0 0.0
    %v4169 = vand.u32 %v4032, 4294901760
    %4170 = vmatpush1.msra.mxu0 %v4169
    %4171 = vmatprep.subr.mxu0 0.0
    %v4172 = vand.u32 %v4031, 4294901760
    %4173 = vmatpush1.msra.mxu0 %v4172
    %4174 = vmatprep.subr.mxu0 0.0
    %4175 = vmatpush2.msra.mxu0 0.0
    %4176 = vmatprep.subr.mxu0 0.0
    %4177 = vmatpush2.msra.mxu0 0.0
    %4178 = vmatprep.subr.mxu0 0.0
    %4179 = vmatpush2.msra.mxu0 0.0
    %4180 = vmatprep.subr.mxu0 0.0
    %4181 = vmatpush2.msra.mxu0 0.0
    %4182 = vmatprep.subr.mxu0 0.0
    %4183 = vmatpush2.msra.mxu0 0.0
    %4184 = vmatprep.subr.mxu0 0.0
    %4185 = vmatpush2.msra.mxu0 0.0
    %4186 = vmatprep.subr.mxu0 0.0
    %4187 = vmatpush2.msra.mxu0 0.0
    %4188 = vmatprep.subr.mxu0 0.0
    %4189 = vmatpush2.msra.mxu0 0.0
    %4190 = vmatprep.subr.mxu0 0.0
    %4191 = vmatpush2.msra.mxu0 0.0
    %4192 = vmatprep.subr.mxu0 0.0
    %4193 = vmatpush2.msra.mxu0 0.0
    %4194 = vmatprep.subr.mxu0 0.0
    %4195 = vmatpush2.msra.mxu0 0.0
    %4196 = vmatprep.subr.mxu0 0.0
    %4197 = vmatpush2.msra.mxu0 0.0
    %4198 = vmatprep.subr.mxu0 0.0
    %4199 = vmatpush2.msra.mxu0 0.0
    %4200 = vmatprep.subr.mxu0 0.0
    %4201 = vmatpush2.msra.mxu0 0.0
    %4202 = vmatprep.subr.mxu0 0.0
    %4203 = vmatpush2.msra.mxu0 0.0
    %4204 = vmatprep.subr.mxu0 0.0
    %4205 = vmatpush2.msra.mxu0 0.0
    %4206 = vmatprep.mubr.f32.mxu0 0.0
    %v4207 = vand.u32 %v4043, 4294901760
    %v4208 = vsub.f32 %v4043, %v4207
    %v4209 = vand.u32 %v4208, 4294901760
    %v4210 = vsub.f32 %v4208, %v4209
    %v4211 = vand.u32 %v4210, 4294901760
    %4212 = vmatmul.mubr.f32.gmra.mxu0 %v4211
    %v4213 = vpop.f32.mrf.mxu0
    %v4214 = vadd.f32 %v4040, %v4213
    %v4215 = vpop.f32.mrf.mxu0
    %4216 = vmatprep.mubr.f32.mxu0 0.0
    %v4217 = vand.u32 %v4046, 4294901760
    %v4218 = vsub.f32 %v4046, %v4217
    %v4219 = vand.u32 %v4218, 4294901760
    %v4220 = vsub.f32 %v4218, %v4219
    %v4221 = vand.u32 %v4220, 4294901760
    %4222 = vmatmul.mubr.f32.gmra.mxu0 %v4221
    %v4223 = vpop.f32.mrf.mxu0
    %v4224 = vadd.f32 %v4040, %v4223
    %v4225 = vpop.f32.mrf.mxu0
    %4226 = vmatprep.mubr.f32.mxu0 0.0
    %v4227 = vand.u32 %v4049, 4294901760
    %v4228 = vsub.f32 %v4049, %v4227
    %v4229 = vand.u32 %v4228, 4294901760
    %v4230 = vsub.f32 %v4228, %v4229
    %v4231 = vand.u32 %v4230, 4294901760
    %4232 = vmatmul.mubr.f32.gmra.mxu0 %v4231
    %v4233 = vpop.f32.mrf.mxu0
    %v4234 = vadd.f32 %v4040, %v4233
    %v4235 = vpop.f32.mrf.mxu0
    %4236 = vmatprep.mubr.f32.mxu0 0.0
    %v4237 = vand.u32 %v4052, 4294901760
    %v4238 = vsub.f32 %v4052, %v4237
    %v4239 = vand.u32 %v4238, 4294901760
    %v4240 = vsub.f32 %v4238, %v4239
    %v4241 = vand.u32 %v4240, 4294901760
    %4242 = vmatmul.mubr.f32.gmra.mxu0 %v4241
    %v4243 = vpop.f32.mrf.mxu0
    %v4244 = vadd.f32 %v4040, %v4243
    %v4245 = vpop.f32.mrf.mxu0
    %4246 = vmatprep.mubr.f32.mxu0 0.0
    %v4247 = vand.u32 %v4055, 4294901760
    %v4248 = vsub.f32 %v4055, %v4247
    %v4249 = vand.u32 %v4248, 4294901760
    %v4250 = vsub.f32 %v4248, %v4249
    %v4251 = vand.u32 %v4250, 4294901760
    %4252 = vmatmul.mubr.f32.gmra.mxu0 %v4251
    %v4253 = vpop.f32.mrf.mxu0
    %v4254 = vadd.f32 %v4040, %v4253
    %v4255 = vpop.f32.mrf.mxu0
    %4256 = vmatprep.mubr.f32.mxu0 0.0
    %v4257 = vand.u32 %v4058, 4294901760
    %v4258 = vsub.f32 %v4058, %v4257
    %v4259 = vand.u32 %v4258, 4294901760
    %v4260 = vsub.f32 %v4258, %v4259
    %v4261 = vand.u32 %v4260, 4294901760
    %4262 = vmatmul.mubr.f32.gmra.mxu0 %v4261
    %v4263 = vpop.f32.mrf.mxu0
    %v4264 = vadd.f32 %v4040, %v4263
    %v4265 = vpop.f32.mrf.mxu0
    %4266 = vmatprep.mubr.f32.mxu0 0.0
    %v4267 = vand.u32 %v4061, 4294901760
    %v4268 = vsub.f32 %v4061, %v4267
    %v4269 = vand.u32 %v4268, 4294901760
    %v4270 = vsub.f32 %v4268, %v4269
    %v4271 = vand.u32 %v4270, 4294901760
    %4272 = vmatmul.mubr.f32.gmra.mxu0 %v4271
    %v4273 = vpop.f32.mrf.mxu0
    %v4274 = vadd.f32 %v4040, %v4273
    %v4275 = vpop.f32.mrf.mxu0
    %4276 = vmatprep.mubr.f32.mxu0 0.0
    %v4277 = vand.u32 %v4064, 4294901760
    %v4278 = vsub.f32 %v4064, %v4277
    %v4279 = vand.u32 %v4278, 4294901760
    %v4280 = vsub.f32 %v4278, %v4279
    %v4281 = vand.u32 %v4280, 4294901760
    %4282 = vmatmul.mubr.f32.gmra.mxu0 %v4281
    %v4283 = vpop.f32.mrf.mxu0
    %v4284 = vadd.f32 %v4040, %v4283
    %v4285 = vpop.f32.mrf.mxu0
    %4286 = vmatprep.mubr.f32.mxu0 0.0
    %v4287 = vand.u32 %v4067, 4294901760
    %v4288 = vsub.f32 %v4067, %v4287
    %v4289 = vand.u32 %v4288, 4294901760
    %v4290 = vsub.f32 %v4288, %v4289
    %v4291 = vand.u32 %v4290, 4294901760
    %4292 = vmatmul.mubr.f32.gmra.mxu0 %v4291
    %v4293 = vpop.f32.mrf.mxu0
    %v4294 = vadd.f32 %v4040, %v4293
    %v4295 = vpop.f32.mrf.mxu0
    %4296 = vmatprep.mubr.f32.mxu0 0.0
    %v4297 = vand.u32 %v4070, 4294901760
    %v4298 = vsub.f32 %v4070, %v4297
    %v4299 = vand.u32 %v4298, 4294901760
    %v4300 = vsub.f32 %v4298, %v4299
    %v4301 = vand.u32 %v4300, 4294901760
    %4302 = vmatmul.mubr.f32.gmra.mxu0 %v4301
    %v4303 = vpop.f32.mrf.mxu0
    %v4304 = vadd.f32 %v4040, %v4303
    %v4305 = vpop.f32.mrf.mxu0
    %4306 = vmatprep.mubr.f32.mxu0 0.0
    %v4307 = vand.u32 %v4073, 4294901760
    %v4308 = vsub.f32 %v4073, %v4307
    %v4309 = vand.u32 %v4308, 4294901760
    %v4310 = vsub.f32 %v4308, %v4309
    %v4311 = vand.u32 %v4310, 4294901760
    %4312 = vmatmul.mubr.f32.gmra.mxu0 %v4311
    %v4313 = vpop.f32.mrf.mxu0
    %v4314 = vadd.f32 %v4040, %v4313
    %v4315 = vpop.f32.mrf.mxu0
    %4316 = vmatprep.mubr.f32.mxu0 0.0
    %v4317 = vand.u32 %v4076, 4294901760
    %v4318 = vsub.f32 %v4076, %v4317
    %v4319 = vand.u32 %v4318, 4294901760
    %v4320 = vsub.f32 %v4318, %v4319
    %v4321 = vand.u32 %v4320, 4294901760
    %4322 = vmatmul.mubr.f32.gmra.mxu0 %v4321
    %v4323 = vpop.f32.mrf.mxu0
    %v4324 = vadd.f32 %v4040, %v4323
    %v4325 = vpop.f32.mrf.mxu0
    %4326 = vmatprep.mubr.f32.mxu0 0.0
    %v4327 = vand.u32 %v4079, 4294901760
    %v4328 = vsub.f32 %v4079, %v4327
    %v4329 = vand.u32 %v4328, 4294901760
    %v4330 = vsub.f32 %v4328, %v4329
    %v4331 = vand.u32 %v4330, 4294901760
    %4332 = vmatmul.mubr.f32.gmra.mxu0 %v4331
    %v4333 = vpop.f32.mrf.mxu0
    %v4334 = vadd.f32 %v4040, %v4333
    %v4335 = vpop.f32.mrf.mxu0
    %4336 = vmatprep.mubr.f32.mxu0 0.0
    %v4337 = vand.u32 %v4082, 4294901760
    %v4338 = vsub.f32 %v4082, %v4337
    %v4339 = vand.u32 %v4338, 4294901760
    %v4340 = vsub.f32 %v4338, %v4339
    %v4341 = vand.u32 %v4340, 4294901760
    %4342 = vmatmul.mubr.f32.gmra.mxu0 %v4341
    %v4343 = vpop.f32.mrf.mxu0
    %v4344 = vadd.f32 %v4040, %v4343
    %v4345 = vpop.f32.mrf.mxu0
    %4346 = vmatprep.mubr.f32.mxu0 0.0
    %v4347 = vand.u32 %v4085, 4294901760
    %v4348 = vsub.f32 %v4085, %v4347
    %v4349 = vand.u32 %v4348, 4294901760
    %v4350 = vsub.f32 %v4348, %v4349
    %v4351 = vand.u32 %v4350, 4294901760
    %4352 = vmatmul.mubr.f32.gmra.mxu0 %v4351
    %v4353 = vpop.f32.mrf.mxu0
    %v4354 = vadd.f32 %v4040, %v4353
    %v4355 = vpop.f32.mrf.mxu0
    %4356 = vmatprep.mubr.f32.mxu0 0.0
    %v4357 = vand.u32 %v4088, 4294901760
    %v4358 = vsub.f32 %v4088, %v4357
    %v4359 = vand.u32 %v4358, 4294901760
    %v4360 = vsub.f32 %v4358, %v4359
    %v4361 = vand.u32 %v4360, 4294901760
    %4362 = vmatmul.mubr.f32.gmra.mxu0 %v4361
    %v4363 = vpop.f32.mrf.mxu0
    %v4364 = vadd.f32 %v4040, %v4363
    %v4365 = vpop.f32.mrf.mxu0
    %4366 = vmatprep.mubr.f32.mxu0 0.0
    %v4367 = vand.u32 %v4091, 4294901760
    %v4368 = vsub.f32 %v4091, %v4367
    %v4369 = vand.u32 %v4368, 4294901760
    %v4370 = vsub.f32 %v4368, %v4369
    %v4371 = vand.u32 %v4370, 4294901760
    %4372 = vmatmul.mubr.f32.gmra.mxu0 %v4371
    %v4373 = vpop.f32.mrf.mxu0
    %v4374 = vadd.f32 %v4040, %v4373
    %v4375 = vpop.f32.mrf.mxu0
    %4376 = vmatprep.mubr.f32.mxu0 0.0
    %v4377 = vand.u32 %v4094, 4294901760
    %v4378 = vsub.f32 %v4094, %v4377
    %v4379 = vand.u32 %v4378, 4294901760
    %v4380 = vsub.f32 %v4378, %v4379
    %v4381 = vand.u32 %v4380, 4294901760
    %4382 = vmatmul.mubr.f32.gmra.mxu0 %v4381
    %v4383 = vpop.f32.mrf.mxu0
    %v4384 = vadd.f32 %v4040, %v4383
    %v4385 = vpop.f32.mrf.mxu0
    %4386 = vmatprep.mubr.f32.mxu0 0.0
    %v4387 = vand.u32 %v4097, 4294901760
    %v4388 = vsub.f32 %v4097, %v4387
    %v4389 = vand.u32 %v4388, 4294901760
    %v4390 = vsub.f32 %v4388, %v4389
    %v4391 = vand.u32 %v4390, 4294901760
    %4392 = vmatmul.mubr.f32.gmra.mxu0 %v4391
    %v4393 = vpop.f32.mrf.mxu0
    %v4394 = vadd.f32 %v4040, %v4393
    %v4395 = vpop.f32.mrf.mxu0
    %4396 = vmatprep.mubr.f32.mxu0 0.0
    %v4397 = vand.u32 %v4100, 4294901760
    %v4398 = vsub.f32 %v4100, %v4397
    %v4399 = vand.u32 %v4398, 4294901760
    %v4400 = vsub.f32 %v4398, %v4399
    %v4401 = vand.u32 %v4400, 4294901760
    %4402 = vmatmul.mubr.f32.gmra.mxu0 %v4401
    %v4403 = vpop.f32.mrf.mxu0
    %v4404 = vadd.f32 %v4040, %v4403
    %v4405 = vpop.f32.mrf.mxu0
    %4406 = vmatprep.mubr.f32.mxu0 0.0
    %v4407 = vand.u32 %v4103, 4294901760
    %v4408 = vsub.f32 %v4103, %v4407
    %v4409 = vand.u32 %v4408, 4294901760
    %v4410 = vsub.f32 %v4408, %v4409
    %v4411 = vand.u32 %v4410, 4294901760
    %4412 = vmatmul.mubr.f32.gmra.mxu0 %v4411
    %v4413 = vpop.f32.mrf.mxu0
    %v4414 = vadd.f32 %v4040, %v4413
    %v4415 = vpop.f32.mrf.mxu0
    %4416 = vmatprep.mubr.f32.mxu0 0.0
    %v4417 = vand.u32 %v4106, 4294901760
    %v4418 = vsub.f32 %v4106, %v4417
    %v4419 = vand.u32 %v4418, 4294901760
    %v4420 = vsub.f32 %v4418, %v4419
    %v4421 = vand.u32 %v4420, 4294901760
    %4422 = vmatmul.mubr.f32.gmra.mxu0 %v4421
    %v4423 = vpop.f32.mrf.mxu0
    %v4424 = vadd.f32 %v4040, %v4423
    %v4425 = vpop.f32.mrf.mxu0
    %4426 = vmatprep.mubr.f32.mxu0 0.0
    %v4427 = vand.u32 %v4109, 4294901760
    %v4428 = vsub.f32 %v4109, %v4427
    %v4429 = vand.u32 %v4428, 4294901760
    %v4430 = vsub.f32 %v4428, %v4429
    %v4431 = vand.u32 %v4430, 4294901760
    %4432 = vmatmul.mubr.f32.gmra.mxu0 %v4431
    %v4433 = vpop.f32.mrf.mxu0
    %v4434 = vadd.f32 %v4040, %v4433
    %v4435 = vpop.f32.mrf.mxu0
    %4436 = vmatprep.mubr.f32.mxu0 0.0
    %v4437 = vand.u32 %v4112, 4294901760
    %v4438 = vsub.f32 %v4112, %v4437
    %v4439 = vand.u32 %v4438, 4294901760
    %v4440 = vsub.f32 %v4438, %v4439
    %v4441 = vand.u32 %v4440, 4294901760
    %4442 = vmatmul.mubr.f32.gmra.mxu0 %v4441
    %v4443 = vpop.f32.mrf.mxu0
    %v4444 = vadd.f32 %v4040, %v4443
    %v4445 = vpop.f32.mrf.mxu0
    %4446 = vmatprep.mubr.f32.mxu0 0.0
    %v4447 = vand.u32 %v4115, 4294901760
    %v4448 = vsub.f32 %v4115, %v4447
    %v4449 = vand.u32 %v4448, 4294901760
    %v4450 = vsub.f32 %v4448, %v4449
    %v4451 = vand.u32 %v4450, 4294901760
    %4452 = vmatmul.mubr.f32.gmra.mxu0 %v4451
    %v4453 = vpop.f32.mrf.mxu0
    %v4454 = vadd.f32 %v4040, %v4453
    %v4455 = vpop.f32.mrf.mxu0
    %4456 = vmatprep.mubr.f32.mxu0 0.0
    %v4457 = vand.u32 %v4118, 4294901760
    %v4458 = vsub.f32 %v4118, %v4457
    %v4459 = vand.u32 %v4458, 4294901760
    %v4460 = vsub.f32 %v4458, %v4459
    %v4461 = vand.u32 %v4460, 4294901760
    %4462 = vmatmul.mubr.f32.gmra.mxu0 %v4461
    %v4463 = vpop.f32.mrf.mxu0
    %v4464 = vadd.f32 %v4040, %v4463
    %v4465 = vpop.f32.mrf.mxu0
    %4466 = vmatprep.mubr.f32.mxu0 0.0
    %v4467 = vand.u32 %v4121, 4294901760
    %v4468 = vsub.f32 %v4121, %v4467
    %v4469 = vand.u32 %v4468, 4294901760
    %v4470 = vsub.f32 %v4468, %v4469
    %v4471 = vand.u32 %v4470, 4294901760
    %4472 = vmatmul.mubr.f32.gmra.mxu0 %v4471
    %v4473 = vpop.f32.mrf.mxu0
    %v4474 = vadd.f32 %v4040, %v4473
    %v4475 = vpop.f32.mrf.mxu0
    %4476 = vmatprep.mubr.f32.mxu0 0.0
    %v4477 = vand.u32 %v4124, 4294901760
    %v4478 = vsub.f32 %v4124, %v4477
    %v4479 = vand.u32 %v4478, 4294901760
    %v4480 = vsub.f32 %v4478, %v4479
    %v4481 = vand.u32 %v4480, 4294901760
    %4482 = vmatmul.mubr.f32.gmra.mxu0 %v4481
    %v4483 = vpop.f32.mrf.mxu0
    %v4484 = vadd.f32 %v4040, %v4483
    %v4485 = vpop.f32.mrf.mxu0
    %4486 = vmatprep.mubr.f32.mxu0 0.0
    %v4487 = vand.u32 %v4127, 4294901760
    %v4488 = vsub.f32 %v4127, %v4487
    %v4489 = vand.u32 %v4488, 4294901760
    %v4490 = vsub.f32 %v4488, %v4489
    %v4491 = vand.u32 %v4490, 4294901760
    %4492 = vmatmul.mubr.f32.gmra.mxu0 %v4491
    %v4493 = vpop.f32.mrf.mxu0
    %v4494 = vadd.f32 %v4040, %v4493
    %v4495 = vpop.f32.mrf.mxu0
    %4496 = vmatprep.mubr.f32.mxu0 0.0
    %v4497 = vand.u32 %v4130, 4294901760
    %v4498 = vsub.f32 %v4130, %v4497
    %v4499 = vand.u32 %v4498, 4294901760
    %v4500 = vsub.f32 %v4498, %v4499
    %v4501 = vand.u32 %v4500, 4294901760
    %4502 = vmatmul.mubr.f32.gmra.mxu0 %v4501
    %v4503 = vpop.f32.mrf.mxu0
    %v4504 = vadd.f32 %v4040, %v4503
    %v4505 = vpop.f32.mrf.mxu0
    %4506 = vmatprep.mubr.f32.mxu0 0.0
    %v4507 = vand.u32 %v4133, 4294901760
    %v4508 = vsub.f32 %v4133, %v4507
    %v4509 = vand.u32 %v4508, 4294901760
    %v4510 = vsub.f32 %v4508, %v4509
    %v4511 = vand.u32 %v4510, 4294901760
    %4512 = vmatmul.mubr.f32.gmra.mxu0 %v4511
    %v4513 = vpop.f32.mrf.mxu0
    %v4514 = vadd.f32 %v4040, %v4513
    %v4515 = vpop.f32.mrf.mxu0
    %4516 = vmatprep.mubr.f32.mxu0 0.0
    %v4517 = vand.u32 %v4136, 4294901760
    %v4518 = vsub.f32 %v4136, %v4517
    %v4519 = vand.u32 %v4518, 4294901760
    %v4520 = vsub.f32 %v4518, %v4519
    %v4521 = vand.u32 %v4520, 4294901760
    %4522 = vmatmul.mubr.f32.gmra.mxu0 %v4521
    %v4523 = vpop.f32.mrf.mxu0
    %v4524 = vadd.f32 %v4040, %v4523
    %v4525 = vpop.f32.mrf.mxu0
    %4526 = vdwg.mxu0
    %4527 = vmatprep.subr.mxu0 0.0
    %4528 = vmatpush1.msra.mxu0 0.0
    %4529 = vmatprep.subr.mxu0 0.0
    %4530 = vmatpush1.msra.mxu0 0.0
    %4531 = vmatprep.subr.mxu0 0.0
    %4532 = vmatpush1.msra.mxu0 0.0
    %4533 = vmatprep.subr.mxu0 0.0
    %4534 = vmatpush1.msra.mxu0 0.0
    %4535 = vmatprep.subr.mxu0 0.0
    %4536 = vmatpush1.msra.mxu0 0.0
    %4537 = vmatprep.subr.mxu0 0.0
    %4538 = vmatpush1.msra.mxu0 0.0
    %4539 = vmatprep.subr.mxu0 0.0
    %4540 = vmatpush1.msra.mxu0 0.0
    %4541 = vmatprep.subr.mxu0 0.0
    %4542 = vmatpush1.msra.mxu0 0.0
    %4543 = vmatprep.subr.mxu0 0.0
    %4544 = vmatpush1.msra.mxu0 0.0
    %4545 = vmatprep.subr.mxu0 0.0
    %4546 = vmatpush1.msra.mxu0 0.0
    %4547 = vmatprep.subr.mxu0 0.0
    %4548 = vmatpush1.msra.mxu0 0.0
    %4549 = vmatprep.subr.mxu0 0.0
    %4550 = vmatpush1.msra.mxu0 0.0
    %4551 = vmatprep.subr.mxu0 0.0
    %v4552 = vand.u32 %v4034, 4294901760
    %v4553 = vsub.f32 %v4034, %v4552
    %v4554 = vand.u32 %v4553, 4294901760
    %v4555 = vsub.f32 %v4553, %v4554
    %v4556 = vand.u32 %v4555, 4294901760
    %4557 = vmatpush1.msra.mxu0 %v4556
    %4558 = vmatprep.subr.mxu0 0.0
    %v4559 = vand.u32 %v4033, 4294901760
    %v4560 = vsub.f32 %v4033, %v4559
    %v4561 = vand.u32 %v4560, 4294901760
    %v4562 = vsub.f32 %v4560, %v4561
    %v4563 = vand.u32 %v4562, 4294901760
    %4564 = vmatpush1.msra.mxu0 %v4563
    %4565 = vmatprep.subr.mxu0 0.0
    %v4566 = vand.u32 %v4032, 4294901760
    %v4567 = vsub.f32 %v4032, %v4566
    %v4568 = vand.u32 %v4567, 4294901760
    %v4569 = vsub.f32 %v4567, %v4568
    %v4570 = vand.u32 %v4569, 4294901760
    %4571 = vmatpush1.msra.mxu0 %v4570
    %4572 = vmatprep.subr.mxu0 0.0
    %v4573 = vand.u32 %v4031, 4294901760
    %v4574 = vsub.f32 %v4031, %v4573
    %v4575 = vand.u32 %v4574, 4294901760
    %v4576 = vsub.f32 %v4574, %v4575
    %v4577 = vand.u32 %v4576, 4294901760
    %4578 = vmatpush1.msra.mxu0 %v4577
    %4579 = vmatprep.subr.mxu0 0.0
    %4580 = vmatpush2.msra.mxu0 0.0
    %4581 = vmatprep.subr.mxu0 0.0
    %4582 = vmatpush2.msra.mxu0 0.0
    %4583 = vmatprep.subr.mxu0 0.0
    %4584 = vmatpush2.msra.mxu0 0.0
    %4585 = vmatprep.subr.mxu0 0.0
    %4586 = vmatpush2.msra.mxu0 0.0
    %4587 = vmatprep.subr.mxu0 0.0
    %4588 = vmatpush2.msra.mxu0 0.0
    %4589 = vmatprep.subr.mxu0 0.0
    %4590 = vmatpush2.msra.mxu0 0.0
    %4591 = vmatprep.subr.mxu0 0.0
    %4592 = vmatpush2.msra.mxu0 0.0
    %4593 = vmatprep.subr.mxu0 0.0
    %4594 = vmatpush2.msra.mxu0 0.0
    %4595 = vmatprep.subr.mxu0 0.0
    %4596 = vmatpush2.msra.mxu0 0.0
    %4597 = vmatprep.subr.mxu0 0.0
    %4598 = vmatpush2.msra.mxu0 0.0
    %4599 = vmatprep.subr.mxu0 0.0
    %4600 = vmatpush2.msra.mxu0 0.0
    %4601 = vmatprep.subr.mxu0 0.0
    %4602 = vmatpush2.msra.mxu0 0.0
    %4603 = vmatprep.subr.mxu0 0.0
    %4604 = vmatpush2.msra.mxu0 0.0
    %4605 = vmatprep.subr.mxu0 0.0
    %4606 = vmatpush2.msra.mxu0 0.0
    %4607 = vmatprep.subr.mxu0 0.0
    %4608 = vmatpush2.msra.mxu0 0.0
    %4609 = vmatprep.subr.mxu0 0.0
    %4610 = vmatpush2.msra.mxu0 0.0
    %4611 = vmatprep.mubr.f32.mxu0 0.0
    %v4612 = vand.u32 %v4043, 4294901760
    %4613 = vmatmul.mubr.f32.gmra.mxu0 %v4612
    %v4614 = vpop.f32.mrf.mxu0
    %v4615 = vadd.f32 %v4214, %v4614
    %v4616 = vpop.f32.mrf.mxu0
    %4617 = vmatprep.mubr.f32.mxu0 0.0
    %v4618 = vand.u32 %v4046, 4294901760
    %4619 = vmatmul.mubr.f32.gmra.mxu0 %v4618
    %v4620 = vpop.f32.mrf.mxu0
    %v4621 = vadd.f32 %v4224, %v4620
    %v4622 = vpop.f32.mrf.mxu0
    %4623 = vmatprep.mubr.f32.mxu0 0.0
    %v4624 = vand.u32 %v4049, 4294901760
    %4625 = vmatmul.mubr.f32.gmra.mxu0 %v4624
    %v4626 = vpop.f32.mrf.mxu0
    %v4627 = vadd.f32 %v4234, %v4626
    %v4628 = vpop.f32.mrf.mxu0
    %4629 = vmatprep.mubr.f32.mxu0 0.0
    %v4630 = vand.u32 %v4052, 4294901760
    %4631 = vmatmul.mubr.f32.gmra.mxu0 %v4630
    %v4632 = vpop.f32.mrf.mxu0
    %v4633 = vadd.f32 %v4244, %v4632
    %v4634 = vpop.f32.mrf.mxu0
    %4635 = vmatprep.mubr.f32.mxu0 0.0
    %v4636 = vand.u32 %v4055, 4294901760
    %4637 = vmatmul.mubr.f32.gmra.mxu0 %v4636
    %v4638 = vpop.f32.mrf.mxu0
    %v4639 = vadd.f32 %v4254, %v4638
    %v4640 = vpop.f32.mrf.mxu0
    %4641 = vmatprep.mubr.f32.mxu0 0.0
    %v4642 = vand.u32 %v4058, 4294901760
    %4643 = vmatmul.mubr.f32.gmra.mxu0 %v4642
    %v4644 = vpop.f32.mrf.mxu0
    %v4645 = vadd.f32 %v4264, %v4644
    %v4646 = vpop.f32.mrf.mxu0
    %4647 = vmatprep.mubr.f32.mxu0 0.0
    %v4648 = vand.u32 %v4061, 4294901760
    %4649 = vmatmul.mubr.f32.gmra.mxu0 %v4648
    %v4650 = vpop.f32.mrf.mxu0
    %v4651 = vadd.f32 %v4274, %v4650
    %v4652 = vpop.f32.mrf.mxu0
    %4653 = vmatprep.mubr.f32.mxu0 0.0
    %v4654 = vand.u32 %v4064, 4294901760
    %4655 = vmatmul.mubr.f32.gmra.mxu0 %v4654
    %v4656 = vpop.f32.mrf.mxu0
    %v4657 = vadd.f32 %v4284, %v4656
    %v4658 = vpop.f32.mrf.mxu0
    %4659 = vmatprep.mubr.f32.mxu0 0.0
    %v4660 = vand.u32 %v4067, 4294901760
    %4661 = vmatmul.mubr.f32.gmra.mxu0 %v4660
    %v4662 = vpop.f32.mrf.mxu0
    %v4663 = vadd.f32 %v4294, %v4662
    %v4664 = vpop.f32.mrf.mxu0
    %4665 = vmatprep.mubr.f32.mxu0 0.0
    %v4666 = vand.u32 %v4070, 4294901760
    %4667 = vmatmul.mubr.f32.gmra.mxu0 %v4666
    %v4668 = vpop.f32.mrf.mxu0
    %v4669 = vadd.f32 %v4304, %v4668
    %v4670 = vpop.f32.mrf.mxu0
    %4671 = vmatprep.mubr.f32.mxu0 0.0
    %v4672 = vand.u32 %v4073, 4294901760
    %4673 = vmatmul.mubr.f32.gmra.mxu0 %v4672
    %v4674 = vpop.f32.mrf.mxu0
    %v4675 = vadd.f32 %v4314, %v4674
    %v4676 = vpop.f32.mrf.mxu0
    %4677 = vmatprep.mubr.f32.mxu0 0.0
    %v4678 = vand.u32 %v4076, 4294901760
    %4679 = vmatmul.mubr.f32.gmra.mxu0 %v4678
    %v4680 = vpop.f32.mrf.mxu0
    %v4681 = vadd.f32 %v4324, %v4680
    %v4682 = vpop.f32.mrf.mxu0
    %4683 = vmatprep.mubr.f32.mxu0 0.0
    %v4684 = vand.u32 %v4079, 4294901760
    %4685 = vmatmul.mubr.f32.gmra.mxu0 %v4684
    %v4686 = vpop.f32.mrf.mxu0
    %v4687 = vadd.f32 %v4334, %v4686
    %v4688 = vpop.f32.mrf.mxu0
    %4689 = vmatprep.mubr.f32.mxu0 0.0
    %v4690 = vand.u32 %v4082, 4294901760
    %4691 = vmatmul.mubr.f32.gmra.mxu0 %v4690
    %v4692 = vpop.f32.mrf.mxu0
    %v4693 = vadd.f32 %v4344, %v4692
    %v4694 = vpop.f32.mrf.mxu0
    %4695 = vmatprep.mubr.f32.mxu0 0.0
    %v4696 = vand.u32 %v4085, 4294901760
    %4697 = vmatmul.mubr.f32.gmra.mxu0 %v4696
    %v4698 = vpop.f32.mrf.mxu0
    %v4699 = vadd.f32 %v4354, %v4698
    %v4700 = vpop.f32.mrf.mxu0
    %4701 = vmatprep.mubr.f32.mxu0 0.0
    %v4702 = vand.u32 %v4088, 4294901760
    %4703 = vmatmul.mubr.f32.gmra.mxu0 %v4702
    %v4704 = vpop.f32.mrf.mxu0
    %v4705 = vadd.f32 %v4364, %v4704
    %v4706 = vpop.f32.mrf.mxu0
    %4707 = vmatprep.mubr.f32.mxu0 0.0
    %v4708 = vand.u32 %v4091, 4294901760
    %4709 = vmatmul.mubr.f32.gmra.mxu0 %v4708
    %v4710 = vpop.f32.mrf.mxu0
    %v4711 = vadd.f32 %v4374, %v4710
    %v4712 = vpop.f32.mrf.mxu0
    %4713 = vmatprep.mubr.f32.mxu0 0.0
    %v4714 = vand.u32 %v4094, 4294901760
    %4715 = vmatmul.mubr.f32.gmra.mxu0 %v4714
    %v4716 = vpop.f32.mrf.mxu0
    %v4717 = vadd.f32 %v4384, %v4716
    %v4718 = vpop.f32.mrf.mxu0
    %4719 = vmatprep.mubr.f32.mxu0 0.0
    %v4720 = vand.u32 %v4097, 4294901760
    %4721 = vmatmul.mubr.f32.gmra.mxu0 %v4720
    %v4722 = vpop.f32.mrf.mxu0
    %v4723 = vadd.f32 %v4394, %v4722
    %v4724 = vpop.f32.mrf.mxu0
    %4725 = vmatprep.mubr.f32.mxu0 0.0
    %v4726 = vand.u32 %v4100, 4294901760
    %4727 = vmatmul.mubr.f32.gmra.mxu0 %v4726
    %v4728 = vpop.f32.mrf.mxu0
    %v4729 = vadd.f32 %v4404, %v4728
    %v4730 = vpop.f32.mrf.mxu0
    %4731 = vmatprep.mubr.f32.mxu0 0.0
    %v4732 = vand.u32 %v4103, 4294901760
    %4733 = vmatmul.mubr.f32.gmra.mxu0 %v4732
    %v4734 = vpop.f32.mrf.mxu0
    %v4735 = vadd.f32 %v4414, %v4734
    %v4736 = vpop.f32.mrf.mxu0
    %4737 = vmatprep.mubr.f32.mxu0 0.0
    %v4738 = vand.u32 %v4106, 4294901760
    %4739 = vmatmul.mubr.f32.gmra.mxu0 %v4738
    %v4740 = vpop.f32.mrf.mxu0
    %v4741 = vadd.f32 %v4424, %v4740
    %v4742 = vpop.f32.mrf.mxu0
    %4743 = vmatprep.mubr.f32.mxu0 0.0
    %v4744 = vand.u32 %v4109, 4294901760
    %4745 = vmatmul.mubr.f32.gmra.mxu0 %v4744
    %v4746 = vpop.f32.mrf.mxu0
    %v4747 = vadd.f32 %v4434, %v4746
    %v4748 = vpop.f32.mrf.mxu0
    %4749 = vmatprep.mubr.f32.mxu0 0.0
    %v4750 = vand.u32 %v4112, 4294901760
    %4751 = vmatmul.mubr.f32.gmra.mxu0 %v4750
    %v4752 = vpop.f32.mrf.mxu0
    %v4753 = vadd.f32 %v4444, %v4752
    %v4754 = vpop.f32.mrf.mxu0
    %4755 = vmatprep.mubr.f32.mxu0 0.0
    %v4756 = vand.u32 %v4115, 4294901760
    %4757 = vmatmul.mubr.f32.gmra.mxu0 %v4756
    %v4758 = vpop.f32.mrf.mxu0
    %v4759 = vadd.f32 %v4454, %v4758
    %v4760 = vpop.f32.mrf.mxu0
    %4761 = vmatprep.mubr.f32.mxu0 0.0
    %v4762 = vand.u32 %v4118, 4294901760
    %4763 = vmatmul.mubr.f32.gmra.mxu0 %v4762
    %v4764 = vpop.f32.mrf.mxu0
    %v4765 = vadd.f32 %v4464, %v4764
    %v4766 = vpop.f32.mrf.mxu0
    %4767 = vmatprep.mubr.f32.mxu0 0.0
    %v4768 = vand.u32 %v4121, 4294901760
    %4769 = vmatmul.mubr.f32.gmra.mxu0 %v4768
    %v4770 = vpop.f32.mrf.mxu0
    %v4771 = vadd.f32 %v4474, %v4770
    %v4772 = vpop.f32.mrf.mxu0
    %4773 = vmatprep.mubr.f32.mxu0 0.0
    %v4774 = vand.u32 %v4124, 4294901760
    %4775 = vmatmul.mubr.f32.gmra.mxu0 %v4774
    %v4776 = vpop.f32.mrf.mxu0
    %v4777 = vadd.f32 %v4484, %v4776
    %v4778 = vpop.f32.mrf.mxu0
    %4779 = vmatprep.mubr.f32.mxu0 0.0
    %v4780 = vand.u32 %v4127, 4294901760
    %4781 = vmatmul.mubr.f32.gmra.mxu0 %v4780
    %v4782 = vpop.f32.mrf.mxu0
    %v4783 = vadd.f32 %v4494, %v4782
    %v4784 = vpop.f32.mrf.mxu0
    %4785 = vmatprep.mubr.f32.mxu0 0.0
    %v4786 = vand.u32 %v4130, 4294901760
    %4787 = vmatmul.mubr.f32.gmra.mxu0 %v4786
    %v4788 = vpop.f32.mrf.mxu0
    %v4789 = vadd.f32 %v4504, %v4788
    %v4790 = vpop.f32.mrf.mxu0
    %4791 = vmatprep.mubr.f32.mxu0 0.0
    %v4792 = vand.u32 %v4133, 4294901760
    %4793 = vmatmul.mubr.f32.gmra.mxu0 %v4792
    %v4794 = vpop.f32.mrf.mxu0
    %v4795 = vadd.f32 %v4514, %v4794
    %v4796 = vpop.f32.mrf.mxu0
    %4797 = vmatprep.mubr.f32.mxu0 0.0
    %v4798 = vand.u32 %v4136, 4294901760
    %4799 = vmatmul.mubr.f32.gmra.mxu0 %v4798
    %v4800 = vpop.f32.mrf.mxu0
    %v4801 = vadd.f32 %v4524, %v4800
    %v4802 = vpop.f32.mrf.mxu0
    %4803 = vdwg.mxu0
    %4804 = vmatprep.subr.mxu0 0.0
    %4805 = vmatpush1.msra.mxu0 0.0
    %4806 = vmatprep.subr.mxu0 0.0
    %4807 = vmatpush1.msra.mxu0 0.0
    %4808 = vmatprep.subr.mxu0 0.0
    %4809 = vmatpush1.msra.mxu0 0.0
    %4810 = vmatprep.subr.mxu0 0.0
    %4811 = vmatpush1.msra.mxu0 0.0
    %4812 = vmatprep.subr.mxu0 0.0
    %4813 = vmatpush1.msra.mxu0 0.0
    %4814 = vmatprep.subr.mxu0 0.0
    %4815 = vmatpush1.msra.mxu0 0.0
    %4816 = vmatprep.subr.mxu0 0.0
    %4817 = vmatpush1.msra.mxu0 0.0
    %4818 = vmatprep.subr.mxu0 0.0
    %4819 = vmatpush1.msra.mxu0 0.0
    %4820 = vmatprep.subr.mxu0 0.0
    %4821 = vmatpush1.msra.mxu0 0.0
    %4822 = vmatprep.subr.mxu0 0.0
    %4823 = vmatpush1.msra.mxu0 0.0
    %4824 = vmatprep.subr.mxu0 0.0
    %4825 = vmatpush1.msra.mxu0 0.0
    %4826 = vmatprep.subr.mxu0 0.0
    %4827 = vmatpush1.msra.mxu0 0.0
    %4828 = vmatprep.subr.mxu0 0.0
    %v4829 = vand.u32 %v4034, 4294901760
    %v4830 = vsub.f32 %v4034, %v4829
    %4831 = vmatpush1.msra.mxu0 %v4830
    %4832 = vmatprep.subr.mxu0 0.0
    %v4833 = vand.u32 %v4033, 4294901760
    %v4834 = vsub.f32 %v4033, %v4833
    %4835 = vmatpush1.msra.mxu0 %v4834
    %4836 = vmatprep.subr.mxu0 0.0
    %v4837 = vand.u32 %v4032, 4294901760
    %v4838 = vsub.f32 %v4032, %v4837
    %4839 = vmatpush1.msra.mxu0 %v4838
    %4840 = vmatprep.subr.mxu0 0.0
    %v4841 = vand.u32 %v4031, 4294901760
    %v4842 = vsub.f32 %v4031, %v4841
    %4843 = vmatpush1.msra.mxu0 %v4842
    %4844 = vmatprep.subr.mxu0 0.0
    %4845 = vmatpush2.msra.mxu0 0.0
    %4846 = vmatprep.subr.mxu0 0.0
    %4847 = vmatpush2.msra.mxu0 0.0
    %4848 = vmatprep.subr.mxu0 0.0
    %4849 = vmatpush2.msra.mxu0 0.0
    %4850 = vmatprep.subr.mxu0 0.0
    %4851 = vmatpush2.msra.mxu0 0.0
    %4852 = vmatprep.subr.mxu0 0.0
    %4853 = vmatpush2.msra.mxu0 0.0
    %4854 = vmatprep.subr.mxu0 0.0
    %4855 = vmatpush2.msra.mxu0 0.0
    %4856 = vmatprep.subr.mxu0 0.0
    %4857 = vmatpush2.msra.mxu0 0.0
    %4858 = vmatprep.subr.mxu0 0.0
    %4859 = vmatpush2.msra.mxu0 0.0
    %4860 = vmatprep.subr.mxu0 0.0
    %4861 = vmatpush2.msra.mxu0 0.0
    %4862 = vmatprep.subr.mxu0 0.0
    %4863 = vmatpush2.msra.mxu0 0.0
    %4864 = vmatprep.subr.mxu0 0.0
    %4865 = vmatpush2.msra.mxu0 0.0
    %4866 = vmatprep.subr.mxu0 0.0
    %4867 = vmatpush2.msra.mxu0 0.0
    %4868 = vmatprep.subr.mxu0 0.0
    %4869 = vmatpush2.msra.mxu0 0.0
    %4870 = vmatprep.subr.mxu0 0.0
    %4871 = vmatpush2.msra.mxu0 0.0
    %4872 = vmatprep.subr.mxu0 0.0
    %4873 = vmatpush2.msra.mxu0 0.0
    %4874 = vmatprep.subr.mxu0 0.0
    %4875 = vmatpush2.msra.mxu0 0.0
    %4876 = vmatprep.mubr.f32.mxu0 0.0
    %v4877 = vand.u32 %v4043, 4294901760
    %v4878 = vsub.f32 %v4043, %v4877
    %4879 = vmatmul.mubr.f32.gmra.mxu0 %v4878
    %v4880 = vpop.f32.mrf.mxu0
    %v4881 = vadd.f32 %v4615, %v4880
    %v4882 = vpop.f32.mrf.mxu0
    %4883 = vmatprep.mubr.f32.mxu0 0.0
    %v4884 = vand.u32 %v4046, 4294901760
    %v4885 = vsub.f32 %v4046, %v4884
    %4886 = vmatmul.mubr.f32.gmra.mxu0 %v4885
    %v4887 = vpop.f32.mrf.mxu0
    %v4888 = vadd.f32 %v4621, %v4887
    %v4889 = vpop.f32.mrf.mxu0
    %4890 = vmatprep.mubr.f32.mxu0 0.0
    %v4891 = vand.u32 %v4049, 4294901760
    %v4892 = vsub.f32 %v4049, %v4891
    %4893 = vmatmul.mubr.f32.gmra.mxu0 %v4892
    %v4894 = vpop.f32.mrf.mxu0
    %v4895 = vadd.f32 %v4627, %v4894
    %v4896 = vpop.f32.mrf.mxu0
    %4897 = vmatprep.mubr.f32.mxu0 0.0
    %v4898 = vand.u32 %v4052, 4294901760
    %v4899 = vsub.f32 %v4052, %v4898
    %4900 = vmatmul.mubr.f32.gmra.mxu0 %v4899
    %v4901 = vpop.f32.mrf.mxu0
    %v4902 = vadd.f32 %v4633, %v4901
    %v4903 = vpop.f32.mrf.mxu0
    %4904 = vmatprep.mubr.f32.mxu0 0.0
    %v4905 = vand.u32 %v4055, 4294901760
    %v4906 = vsub.f32 %v4055, %v4905
    %4907 = vmatmul.mubr.f32.gmra.mxu0 %v4906
    %v4908 = vpop.f32.mrf.mxu0
    %v4909 = vadd.f32 %v4639, %v4908
    %v4910 = vpop.f32.mrf.mxu0
    %4911 = vmatprep.mubr.f32.mxu0 0.0
    %v4912 = vand.u32 %v4058, 4294901760
    %v4913 = vsub.f32 %v4058, %v4912
    %4914 = vmatmul.mubr.f32.gmra.mxu0 %v4913
    %v4915 = vpop.f32.mrf.mxu0
    %v4916 = vadd.f32 %v4645, %v4915
    %v4917 = vpop.f32.mrf.mxu0
    %4918 = vmatprep.mubr.f32.mxu0 0.0
    %v4919 = vand.u32 %v4061, 4294901760
    %v4920 = vsub.f32 %v4061, %v4919
    %4921 = vmatmul.mubr.f32.gmra.mxu0 %v4920
    %v4922 = vpop.f32.mrf.mxu0
    %v4923 = vadd.f32 %v4651, %v4922
    %v4924 = vpop.f32.mrf.mxu0
    %4925 = vmatprep.mubr.f32.mxu0 0.0
    %v4926 = vand.u32 %v4064, 4294901760
    %v4927 = vsub.f32 %v4064, %v4926
    %4928 = vmatmul.mubr.f32.gmra.mxu0 %v4927
    %v4929 = vpop.f32.mrf.mxu0
    %v4930 = vadd.f32 %v4657, %v4929
    %v4931 = vpop.f32.mrf.mxu0
    %4932 = vmatprep.mubr.f32.mxu0 0.0
    %v4933 = vand.u32 %v4067, 4294901760
    %v4934 = vsub.f32 %v4067, %v4933
    %4935 = vmatmul.mubr.f32.gmra.mxu0 %v4934
    %v4936 = vpop.f32.mrf.mxu0
    %v4937 = vadd.f32 %v4663, %v4936
    %v4938 = vpop.f32.mrf.mxu0
    %4939 = vmatprep.mubr.f32.mxu0 0.0
    %v4940 = vand.u32 %v4070, 4294901760
    %v4941 = vsub.f32 %v4070, %v4940
    %4942 = vmatmul.mubr.f32.gmra.mxu0 %v4941
    %v4943 = vpop.f32.mrf.mxu0
    %v4944 = vadd.f32 %v4669, %v4943
    %v4945 = vpop.f32.mrf.mxu0
    %4946 = vmatprep.mubr.f32.mxu0 0.0
    %v4947 = vand.u32 %v4073, 4294901760
    %v4948 = vsub.f32 %v4073, %v4947
    %4949 = vmatmul.mubr.f32.gmra.mxu0 %v4948
    %v4950 = vpop.f32.mrf.mxu0
    %v4951 = vadd.f32 %v4675, %v4950
    %v4952 = vpop.f32.mrf.mxu0
    %4953 = vmatprep.mubr.f32.mxu0 0.0
    %v4954 = vand.u32 %v4076, 4294901760
    %v4955 = vsub.f32 %v4076, %v4954
    %4956 = vmatmul.mubr.f32.gmra.mxu0 %v4955
    %v4957 = vpop.f32.mrf.mxu0
    %v4958 = vadd.f32 %v4681, %v4957
    %v4959 = vpop.f32.mrf.mxu0
    %4960 = vmatprep.mubr.f32.mxu0 0.0
    %v4961 = vand.u32 %v4079, 4294901760
    %v4962 = vsub.f32 %v4079, %v4961
    %4963 = vmatmul.mubr.f32.gmra.mxu0 %v4962
    %v4964 = vpop.f32.mrf.mxu0
    %v4965 = vadd.f32 %v4687, %v4964
    %v4966 = vpop.f32.mrf.mxu0
    %4967 = vmatprep.mubr.f32.mxu0 0.0
    %v4968 = vand.u32 %v4082, 4294901760
    %v4969 = vsub.f32 %v4082, %v4968
    %4970 = vmatmul.mubr.f32.gmra.mxu0 %v4969
    %v4971 = vpop.f32.mrf.mxu0
    %v4972 = vadd.f32 %v4693, %v4971
    %v4973 = vpop.f32.mrf.mxu0
    %4974 = vmatprep.mubr.f32.mxu0 0.0
    %v4975 = vand.u32 %v4085, 4294901760
    %v4976 = vsub.f32 %v4085, %v4975
    %4977 = vmatmul.mubr.f32.gmra.mxu0 %v4976
    %v4978 = vpop.f32.mrf.mxu0
    %v4979 = vadd.f32 %v4699, %v4978
    %v4980 = vpop.f32.mrf.mxu0
    %4981 = vmatprep.mubr.f32.mxu0 0.0
    %v4982 = vand.u32 %v4088, 4294901760
    %v4983 = vsub.f32 %v4088, %v4982
    %4984 = vmatmul.mubr.f32.gmra.mxu0 %v4983
    %v4985 = vpop.f32.mrf.mxu0
    %v4986 = vadd.f32 %v4705, %v4985
    %v4987 = vpop.f32.mrf.mxu0
    %4988 = vmatprep.mubr.f32.mxu0 0.0
    %v4989 = vand.u32 %v4091, 4294901760
    %v4990 = vsub.f32 %v4091, %v4989
    %4991 = vmatmul.mubr.f32.gmra.mxu0 %v4990
    %v4992 = vpop.f32.mrf.mxu0
    %v4993 = vadd.f32 %v4711, %v4992
    %v4994 = vpop.f32.mrf.mxu0
    %4995 = vmatprep.mubr.f32.mxu0 0.0
    %v4996 = vand.u32 %v4094, 4294901760
    %v4997 = vsub.f32 %v4094, %v4996
    %4998 = vmatmul.mubr.f32.gmra.mxu0 %v4997
    %v4999 = vpop.f32.mrf.mxu0
    %v5000 = vadd.f32 %v4717, %v4999
    %v5001 = vpop.f32.mrf.mxu0
    %5002 = vmatprep.mubr.f32.mxu0 0.0
    %v5003 = vand.u32 %v4097, 4294901760
    %v5004 = vsub.f32 %v4097, %v5003
    %5005 = vmatmul.mubr.f32.gmra.mxu0 %v5004
    %v5006 = vpop.f32.mrf.mxu0
    %v5007 = vadd.f32 %v4723, %v5006
    %v5008 = vpop.f32.mrf.mxu0
    %5009 = vmatprep.mubr.f32.mxu0 0.0
    %v5010 = vand.u32 %v4100, 4294901760
    %v5011 = vsub.f32 %v4100, %v5010
    %5012 = vmatmul.mubr.f32.gmra.mxu0 %v5011
    %v5013 = vpop.f32.mrf.mxu0
    %v5014 = vadd.f32 %v4729, %v5013
    %v5015 = vpop.f32.mrf.mxu0
    %5016 = vmatprep.mubr.f32.mxu0 0.0
    %v5017 = vand.u32 %v4103, 4294901760
    %v5018 = vsub.f32 %v4103, %v5017
    %5019 = vmatmul.mubr.f32.gmra.mxu0 %v5018
    %v5020 = vpop.f32.mrf.mxu0
    %v5021 = vadd.f32 %v4735, %v5020
    %v5022 = vpop.f32.mrf.mxu0
    %5023 = vmatprep.mubr.f32.mxu0 0.0
    %v5024 = vand.u32 %v4106, 4294901760
    %v5025 = vsub.f32 %v4106, %v5024
    %5026 = vmatmul.mubr.f32.gmra.mxu0 %v5025
    %v5027 = vpop.f32.mrf.mxu0
    %v5028 = vadd.f32 %v4741, %v5027
    %v5029 = vpop.f32.mrf.mxu0
    %5030 = vmatprep.mubr.f32.mxu0 0.0
    %v5031 = vand.u32 %v4109, 4294901760
    %v5032 = vsub.f32 %v4109, %v5031
    %5033 = vmatmul.mubr.f32.gmra.mxu0 %v5032
    %v5034 = vpop.f32.mrf.mxu0
    %v5035 = vadd.f32 %v4747, %v5034
    %v5036 = vpop.f32.mrf.mxu0
    %5037 = vmatprep.mubr.f32.mxu0 0.0
    %v5038 = vand.u32 %v4112, 4294901760
    %v5039 = vsub.f32 %v4112, %v5038
    %5040 = vmatmul.mubr.f32.gmra.mxu0 %v5039
    %v5041 = vpop.f32.mrf.mxu0
    %v5042 = vadd.f32 %v4753, %v5041
    %v5043 = vpop.f32.mrf.mxu0
    %5044 = vmatprep.mubr.f32.mxu0 0.0
    %v5045 = vand.u32 %v4115, 4294901760
    %v5046 = vsub.f32 %v4115, %v5045
    %5047 = vmatmul.mubr.f32.gmra.mxu0 %v5046
    %v5048 = vpop.f32.mrf.mxu0
    %v5049 = vadd.f32 %v4759, %v5048
    %v5050 = vpop.f32.mrf.mxu0
    %5051 = vmatprep.mubr.f32.mxu0 0.0
    %v5052 = vand.u32 %v4118, 4294901760
    %v5053 = vsub.f32 %v4118, %v5052
    %5054 = vmatmul.mubr.f32.gmra.mxu0 %v5053
    %v5055 = vpop.f32.mrf.mxu0
    %v5056 = vadd.f32 %v4765, %v5055
    %v5057 = vpop.f32.mrf.mxu0
    %5058 = vmatprep.mubr.f32.mxu0 0.0
    %v5059 = vand.u32 %v4121, 4294901760
    %v5060 = vsub.f32 %v4121, %v5059
    %5061 = vmatmul.mubr.f32.gmra.mxu0 %v5060
    %v5062 = vpop.f32.mrf.mxu0
    %v5063 = vadd.f32 %v4771, %v5062
    %v5064 = vpop.f32.mrf.mxu0
    %5065 = vmatprep.mubr.f32.mxu0 0.0
    %v5066 = vand.u32 %v4124, 4294901760
    %v5067 = vsub.f32 %v4124, %v5066
    %5068 = vmatmul.mubr.f32.gmra.mxu0 %v5067
    %v5069 = vpop.f32.mrf.mxu0
    %v5070 = vadd.f32 %v4777, %v5069
    %v5071 = vpop.f32.mrf.mxu0
    %5072 = vmatprep.mubr.f32.mxu0 0.0
    %v5073 = vand.u32 %v4127, 4294901760
    %v5074 = vsub.f32 %v4127, %v5073
    %5075 = vmatmul.mubr.f32.gmra.mxu0 %v5074
    %v5076 = vpop.f32.mrf.mxu0
    %v5077 = vadd.f32 %v4783, %v5076
    %v5078 = vpop.f32.mrf.mxu0
    %5079 = vmatprep.mubr.f32.mxu0 0.0
    %v5080 = vand.u32 %v4130, 4294901760
    %v5081 = vsub.f32 %v4130, %v5080
    %5082 = vmatmul.mubr.f32.gmra.mxu0 %v5081
    %v5083 = vpop.f32.mrf.mxu0
    %v5084 = vadd.f32 %v4789, %v5083
    %v5085 = vpop.f32.mrf.mxu0
    %5086 = vmatprep.mubr.f32.mxu0 0.0
    %v5087 = vand.u32 %v4133, 4294901760
    %v5088 = vsub.f32 %v4133, %v5087
    %5089 = vmatmul.mubr.f32.gmra.mxu0 %v5088
    %v5090 = vpop.f32.mrf.mxu0
    %v5091 = vadd.f32 %v4795, %v5090
    %v5092 = vpop.f32.mrf.mxu0
    %5093 = vmatprep.mubr.f32.mxu0 0.0
    %v5094 = vand.u32 %v4136, 4294901760
    %v5095 = vsub.f32 %v4136, %v5094
    %5096 = vmatmul.mubr.f32.gmra.mxu0 %v5095
    %v5097 = vpop.f32.mrf.mxu0
    %v5098 = vadd.f32 %v4801, %v5097
    %v5099 = vpop.f32.mrf.mxu0
    %5100 = vdwg.mxu0
    %5101 = vmatprep.subr.mxu0 0.0
    %5102 = vmatpush1.msra.mxu0 0.0
    %5103 = vmatprep.subr.mxu0 0.0
    %5104 = vmatpush1.msra.mxu0 0.0
    %5105 = vmatprep.subr.mxu0 0.0
    %5106 = vmatpush1.msra.mxu0 0.0
    %5107 = vmatprep.subr.mxu0 0.0
    %5108 = vmatpush1.msra.mxu0 0.0
    %5109 = vmatprep.subr.mxu0 0.0
    %5110 = vmatpush1.msra.mxu0 0.0
    %5111 = vmatprep.subr.mxu0 0.0
    %5112 = vmatpush1.msra.mxu0 0.0
    %5113 = vmatprep.subr.mxu0 0.0
    %5114 = vmatpush1.msra.mxu0 0.0
    %5115 = vmatprep.subr.mxu0 0.0
    %5116 = vmatpush1.msra.mxu0 0.0
    %5117 = vmatprep.subr.mxu0 0.0
    %5118 = vmatpush1.msra.mxu0 0.0
    %5119 = vmatprep.subr.mxu0 0.0
    %5120 = vmatpush1.msra.mxu0 0.0
    %5121 = vmatprep.subr.mxu0 0.0
    %5122 = vmatpush1.msra.mxu0 0.0
    %5123 = vmatprep.subr.mxu0 0.0
    %5124 = vmatpush1.msra.mxu0 0.0
    %5125 = vmatprep.subr.mxu0 0.0
    %v5126 = vand.u32 %v4034, 4294901760
    %5127 = vmatpush1.msra.mxu0 %v5126
    %5128 = vmatprep.subr.mxu0 0.0
    %v5129 = vand.u32 %v4033, 4294901760
    %5130 = vmatpush1.msra.mxu0 %v5129
    %5131 = vmatprep.subr.mxu0 0.0
    %v5132 = vand.u32 %v4032, 4294901760
    %5133 = vmatpush1.msra.mxu0 %v5132
    %5134 = vmatprep.subr.mxu0 0.0
    %v5135 = vand.u32 %v4031, 4294901760
    %5136 = vmatpush1.msra.mxu0 %v5135
    %5137 = vmatprep.subr.mxu0 0.0
    %5138 = vmatpush2.msra.mxu0 0.0
    %5139 = vmatprep.subr.mxu0 0.0
    %5140 = vmatpush2.msra.mxu0 0.0
    %5141 = vmatprep.subr.mxu0 0.0
    %5142 = vmatpush2.msra.mxu0 0.0
    %5143 = vmatprep.subr.mxu0 0.0
    %5144 = vmatpush2.msra.mxu0 0.0
    %5145 = vmatprep.subr.mxu0 0.0
    %5146 = vmatpush2.msra.mxu0 0.0
    %5147 = vmatprep.subr.mxu0 0.0
    %5148 = vmatpush2.msra.mxu0 0.0
    %5149 = vmatprep.subr.mxu0 0.0
    %5150 = vmatpush2.msra.mxu0 0.0
    %5151 = vmatprep.subr.mxu0 0.0
    %5152 = vmatpush2.msra.mxu0 0.0
    %5153 = vmatprep.subr.mxu0 0.0
    %5154 = vmatpush2.msra.mxu0 0.0
    %5155 = vmatprep.subr.mxu0 0.0
    %5156 = vmatpush2.msra.mxu0 0.0
    %5157 = vmatprep.subr.mxu0 0.0
    %5158 = vmatpush2.msra.mxu0 0.0
    %5159 = vmatprep.subr.mxu0 0.0
    %5160 = vmatpush2.msra.mxu0 0.0
    %5161 = vmatprep.subr.mxu0 0.0
    %5162 = vmatpush2.msra.mxu0 0.0
    %5163 = vmatprep.subr.mxu0 0.0
    %5164 = vmatpush2.msra.mxu0 0.0
    %5165 = vmatprep.subr.mxu0 0.0
    %5166 = vmatpush2.msra.mxu0 0.0
    %5167 = vmatprep.subr.mxu0 0.0
    %5168 = vmatpush2.msra.mxu0 0.0
    %5169 = vmatprep.mubr.f32.mxu0 0.0
    %v5170 = vand.u32 %v4043, 4294901760
    %v5171 = vsub.f32 %v4043, %v5170
    %v5172 = vand.u32 %v5171, 4294901760
    %5173 = vmatmul.mubr.f32.gmra.mxu0 %v5172
    %v5174 = vpop.f32.mrf.mxu0
    %v5175 = vadd.f32 %v4881, %v5174
    %v5176 = vpop.f32.mrf.mxu0
    %5177 = vmatprep.mubr.f32.mxu0 0.0
    %v5178 = vand.u32 %v4046, 4294901760
    %v5179 = vsub.f32 %v4046, %v5178
    %v5180 = vand.u32 %v5179, 4294901760
    %5181 = vmatmul.mubr.f32.gmra.mxu0 %v5180
    %v5182 = vpop.f32.mrf.mxu0
    %v5183 = vadd.f32 %v4888, %v5182
    %v5184 = vpop.f32.mrf.mxu0
    %5185 = vmatprep.mubr.f32.mxu0 0.0
    %v5186 = vand.u32 %v4049, 4294901760
    %v5187 = vsub.f32 %v4049, %v5186
    %v5188 = vand.u32 %v5187, 4294901760
    %5189 = vmatmul.mubr.f32.gmra.mxu0 %v5188
    %v5190 = vpop.f32.mrf.mxu0
    %v5191 = vadd.f32 %v4895, %v5190
    %v5192 = vpop.f32.mrf.mxu0
    %5193 = vmatprep.mubr.f32.mxu0 0.0
    %v5194 = vand.u32 %v4052, 4294901760
    %v5195 = vsub.f32 %v4052, %v5194
    %v5196 = vand.u32 %v5195, 4294901760
    %5197 = vmatmul.mubr.f32.gmra.mxu0 %v5196
    %v5198 = vpop.f32.mrf.mxu0
    %v5199 = vadd.f32 %v4902, %v5198
    %v5200 = vpop.f32.mrf.mxu0
    %5201 = vmatprep.mubr.f32.mxu0 0.0
    %v5202 = vand.u32 %v4055, 4294901760
    %v5203 = vsub.f32 %v4055, %v5202
    %v5204 = vand.u32 %v5203, 4294901760
    %5205 = vmatmul.mubr.f32.gmra.mxu0 %v5204
    %v5206 = vpop.f32.mrf.mxu0
    %v5207 = vadd.f32 %v4909, %v5206
    %v5208 = vpop.f32.mrf.mxu0
    %5209 = vmatprep.mubr.f32.mxu0 0.0
    %v5210 = vand.u32 %v4058, 4294901760
    %v5211 = vsub.f32 %v4058, %v5210
    %v5212 = vand.u32 %v5211, 4294901760
    %5213 = vmatmul.mubr.f32.gmra.mxu0 %v5212
    %v5214 = vpop.f32.mrf.mxu0
    %v5215 = vadd.f32 %v4916, %v5214
    %v5216 = vpop.f32.mrf.mxu0
    %5217 = vmatprep.mubr.f32.mxu0 0.0
    %v5218 = vand.u32 %v4061, 4294901760
    %v5219 = vsub.f32 %v4061, %v5218
    %v5220 = vand.u32 %v5219, 4294901760
    %5221 = vmatmul.mubr.f32.gmra.mxu0 %v5220
    %v5222 = vpop.f32.mrf.mxu0
    %v5223 = vadd.f32 %v4923, %v5222
    %v5224 = vpop.f32.mrf.mxu0
    %5225 = vmatprep.mubr.f32.mxu0 0.0
    %v5226 = vand.u32 %v4064, 4294901760
    %v5227 = vsub.f32 %v4064, %v5226
    %v5228 = vand.u32 %v5227, 4294901760
    %5229 = vmatmul.mubr.f32.gmra.mxu0 %v5228
    %v5230 = vpop.f32.mrf.mxu0
    %v5231 = vadd.f32 %v4930, %v5230
    %v5232 = vpop.f32.mrf.mxu0
    %5233 = vmatprep.mubr.f32.mxu0 0.0
    %v5234 = vand.u32 %v4067, 4294901760
    %v5235 = vsub.f32 %v4067, %v5234
    %v5236 = vand.u32 %v5235, 4294901760
    %5237 = vmatmul.mubr.f32.gmra.mxu0 %v5236
    %v5238 = vpop.f32.mrf.mxu0
    %v5239 = vadd.f32 %v4937, %v5238
    %v5240 = vpop.f32.mrf.mxu0
    %5241 = vmatprep.mubr.f32.mxu0 0.0
    %v5242 = vand.u32 %v4070, 4294901760
    %v5243 = vsub.f32 %v4070, %v5242
    %v5244 = vand.u32 %v5243, 4294901760
    %5245 = vmatmul.mubr.f32.gmra.mxu0 %v5244
    %v5246 = vpop.f32.mrf.mxu0
    %v5247 = vadd.f32 %v4944, %v5246
    %v5248 = vpop.f32.mrf.mxu0
    %5249 = vmatprep.mubr.f32.mxu0 0.0
    %v5250 = vand.u32 %v4073, 4294901760
    %v5251 = vsub.f32 %v4073, %v5250
    %v5252 = vand.u32 %v5251, 4294901760
    %5253 = vmatmul.mubr.f32.gmra.mxu0 %v5252
    %v5254 = vpop.f32.mrf.mxu0
    %v5255 = vadd.f32 %v4951, %v5254
    %v5256 = vpop.f32.mrf.mxu0
    %5257 = vmatprep.mubr.f32.mxu0 0.0
    %v5258 = vand.u32 %v4076, 4294901760
    %v5259 = vsub.f32 %v4076, %v5258
    %v5260 = vand.u32 %v5259, 4294901760
    %5261 = vmatmul.mubr.f32.gmra.mxu0 %v5260
    %v5262 = vpop.f32.mrf.mxu0
    %v5263 = vadd.f32 %v4958, %v5262
    %v5264 = vpop.f32.mrf.mxu0
    %5265 = vmatprep.mubr.f32.mxu0 0.0
    %v5266 = vand.u32 %v4079, 4294901760
    %v5267 = vsub.f32 %v4079, %v5266
    %v5268 = vand.u32 %v5267, 4294901760
    %5269 = vmatmul.mubr.f32.gmra.mxu0 %v5268
    %v5270 = vpop.f32.mrf.mxu0
    %v5271 = vadd.f32 %v4965, %v5270
    %v5272 = vpop.f32.mrf.mxu0
    %5273 = vmatprep.mubr.f32.mxu0 0.0
    %v5274 = vand.u32 %v4082, 4294901760
    %v5275 = vsub.f32 %v4082, %v5274
    %v5276 = vand.u32 %v5275, 4294901760
    %5277 = vmatmul.mubr.f32.gmra.mxu0 %v5276
    %v5278 = vpop.f32.mrf.mxu0
    %v5279 = vadd.f32 %v4972, %v5278
    %v5280 = vpop.f32.mrf.mxu0
    %5281 = vmatprep.mubr.f32.mxu0 0.0
    %v5282 = vand.u32 %v4085, 4294901760
    %v5283 = vsub.f32 %v4085, %v5282
    %v5284 = vand.u32 %v5283, 4294901760
    %5285 = vmatmul.mubr.f32.gmra.mxu0 %v5284
    %v5286 = vpop.f32.mrf.mxu0
    %v5287 = vadd.f32 %v4979, %v5286
    %v5288 = vpop.f32.mrf.mxu0
    %5289 = vmatprep.mubr.f32.mxu0 0.0
    %v5290 = vand.u32 %v4088, 4294901760
    %v5291 = vsub.f32 %v4088, %v5290
    %v5292 = vand.u32 %v5291, 4294901760
    %5293 = vmatmul.mubr.f32.gmra.mxu0 %v5292
    %v5294 = vpop.f32.mrf.mxu0
    %v5295 = vadd.f32 %v4986, %v5294
    %v5296 = vpop.f32.mrf.mxu0
    %5297 = vmatprep.mubr.f32.mxu0 0.0
    %v5298 = vand.u32 %v4091, 4294901760
    %v5299 = vsub.f32 %v4091, %v5298
    %v5300 = vand.u32 %v5299, 4294901760
    %5301 = vmatmul.mubr.f32.gmra.mxu0 %v5300
    %v5302 = vpop.f32.mrf.mxu0
    %v5303 = vadd.f32 %v4993, %v5302
    %v5304 = vpop.f32.mrf.mxu0
    %5305 = vmatprep.mubr.f32.mxu0 0.0
    %v5306 = vand.u32 %v4094, 4294901760
    %v5307 = vsub.f32 %v4094, %v5306
    %v5308 = vand.u32 %v5307, 4294901760
    %5309 = vmatmul.mubr.f32.gmra.mxu0 %v5308
    %v5310 = vpop.f32.mrf.mxu0
    %v5311 = vadd.f32 %v5000, %v5310
    %v5312 = vpop.f32.mrf.mxu0
    %5313 = vmatprep.mubr.f32.mxu0 0.0
    %v5314 = vand.u32 %v4097, 4294901760
    %v5315 = vsub.f32 %v4097, %v5314
    %v5316 = vand.u32 %v5315, 4294901760
    %5317 = vmatmul.mubr.f32.gmra.mxu0 %v5316
    %v5318 = vpop.f32.mrf.mxu0
    %v5319 = vadd.f32 %v5007, %v5318
    %v5320 = vpop.f32.mrf.mxu0
    %5321 = vmatprep.mubr.f32.mxu0 0.0
    %v5322 = vand.u32 %v4100, 4294901760
    %v5323 = vsub.f32 %v4100, %v5322
    %v5324 = vand.u32 %v5323, 4294901760
    %5325 = vmatmul.mubr.f32.gmra.mxu0 %v5324
    %v5326 = vpop.f32.mrf.mxu0
    %v5327 = vadd.f32 %v5014, %v5326
    %v5328 = vpop.f32.mrf.mxu0
    %5329 = vmatprep.mubr.f32.mxu0 0.0
    %v5330 = vand.u32 %v4103, 4294901760
    %v5331 = vsub.f32 %v4103, %v5330
    %v5332 = vand.u32 %v5331, 4294901760
    %5333 = vmatmul.mubr.f32.gmra.mxu0 %v5332
    %v5334 = vpop.f32.mrf.mxu0
    %v5335 = vadd.f32 %v5021, %v5334
    %v5336 = vpop.f32.mrf.mxu0
    %5337 = vmatprep.mubr.f32.mxu0 0.0
    %v5338 = vand.u32 %v4106, 4294901760
    %v5339 = vsub.f32 %v4106, %v5338
    %v5340 = vand.u32 %v5339, 4294901760
    %5341 = vmatmul.mubr.f32.gmra.mxu0 %v5340
    %v5342 = vpop.f32.mrf.mxu0
    %v5343 = vadd.f32 %v5028, %v5342
    %v5344 = vpop.f32.mrf.mxu0
    %5345 = vmatprep.mubr.f32.mxu0 0.0
    %v5346 = vand.u32 %v4109, 4294901760
    %v5347 = vsub.f32 %v4109, %v5346
    %v5348 = vand.u32 %v5347, 4294901760
    %5349 = vmatmul.mubr.f32.gmra.mxu0 %v5348
    %v5350 = vpop.f32.mrf.mxu0
    %v5351 = vadd.f32 %v5035, %v5350
    %v5352 = vpop.f32.mrf.mxu0
    %5353 = vmatprep.mubr.f32.mxu0 0.0
    %v5354 = vand.u32 %v4112, 4294901760
    %v5355 = vsub.f32 %v4112, %v5354
    %v5356 = vand.u32 %v5355, 4294901760
    %5357 = vmatmul.mubr.f32.gmra.mxu0 %v5356
    %v5358 = vpop.f32.mrf.mxu0
    %v5359 = vadd.f32 %v5042, %v5358
    %v5360 = vpop.f32.mrf.mxu0
    %5361 = vmatprep.mubr.f32.mxu0 0.0
    %v5362 = vand.u32 %v4115, 4294901760
    %v5363 = vsub.f32 %v4115, %v5362
    %v5364 = vand.u32 %v5363, 4294901760
    %5365 = vmatmul.mubr.f32.gmra.mxu0 %v5364
    %v5366 = vpop.f32.mrf.mxu0
    %v5367 = vadd.f32 %v5049, %v5366
    %v5368 = vpop.f32.mrf.mxu0
    %5369 = vmatprep.mubr.f32.mxu0 0.0
    %v5370 = vand.u32 %v4118, 4294901760
    %v5371 = vsub.f32 %v4118, %v5370
    %v5372 = vand.u32 %v5371, 4294901760
    %5373 = vmatmul.mubr.f32.gmra.mxu0 %v5372
    %v5374 = vpop.f32.mrf.mxu0
    %v5375 = vadd.f32 %v5056, %v5374
    %v5376 = vpop.f32.mrf.mxu0
    %5377 = vmatprep.mubr.f32.mxu0 0.0
    %v5378 = vand.u32 %v4121, 4294901760
    %v5379 = vsub.f32 %v4121, %v5378
    %v5380 = vand.u32 %v5379, 4294901760
    %5381 = vmatmul.mubr.f32.gmra.mxu0 %v5380
    %v5382 = vpop.f32.mrf.mxu0
    %v5383 = vadd.f32 %v5063, %v5382
    %v5384 = vpop.f32.mrf.mxu0
    %5385 = vmatprep.mubr.f32.mxu0 0.0
    %v5386 = vand.u32 %v4124, 4294901760
    %v5387 = vsub.f32 %v4124, %v5386
    %v5388 = vand.u32 %v5387, 4294901760
    %5389 = vmatmul.mubr.f32.gmra.mxu0 %v5388
    %v5390 = vpop.f32.mrf.mxu0
    %v5391 = vadd.f32 %v5070, %v5390
    %v5392 = vpop.f32.mrf.mxu0
    %5393 = vmatprep.mubr.f32.mxu0 0.0
    %v5394 = vand.u32 %v4127, 4294901760
    %v5395 = vsub.f32 %v4127, %v5394
    %v5396 = vand.u32 %v5395, 4294901760
    %5397 = vmatmul.mubr.f32.gmra.mxu0 %v5396
    %v5398 = vpop.f32.mrf.mxu0
    %v5399 = vadd.f32 %v5077, %v5398
    %v5400 = vpop.f32.mrf.mxu0
    %5401 = vmatprep.mubr.f32.mxu0 0.0
    %v5402 = vand.u32 %v4130, 4294901760
    %v5403 = vsub.f32 %v4130, %v5402
    %v5404 = vand.u32 %v5403, 4294901760
    %5405 = vmatmul.mubr.f32.gmra.mxu0 %v5404
    %v5406 = vpop.f32.mrf.mxu0
    %v5407 = vadd.f32 %v5084, %v5406
    %v5408 = vpop.f32.mrf.mxu0
    %5409 = vmatprep.mubr.f32.mxu0 0.0
    %v5410 = vand.u32 %v4133, 4294901760
    %v5411 = vsub.f32 %v4133, %v5410
    %v5412 = vand.u32 %v5411, 4294901760
    %5413 = vmatmul.mubr.f32.gmra.mxu0 %v5412
    %v5414 = vpop.f32.mrf.mxu0
    %v5415 = vadd.f32 %v5091, %v5414
    %v5416 = vpop.f32.mrf.mxu0
    %5417 = vmatprep.mubr.f32.mxu0 0.0
    %v5418 = vand.u32 %v4136, 4294901760
    %v5419 = vsub.f32 %v4136, %v5418
    %v5420 = vand.u32 %v5419, 4294901760
    %5421 = vmatmul.mubr.f32.gmra.mxu0 %v5420
    %v5422 = vpop.f32.mrf.mxu0
    %v5423 = vadd.f32 %v5098, %v5422
    %v5424 = vpop.f32.mrf.mxu0
    %5425 = vdwg.mxu0
    %5426 = vmatprep.subr.mxu0 0.0
    %5427 = vmatpush1.msra.mxu0 0.0
    %5428 = vmatprep.subr.mxu0 0.0
    %5429 = vmatpush1.msra.mxu0 0.0
    %5430 = vmatprep.subr.mxu0 0.0
    %5431 = vmatpush1.msra.mxu0 0.0
    %5432 = vmatprep.subr.mxu0 0.0
    %5433 = vmatpush1.msra.mxu0 0.0
    %5434 = vmatprep.subr.mxu0 0.0
    %5435 = vmatpush1.msra.mxu0 0.0
    %5436 = vmatprep.subr.mxu0 0.0
    %5437 = vmatpush1.msra.mxu0 0.0
    %5438 = vmatprep.subr.mxu0 0.0
    %5439 = vmatpush1.msra.mxu0 0.0
    %5440 = vmatprep.subr.mxu0 0.0
    %5441 = vmatpush1.msra.mxu0 0.0
    %5442 = vmatprep.subr.mxu0 0.0
    %5443 = vmatpush1.msra.mxu0 0.0
    %5444 = vmatprep.subr.mxu0 0.0
    %5445 = vmatpush1.msra.mxu0 0.0
    %5446 = vmatprep.subr.mxu0 0.0
    %5447 = vmatpush1.msra.mxu0 0.0
    %5448 = vmatprep.subr.mxu0 0.0
    %5449 = vmatpush1.msra.mxu0 0.0
    %5450 = vmatprep.subr.mxu0 0.0
    %v5451 = vand.u32 %v4034, 4294901760
    %v5452 = vsub.f32 %v4034, %v5451
    %v5453 = vand.u32 %v5452, 4294901760
    %5454 = vmatpush1.msra.mxu0 %v5453
    %5455 = vmatprep.subr.mxu0 0.0
    %v5456 = vand.u32 %v4033, 4294901760
    %v5457 = vsub.f32 %v4033, %v5456
    %v5458 = vand.u32 %v5457, 4294901760
    %5459 = vmatpush1.msra.mxu0 %v5458
    %5460 = vmatprep.subr.mxu0 0.0
    %v5461 = vand.u32 %v4032, 4294901760
    %v5462 = vsub.f32 %v4032, %v5461
    %v5463 = vand.u32 %v5462, 4294901760
    %5464 = vmatpush1.msra.mxu0 %v5463
    %5465 = vmatprep.subr.mxu0 0.0
    %v5466 = vand.u32 %v4031, 4294901760
    %v5467 = vsub.f32 %v4031, %v5466
    %v5468 = vand.u32 %v5467, 4294901760
    %5469 = vmatpush1.msra.mxu0 %v5468
    %5470 = vmatprep.subr.mxu0 0.0
    %5471 = vmatpush2.msra.mxu0 0.0
    %5472 = vmatprep.subr.mxu0 0.0
    %5473 = vmatpush2.msra.mxu0 0.0
    %5474 = vmatprep.subr.mxu0 0.0
    %5475 = vmatpush2.msra.mxu0 0.0
    %5476 = vmatprep.subr.mxu0 0.0
    %5477 = vmatpush2.msra.mxu0 0.0
    %5478 = vmatprep.subr.mxu0 0.0
    %5479 = vmatpush2.msra.mxu0 0.0
    %5480 = vmatprep.subr.mxu0 0.0
    %5481 = vmatpush2.msra.mxu0 0.0
    %5482 = vmatprep.subr.mxu0 0.0
    %5483 = vmatpush2.msra.mxu0 0.0
    %5484 = vmatprep.subr.mxu0 0.0
    %5485 = vmatpush2.msra.mxu0 0.0
    %5486 = vmatprep.subr.mxu0 0.0
    %5487 = vmatpush2.msra.mxu0 0.0
    %5488 = vmatprep.subr.mxu0 0.0
    %5489 = vmatpush2.msra.mxu0 0.0
    %5490 = vmatprep.subr.mxu0 0.0
    %5491 = vmatpush2.msra.mxu0 0.0
    %5492 = vmatprep.subr.mxu0 0.0
    %5493 = vmatpush2.msra.mxu0 0.0
    %5494 = vmatprep.subr.mxu0 0.0
    %5495 = vmatpush2.msra.mxu0 0.0
    %5496 = vmatprep.subr.mxu0 0.0
    %5497 = vmatpush2.msra.mxu0 0.0
    %5498 = vmatprep.subr.mxu0 0.0
    %5499 = vmatpush2.msra.mxu0 0.0
    %5500 = vmatprep.subr.mxu0 0.0
    %5501 = vmatpush2.msra.mxu0 0.0
    %5502 = vmatprep.mubr.f32.mxu0 0.0
    %v5503 = vand.u32 %v4043, 4294901760
    %5504 = vmatmul.mubr.f32.gmra.mxu0 %v5503
    %v5505 = vpop.f32.mrf.mxu0
    %v5506 = vadd.f32 %v5175, %v5505
    %v5507 = vpop.f32.mrf.mxu0
    %5508 = vmatprep.mubr.f32.mxu0 0.0
    %v5509 = vand.u32 %v4046, 4294901760
    %5510 = vmatmul.mubr.f32.gmra.mxu0 %v5509
    %v5511 = vpop.f32.mrf.mxu0
    %v5512 = vadd.f32 %v5183, %v5511
    %v5513 = vpop.f32.mrf.mxu0
    %5514 = vmatprep.mubr.f32.mxu0 0.0
    %v5515 = vand.u32 %v4049, 4294901760
    %5516 = vmatmul.mubr.f32.gmra.mxu0 %v5515
    %v5517 = vpop.f32.mrf.mxu0
    %v5518 = vadd.f32 %v5191, %v5517
    %v5519 = vpop.f32.mrf.mxu0
    %5520 = vmatprep.mubr.f32.mxu0 0.0
    %v5521 = vand.u32 %v4052, 4294901760
    %5522 = vmatmul.mubr.f32.gmra.mxu0 %v5521
    %v5523 = vpop.f32.mrf.mxu0
    %v5524 = vadd.f32 %v5199, %v5523
    %v5525 = vpop.f32.mrf.mxu0
    %5526 = vmatprep.mubr.f32.mxu0 0.0
    %v5527 = vand.u32 %v4055, 4294901760
    %5528 = vmatmul.mubr.f32.gmra.mxu0 %v5527
    %v5529 = vpop.f32.mrf.mxu0
    %v5530 = vadd.f32 %v5207, %v5529
    %v5531 = vpop.f32.mrf.mxu0
    %5532 = vmatprep.mubr.f32.mxu0 0.0
    %v5533 = vand.u32 %v4058, 4294901760
    %5534 = vmatmul.mubr.f32.gmra.mxu0 %v5533
    %v5535 = vpop.f32.mrf.mxu0
    %v5536 = vadd.f32 %v5215, %v5535
    %v5537 = vpop.f32.mrf.mxu0
    %5538 = vmatprep.mubr.f32.mxu0 0.0
    %v5539 = vand.u32 %v4061, 4294901760
    %5540 = vmatmul.mubr.f32.gmra.mxu0 %v5539
    %v5541 = vpop.f32.mrf.mxu0
    %v5542 = vadd.f32 %v5223, %v5541
    %v5543 = vpop.f32.mrf.mxu0
    %5544 = vmatprep.mubr.f32.mxu0 0.0
    %v5545 = vand.u32 %v4064, 4294901760
    %5546 = vmatmul.mubr.f32.gmra.mxu0 %v5545
    %v5547 = vpop.f32.mrf.mxu0
    %v5548 = vadd.f32 %v5231, %v5547
    %v5549 = vpop.f32.mrf.mxu0
    %5550 = vmatprep.mubr.f32.mxu0 0.0
    %v5551 = vand.u32 %v4067, 4294901760
    %5552 = vmatmul.mubr.f32.gmra.mxu0 %v5551
    %v5553 = vpop.f32.mrf.mxu0
    %v5554 = vadd.f32 %v5239, %v5553
    %v5555 = vpop.f32.mrf.mxu0
    %5556 = vmatprep.mubr.f32.mxu0 0.0
    %v5557 = vand.u32 %v4070, 4294901760
    %5558 = vmatmul.mubr.f32.gmra.mxu0 %v5557
    %v5559 = vpop.f32.mrf.mxu0
    %v5560 = vadd.f32 %v5247, %v5559
    %v5561 = vpop.f32.mrf.mxu0
    %5562 = vmatprep.mubr.f32.mxu0 0.0
    %v5563 = vand.u32 %v4073, 4294901760
    %5564 = vmatmul.mubr.f32.gmra.mxu0 %v5563
    %v5565 = vpop.f32.mrf.mxu0
    %v5566 = vadd.f32 %v5255, %v5565
    %v5567 = vpop.f32.mrf.mxu0
    %5568 = vmatprep.mubr.f32.mxu0 0.0
    %v5569 = vand.u32 %v4076, 4294901760
    %5570 = vmatmul.mubr.f32.gmra.mxu0 %v5569
    %v5571 = vpop.f32.mrf.mxu0
    %v5572 = vadd.f32 %v5263, %v5571
    %v5573 = vpop.f32.mrf.mxu0
    %5574 = vmatprep.mubr.f32.mxu0 0.0
    %v5575 = vand.u32 %v4079, 4294901760
    %5576 = vmatmul.mubr.f32.gmra.mxu0 %v5575
    %v5577 = vpop.f32.mrf.mxu0
    %v5578 = vadd.f32 %v5271, %v5577
    %v5579 = vpop.f32.mrf.mxu0
    %5580 = vmatprep.mubr.f32.mxu0 0.0
    %v5581 = vand.u32 %v4082, 4294901760
    %5582 = vmatmul.mubr.f32.gmra.mxu0 %v5581
    %v5583 = vpop.f32.mrf.mxu0
    %v5584 = vadd.f32 %v5279, %v5583
    %v5585 = vpop.f32.mrf.mxu0
    %5586 = vmatprep.mubr.f32.mxu0 0.0
    %v5587 = vand.u32 %v4085, 4294901760
    %5588 = vmatmul.mubr.f32.gmra.mxu0 %v5587
    %v5589 = vpop.f32.mrf.mxu0
    %v5590 = vadd.f32 %v5287, %v5589
    %v5591 = vpop.f32.mrf.mxu0
    %5592 = vmatprep.mubr.f32.mxu0 0.0
    %v5593 = vand.u32 %v4088, 4294901760
    %5594 = vmatmul.mubr.f32.gmra.mxu0 %v5593
    %v5595 = vpop.f32.mrf.mxu0
    %v5596 = vadd.f32 %v5295, %v5595
    %v5597 = vpop.f32.mrf.mxu0
    %5598 = vmatprep.mubr.f32.mxu0 0.0
    %v5599 = vand.u32 %v4091, 4294901760
    %5600 = vmatmul.mubr.f32.gmra.mxu0 %v5599
    %v5601 = vpop.f32.mrf.mxu0
    %v5602 = vadd.f32 %v5303, %v5601
    %v5603 = vpop.f32.mrf.mxu0
    %5604 = vmatprep.mubr.f32.mxu0 0.0
    %v5605 = vand.u32 %v4094, 4294901760
    %5606 = vmatmul.mubr.f32.gmra.mxu0 %v5605
    %v5607 = vpop.f32.mrf.mxu0
    %v5608 = vadd.f32 %v5311, %v5607
    %v5609 = vpop.f32.mrf.mxu0
    %5610 = vmatprep.mubr.f32.mxu0 0.0
    %v5611 = vand.u32 %v4097, 4294901760
    %5612 = vmatmul.mubr.f32.gmra.mxu0 %v5611
    %v5613 = vpop.f32.mrf.mxu0
    %v5614 = vadd.f32 %v5319, %v5613
    %v5615 = vpop.f32.mrf.mxu0
    %5616 = vmatprep.mubr.f32.mxu0 0.0
    %v5617 = vand.u32 %v4100, 4294901760
    %5618 = vmatmul.mubr.f32.gmra.mxu0 %v5617
    %v5619 = vpop.f32.mrf.mxu0
    %v5620 = vadd.f32 %v5327, %v5619
    %v5621 = vpop.f32.mrf.mxu0
    %5622 = vmatprep.mubr.f32.mxu0 0.0
    %v5623 = vand.u32 %v4103, 4294901760
    %5624 = vmatmul.mubr.f32.gmra.mxu0 %v5623
    %v5625 = vpop.f32.mrf.mxu0
    %v5626 = vadd.f32 %v5335, %v5625
    %v5627 = vpop.f32.mrf.mxu0
    %5628 = vmatprep.mubr.f32.mxu0 0.0
    %v5629 = vand.u32 %v4106, 4294901760
    %5630 = vmatmul.mubr.f32.gmra.mxu0 %v5629
    %v5631 = vpop.f32.mrf.mxu0
    %v5632 = vadd.f32 %v5343, %v5631
    %v5633 = vpop.f32.mrf.mxu0
    %5634 = vmatprep.mubr.f32.mxu0 0.0
    %v5635 = vand.u32 %v4109, 4294901760
    %5636 = vmatmul.mubr.f32.gmra.mxu0 %v5635
    %v5637 = vpop.f32.mrf.mxu0
    %v5638 = vadd.f32 %v5351, %v5637
    %v5639 = vpop.f32.mrf.mxu0
    %5640 = vmatprep.mubr.f32.mxu0 0.0
    %v5641 = vand.u32 %v4112, 4294901760
    %5642 = vmatmul.mubr.f32.gmra.mxu0 %v5641
    %v5643 = vpop.f32.mrf.mxu0
    %v5644 = vadd.f32 %v5359, %v5643
    %v5645 = vpop.f32.mrf.mxu0
    %5646 = vmatprep.mubr.f32.mxu0 0.0
    %v5647 = vand.u32 %v4115, 4294901760
    %5648 = vmatmul.mubr.f32.gmra.mxu0 %v5647
    %v5649 = vpop.f32.mrf.mxu0
    %v5650 = vadd.f32 %v5367, %v5649
    %v5651 = vpop.f32.mrf.mxu0
    %5652 = vmatprep.mubr.f32.mxu0 0.0
    %v5653 = vand.u32 %v4118, 4294901760
    %5654 = vmatmul.mubr.f32.gmra.mxu0 %v5653
    %v5655 = vpop.f32.mrf.mxu0
    %v5656 = vadd.f32 %v5375, %v5655
    %v5657 = vpop.f32.mrf.mxu0
    %5658 = vmatprep.mubr.f32.mxu0 0.0
    %v5659 = vand.u32 %v4121, 4294901760
    %5660 = vmatmul.mubr.f32.gmra.mxu0 %v5659
    %v5661 = vpop.f32.mrf.mxu0
    %v5662 = vadd.f32 %v5383, %v5661
    %v5663 = vpop.f32.mrf.mxu0
    %5664 = vmatprep.mubr.f32.mxu0 0.0
    %v5665 = vand.u32 %v4124, 4294901760
    %5666 = vmatmul.mubr.f32.gmra.mxu0 %v5665
    %v5667 = vpop.f32.mrf.mxu0
    %v5668 = vadd.f32 %v5391, %v5667
    %v5669 = vpop.f32.mrf.mxu0
    %5670 = vmatprep.mubr.f32.mxu0 0.0
    %v5671 = vand.u32 %v4127, 4294901760
    %5672 = vmatmul.mubr.f32.gmra.mxu0 %v5671
    %v5673 = vpop.f32.mrf.mxu0
    %v5674 = vadd.f32 %v5399, %v5673
    %v5675 = vpop.f32.mrf.mxu0
    %5676 = vmatprep.mubr.f32.mxu0 0.0
    %v5677 = vand.u32 %v4130, 4294901760
    %5678 = vmatmul.mubr.f32.gmra.mxu0 %v5677
    %v5679 = vpop.f32.mrf.mxu0
    %v5680 = vadd.f32 %v5407, %v5679
    %v5681 = vpop.f32.mrf.mxu0
    %5682 = vmatprep.mubr.f32.mxu0 0.0
    %v5683 = vand.u32 %v4133, 4294901760
    %5684 = vmatmul.mubr.f32.gmra.mxu0 %v5683
    %v5685 = vpop.f32.mrf.mxu0
    %v5686 = vadd.f32 %v5415, %v5685
    %v5687 = vpop.f32.mrf.mxu0
    %5688 = vmatprep.mubr.f32.mxu0 0.0
    %v5689 = vand.u32 %v4136, 4294901760
    %5690 = vmatmul.mubr.f32.gmra.mxu0 %v5689
    %v5691 = vpop.f32.mrf.mxu0
    %v5692 = vadd.f32 %v5423, %v5691
    %v5693 = vpop.f32.mrf.mxu0
    %5694 = vdwg.mxu0
    %5695 = vmatprep.subr.mxu0 0.0
    %5696 = vmatpush1.msra.mxu0 0.0
    %5697 = vmatprep.subr.mxu0 0.0
    %5698 = vmatpush1.msra.mxu0 0.0
    %5699 = vmatprep.subr.mxu0 0.0
    %5700 = vmatpush1.msra.mxu0 0.0
    %5701 = vmatprep.subr.mxu0 0.0
    %5702 = vmatpush1.msra.mxu0 0.0
    %5703 = vmatprep.subr.mxu0 0.0
    %5704 = vmatpush1.msra.mxu0 0.0
    %5705 = vmatprep.subr.mxu0 0.0
    %5706 = vmatpush1.msra.mxu0 0.0
    %5707 = vmatprep.subr.mxu0 0.0
    %5708 = vmatpush1.msra.mxu0 0.0
    %5709 = vmatprep.subr.mxu0 0.0
    %5710 = vmatpush1.msra.mxu0 0.0
    %5711 = vmatprep.subr.mxu0 0.0
    %5712 = vmatpush1.msra.mxu0 0.0
    %5713 = vmatprep.subr.mxu0 0.0
    %5714 = vmatpush1.msra.mxu0 0.0
    %5715 = vmatprep.subr.mxu0 0.0
    %5716 = vmatpush1.msra.mxu0 0.0
    %5717 = vmatprep.subr.mxu0 0.0
    %5718 = vmatpush1.msra.mxu0 0.0
    %5719 = vmatprep.subr.mxu0 0.0
    %v5720 = vand.u32 %v4034, 4294901760
    %5721 = vmatpush1.msra.mxu0 %v5720
    %5722 = vmatprep.subr.mxu0 0.0
    %v5723 = vand.u32 %v4033, 4294901760
    %5724 = vmatpush1.msra.mxu0 %v5723
    %5725 = vmatprep.subr.mxu0 0.0
    %v5726 = vand.u32 %v4032, 4294901760
    %5727 = vmatpush1.msra.mxu0 %v5726
    %5728 = vmatprep.subr.mxu0 0.0
    %v5729 = vand.u32 %v4031, 4294901760
    %5730 = vmatpush1.msra.mxu0 %v5729
    %5731 = vmatprep.subr.mxu0 0.0
    %5732 = vmatpush2.msra.mxu0 0.0
    %5733 = vmatprep.subr.mxu0 0.0
    %5734 = vmatpush2.msra.mxu0 0.0
    %5735 = vmatprep.subr.mxu0 0.0
    %5736 = vmatpush2.msra.mxu0 0.0
    %5737 = vmatprep.subr.mxu0 0.0
    %5738 = vmatpush2.msra.mxu0 0.0
    %5739 = vmatprep.subr.mxu0 0.0
    %5740 = vmatpush2.msra.mxu0 0.0
    %5741 = vmatprep.subr.mxu0 0.0
    %5742 = vmatpush2.msra.mxu0 0.0
    %5743 = vmatprep.subr.mxu0 0.0
    %5744 = vmatpush2.msra.mxu0 0.0
    %5745 = vmatprep.subr.mxu0 0.0
    %5746 = vmatpush2.msra.mxu0 0.0
    %5747 = vmatprep.subr.mxu0 0.0
    %5748 = vmatpush2.msra.mxu0 0.0
    %5749 = vmatprep.subr.mxu0 0.0
    %5750 = vmatpush2.msra.mxu0 0.0
    %5751 = vmatprep.subr.mxu0 0.0
    %5752 = vmatpush2.msra.mxu0 0.0
    %5753 = vmatprep.subr.mxu0 0.0
    %5754 = vmatpush2.msra.mxu0 0.0
    %5755 = vmatprep.subr.mxu0 0.0
    %5756 = vmatpush2.msra.mxu0 0.0
    %5757 = vmatprep.subr.mxu0 0.0
    %5758 = vmatpush2.msra.mxu0 0.0
    %5759 = vmatprep.subr.mxu0 0.0
    %5760 = vmatpush2.msra.mxu0 0.0
    %5761 = vmatprep.subr.mxu0 0.0
    %5762 = vmatpush2.msra.mxu0 0.0
    %5763 = vmatprep.mubr.f32.mxu0 0.0
    %v5764 = vand.u32 %v4043, 4294901760
    %5765 = vmatmul.mubr.f32.gmra.mxu0 %v5764
    %v5766 = vpop.f32.mrf.mxu0
    %v5767 = vadd.f32 %v5506, %v5766
    %v5768 = vpop.f32.mrf.mxu0
    %5769 = vmatprep.mubr.f32.mxu0 0.0
    %v5770 = vand.u32 %v4046, 4294901760
    %5771 = vmatmul.mubr.f32.gmra.mxu0 %v5770
    %v5772 = vpop.f32.mrf.mxu0
    %v5773 = vadd.f32 %v5512, %v5772
    %v5774 = vpop.f32.mrf.mxu0
    %5775 = vmatprep.mubr.f32.mxu0 0.0
    %v5776 = vand.u32 %v4049, 4294901760
    %5777 = vmatmul.mubr.f32.gmra.mxu0 %v5776
    %v5778 = vpop.f32.mrf.mxu0
    %v5779 = vadd.f32 %v5518, %v5778
    %v5780 = vpop.f32.mrf.mxu0
    %5781 = vmatprep.mubr.f32.mxu0 0.0
    %v5782 = vand.u32 %v4052, 4294901760
    %5783 = vmatmul.mubr.f32.gmra.mxu0 %v5782
    %v5784 = vpop.f32.mrf.mxu0
    %v5785 = vadd.f32 %v5524, %v5784
    %v5786 = vpop.f32.mrf.mxu0
    %5787 = vmatprep.mubr.f32.mxu0 0.0
    %v5788 = vand.u32 %v4055, 4294901760
    %5789 = vmatmul.mubr.f32.gmra.mxu0 %v5788
    %v5790 = vpop.f32.mrf.mxu0
    %v5791 = vadd.f32 %v5530, %v5790
    %v5792 = vpop.f32.mrf.mxu0
    %5793 = vmatprep.mubr.f32.mxu0 0.0
    %v5794 = vand.u32 %v4058, 4294901760
    %5795 = vmatmul.mubr.f32.gmra.mxu0 %v5794
    %v5796 = vpop.f32.mrf.mxu0
    %v5797 = vadd.f32 %v5536, %v5796
    %v5798 = vpop.f32.mrf.mxu0
    %5799 = vmatprep.mubr.f32.mxu0 0.0
    %v5800 = vand.u32 %v4061, 4294901760
    %5801 = vmatmul.mubr.f32.gmra.mxu0 %v5800
    %v5802 = vpop.f32.mrf.mxu0
    %v5803 = vadd.f32 %v5542, %v5802
    %v5804 = vpop.f32.mrf.mxu0
    %5805 = vmatprep.mubr.f32.mxu0 0.0
    %v5806 = vand.u32 %v4064, 4294901760
    %5807 = vmatmul.mubr.f32.gmra.mxu0 %v5806
    %v5808 = vpop.f32.mrf.mxu0
    %v5809 = vadd.f32 %v5548, %v5808
    %v5810 = vpop.f32.mrf.mxu0
    %5811 = vmatprep.mubr.f32.mxu0 0.0
    %v5812 = vand.u32 %v4067, 4294901760
    %5813 = vmatmul.mubr.f32.gmra.mxu0 %v5812
    %v5814 = vpop.f32.mrf.mxu0
    %v5815 = vadd.f32 %v5554, %v5814
    %v5816 = vpop.f32.mrf.mxu0
    %5817 = vmatprep.mubr.f32.mxu0 0.0
    %v5818 = vand.u32 %v4070, 4294901760
    %5819 = vmatmul.mubr.f32.gmra.mxu0 %v5818
    %v5820 = vpop.f32.mrf.mxu0
    %v5821 = vadd.f32 %v5560, %v5820
    %v5822 = vpop.f32.mrf.mxu0
    %5823 = vmatprep.mubr.f32.mxu0 0.0
    %v5824 = vand.u32 %v4073, 4294901760
    %5825 = vmatmul.mubr.f32.gmra.mxu0 %v5824
    %v5826 = vpop.f32.mrf.mxu0
    %v5827 = vadd.f32 %v5566, %v5826
    %v5828 = vpop.f32.mrf.mxu0
    %5829 = vmatprep.mubr.f32.mxu0 0.0
    %v5830 = vand.u32 %v4076, 4294901760
    %5831 = vmatmul.mubr.f32.gmra.mxu0 %v5830
    %v5832 = vpop.f32.mrf.mxu0
    %v5833 = vadd.f32 %v5572, %v5832
    %v5834 = vpop.f32.mrf.mxu0
    %5835 = vmatprep.mubr.f32.mxu0 0.0
    %v5836 = vand.u32 %v4079, 4294901760
    %5837 = vmatmul.mubr.f32.gmra.mxu0 %v5836
    %v5838 = vpop.f32.mrf.mxu0
    %v5839 = vadd.f32 %v5578, %v5838
    %v5840 = vpop.f32.mrf.mxu0
    %5841 = vmatprep.mubr.f32.mxu0 0.0
    %v5842 = vand.u32 %v4082, 4294901760
    %5843 = vmatmul.mubr.f32.gmra.mxu0 %v5842
    %v5844 = vpop.f32.mrf.mxu0
    %v5845 = vadd.f32 %v5584, %v5844
    %v5846 = vpop.f32.mrf.mxu0
    %5847 = vmatprep.mubr.f32.mxu0 0.0
    %v5848 = vand.u32 %v4085, 4294901760
    %5849 = vmatmul.mubr.f32.gmra.mxu0 %v5848
    %v5850 = vpop.f32.mrf.mxu0
    %v5851 = vadd.f32 %v5590, %v5850
    %v5852 = vpop.f32.mrf.mxu0
    %5853 = vmatprep.mubr.f32.mxu0 0.0
    %v5854 = vand.u32 %v4088, 4294901760
    %5855 = vmatmul.mubr.f32.gmra.mxu0 %v5854
    %v5856 = vpop.f32.mrf.mxu0
    %v5857 = vadd.f32 %v5596, %v5856
    %v5858 = vpop.f32.mrf.mxu0
    %5859 = vmatprep.mubr.f32.mxu0 0.0
    %v5860 = vand.u32 %v4091, 4294901760
    %5861 = vmatmul.mubr.f32.gmra.mxu0 %v5860
    %v5862 = vpop.f32.mrf.mxu0
    %v5863 = vadd.f32 %v5602, %v5862
    %v5864 = vpop.f32.mrf.mxu0
    %5865 = vmatprep.mubr.f32.mxu0 0.0
    %v5866 = vand.u32 %v4094, 4294901760
    %5867 = vmatmul.mubr.f32.gmra.mxu0 %v5866
    %v5868 = vpop.f32.mrf.mxu0
    %v5869 = vadd.f32 %v5608, %v5868
    %v5870 = vpop.f32.mrf.mxu0
    %5871 = vmatprep.mubr.f32.mxu0 0.0
    %v5872 = vand.u32 %v4097, 4294901760
    %5873 = vmatmul.mubr.f32.gmra.mxu0 %v5872
    %v5874 = vpop.f32.mrf.mxu0
    %v5875 = vadd.f32 %v5614, %v5874
    %v5876 = vpop.f32.mrf.mxu0
    %5877 = vmatprep.mubr.f32.mxu0 0.0
    %v5878 = vand.u32 %v4100, 4294901760
    %5879 = vmatmul.mubr.f32.gmra.mxu0 %v5878
    %v5880 = vpop.f32.mrf.mxu0
    %v5881 = vadd.f32 %v5620, %v5880
    %v5882 = vpop.f32.mrf.mxu0
    %5883 = vmatprep.mubr.f32.mxu0 0.0
    %v5884 = vand.u32 %v4103, 4294901760
    %5885 = vmatmul.mubr.f32.gmra.mxu0 %v5884
    %v5886 = vpop.f32.mrf.mxu0
    %v5887 = vadd.f32 %v5626, %v5886
    %v5888 = vpop.f32.mrf.mxu0
    %5889 = vmatprep.mubr.f32.mxu0 0.0
    %v5890 = vand.u32 %v4106, 4294901760
    %5891 = vmatmul.mubr.f32.gmra.mxu0 %v5890
    %v5892 = vpop.f32.mrf.mxu0
    %v5893 = vadd.f32 %v5632, %v5892
    %v5894 = vpop.f32.mrf.mxu0
    %5895 = vmatprep.mubr.f32.mxu0 0.0
    %v5896 = vand.u32 %v4109, 4294901760
    %5897 = vmatmul.mubr.f32.gmra.mxu0 %v5896
    %v5898 = vpop.f32.mrf.mxu0
    %v5899 = vadd.f32 %v5638, %v5898
    %v5900 = vpop.f32.mrf.mxu0
    %5901 = vmatprep.mubr.f32.mxu0 0.0
    %v5902 = vand.u32 %v4112, 4294901760
    %5903 = vmatmul.mubr.f32.gmra.mxu0 %v5902
    %v5904 = vpop.f32.mrf.mxu0
    %v5905 = vadd.f32 %v5644, %v5904
    %v5906 = vpop.f32.mrf.mxu0
    %5907 = vmatprep.mubr.f32.mxu0 0.0
    %v5908 = vand.u32 %v4115, 4294901760
    %5909 = vmatmul.mubr.f32.gmra.mxu0 %v5908
    %v5910 = vpop.f32.mrf.mxu0
    %v5911 = vadd.f32 %v5650, %v5910
    %v5912 = vpop.f32.mrf.mxu0
    %5913 = vmatprep.mubr.f32.mxu0 0.0
    %v5914 = vand.u32 %v4118, 4294901760
    %5915 = vmatmul.mubr.f32.gmra.mxu0 %v5914
    %v5916 = vpop.f32.mrf.mxu0
    %v5917 = vadd.f32 %v5656, %v5916
    %v5918 = vpop.f32.mrf.mxu0
    %5919 = vmatprep.mubr.f32.mxu0 0.0
    %v5920 = vand.u32 %v4121, 4294901760
    %5921 = vmatmul.mubr.f32.gmra.mxu0 %v5920
    %v5922 = vpop.f32.mrf.mxu0
    %v5923 = vadd.f32 %v5662, %v5922
    %v5924 = vpop.f32.mrf.mxu0
    %5925 = vmatprep.mubr.f32.mxu0 0.0
    %v5926 = vand.u32 %v4124, 4294901760
    %5927 = vmatmul.mubr.f32.gmra.mxu0 %v5926
    %v5928 = vpop.f32.mrf.mxu0
    %v5929 = vadd.f32 %v5668, %v5928
    %v5930 = vpop.f32.mrf.mxu0
    %5931 = vmatprep.mubr.f32.mxu0 0.0
    %v5932 = vand.u32 %v4127, 4294901760
    %5933 = vmatmul.mubr.f32.gmra.mxu0 %v5932
    %v5934 = vpop.f32.mrf.mxu0
    %v5935 = vadd.f32 %v5674, %v5934
    %v5936 = vpop.f32.mrf.mxu0
    %5937 = vmatprep.mubr.f32.mxu0 0.0
    %v5938 = vand.u32 %v4130, 4294901760
    %5939 = vmatmul.mubr.f32.gmra.mxu0 %v5938
    %v5940 = vpop.f32.mrf.mxu0
    %v5941 = vadd.f32 %v5680, %v5940
    %v5942 = vpop.f32.mrf.mxu0
    %5943 = vmatprep.mubr.f32.mxu0 0.0
    %v5944 = vand.u32 %v4133, 4294901760
    %5945 = vmatmul.mubr.f32.gmra.mxu0 %v5944
    %v5946 = vpop.f32.mrf.mxu0
    %v5947 = vadd.f32 %v5686, %v5946
    %v5948 = vpop.f32.mrf.mxu0
    %5949 = vmatprep.mubr.f32.mxu0 0.0
    %v5950 = vand.u32 %v4136, 4294901760
    %5951 = vmatmul.mubr.f32.gmra.mxu0 %v5950
    %v5952 = vpop.f32.mrf.mxu0
    %v5953 = vadd.f32 %v5692, %v5952
    %v5954 = vpop.f32.mrf.mxu0
    %5955 = vdwg.mxu0
    %v5956 = vmul.f32 %v5767, 0.5
    %v5957 = vmul.f32 %v5773, 0.5
    %v5958 = vmul.f32 %v5779, 0.5
    %v5959 = vmul.f32 %v5785, 0.5
    %v5960 = vmul.f32 %v5791, 0.5
    %v5961 = vmul.f32 %v5797, 0.5
    %v5962 = vmul.f32 %v5803, 0.5
    %v5963 = vmul.f32 %v5809, 0.5
    %v5964 = vmul.f32 %v5815, 0.5
    %v5965 = vmul.f32 %v5821, 0.5
    %v5966 = vmul.f32 %v5827, 0.5
    %v5967 = vmul.f32 %v5833, 0.5
    %v5968 = vmul.f32 %v5839, 0.5
    %v5969 = vmul.f32 %v5845, 0.5
    %v5970 = vmul.f32 %v5851, 0.5
    %v5971 = vmul.f32 %v5857, 0.5
    %v5972 = vmul.f32 %v5863, 0.5
    %v5973 = vmul.f32 %v5869, 0.5
    %v5974 = vmul.f32 %v5875, 0.5
    %v5975 = vmul.f32 %v5881, 0.5
    %v5976 = vmul.f32 %v5887, 0.5
    %v5977 = vmul.f32 %v5893, 0.5
    %v5978 = vmul.f32 %v5899, 0.5
    %v5979 = vmul.f32 %v5905, 0.5
    %v5980 = vmul.f32 %v5911, 0.5
    %v5981 = vmul.f32 %v5917, 0.5
    %v5982 = vmul.f32 %v5923, 0.5
    %v5983 = vmul.f32 %v5929, 0.5
    %v5984 = vmul.f32 %v5935, 0.5
    %v5985 = vmul.f32 %v5941, 0.5
    %v5986 = vmul.f32 %v5947, 0.5
    %v5987 = vmul.f32 %v5953, 0.5
    %v5988 = vmul.f32 %v5956, 1.442695
    %v5989 = vpow.pop %v5988
    %v5990 = vmul.f32 %v5957, 1.442695
    %v5991 = vpow.pop %v5990
    %v5992 = vmul.f32 %v5958, 1.442695
    %v5993 = vpow.pop %v5992
    %v5994 = vmul.f32 %v5959, 1.442695
    %v5995 = vpow.pop %v5994
    %v5996 = vmul.f32 %v5960, 1.442695
    %v5997 = vpow.pop %v5996
    %v5998 = vmul.f32 %v5961, 1.442695
    %v5999 = vpow.pop %v5998
    %v6000 = vmul.f32 %v5962, 1.442695
    %v6001 = vpow.pop %v6000
    %v6002 = vmul.f32 %v5963, 1.442695
    %v6003 = vpow.pop %v6002
    %v6004 = vmul.f32 %v5964, 1.442695
    %v6005 = vpow.pop %v6004
    %v6006 = vmul.f32 %v5965, 1.442695
    %v6007 = vpow.pop %v6006
    %v6008 = vmul.f32 %v5966, 1.442695
    %v6009 = vpow.pop %v6008
    %v6010 = vmul.f32 %v5967, 1.442695
    %v6011 = vpow.pop %v6010
    %v6012 = vmul.f32 %v5968, 1.442695
    %v6013 = vpow.pop %v6012
    %v6014 = vmul.f32 %v5969, 1.442695
    %v6015 = vpow.pop %v6014
    %v6016 = vmul.f32 %v5970, 1.442695
    %v6017 = vpow.pop %v6016
    %v6018 = vmul.f32 %v5971, 1.442695
    %v6019 = vpow.pop %v6018
    %v6020 = vmul.f32 %v5972, 1.442695
    %v6021 = vpow.pop %v6020
    %v6022 = vmul.f32 %v5973, 1.442695
    %v6023 = vpow.pop %v6022
    %v6024 = vmul.f32 %v5974, 1.442695
    %v6025 = vpow.pop %v6024
    %v6026 = vmul.f32 %v5975, 1.442695
    %v6027 = vpow.pop %v6026
    %v6028 = vmul.f32 %v5976, 1.442695
    %v6029 = vpow.pop %v6028
    %v6030 = vmul.f32 %v5977, 1.442695
    %v6031 = vpow.pop %v6030
    %v6032 = vmul.f32 %v5978, 1.442695
    %v6033 = vpow.pop %v6032
    %v6034 = vmul.f32 %v5979, 1.442695
    %v6035 = vpow.pop %v6034
    %v6036 = vmul.f32 %v5980, 1.442695
    %v6037 = vpow.pop %v6036
    %v6038 = vmul.f32 %v5981, 1.442695
    %v6039 = vpow.pop %v6038
    %v6040 = vmul.f32 %v5982, 1.442695
    %v6041 = vpow.pop %v6040
    %v6042 = vmul.f32 %v5983, 1.442695
    %v6043 = vpow.pop %v6042
    %v6044 = vmul.f32 %v5984, 1.442695
    %v6045 = vpow.pop %v6044
    %v6046 = vmul.f32 %v5985, 1.442695
    %v6047 = vpow.pop %v6046
    %v6048 = vmul.f32 %v5986, 1.442695
    %v6049 = vpow.pop %v6048
    %v6050 = vmul.f32 %v5987, 1.442695
    %v6051 = vpow.pop %v6050
    %6052 = vst [vmem:[#allocation2] sm:$0xff] %v5767
    %6053 = vst [vmem:[#allocation2 + $0x10] sm:$0xff] %v5773
    %6054 = vst [vmem:[#allocation2 + $0x20] sm:$0xff] %v5779
    %6055 = vst [vmem:[#allocation2 + $0x30] sm:$0xff] %v5785
    %6056 = vst [vmem:[#allocation2 + $0x40] sm:$0xff] %v5791
    %6057 = vst [vmem:[#allocation2 + $0x50] sm:$0xff] %v5797
    %6058 = vst [vmem:[#allocation2 + $0x60] sm:$0xff] %v5803
    %6059 = vst [vmem:[#allocation2 + $0x70] sm:$0xff] %v5809
    %6060 = vst [vmem:[#allocation2 + $0x80] sm:$0xff] %v5815
    %6061 = vst [vmem:[#allocation2 + $0x90] sm:$0xff] %v5821
    %6062 = vst [vmem:[#allocation2 + $0xa0] sm:$0xff] %v5827
    %6063 = vst [vmem:[#allocation2 + $0xb0] sm:$0xff] %v5833
    %6064 = vst [vmem:[#allocation2 + $0xc0] sm:$0xff] %v5839
    %6065 = vst [vmem:[#allocation2 + $0xd0] sm:$0xff] %v5845
    %6066 = vst [vmem:[#allocation2 + $0xe0] sm:$0xff] %v5851
    %6067 = vst [vmem:[#allocation2 + $0xf0] sm:$0xff] %v5857
    %6068 = vst [vmem:[#allocation2 + $0x100] sm:$0xff] %v5863
    %6069 = vst [vmem:[#allocation2 + $0x110] sm:$0xff] %v5869
    %6070 = vst [vmem:[#allocation2 + $0x120] sm:$0xff] %v5875
    %6071 = vst [vmem:[#allocation2 + $0x130] sm:$0xff] %v5881
    %6072 = vst [vmem:[#allocation2 + $0x140] sm:$0xff] %v5887
    %6073 = vst [vmem:[#allocation2 + $0x150] sm:$0xff] %v5893
    %6074 = vst [vmem:[#allocation2 + $0x160] sm:$0xff] %v5899
    %6075 = vst [vmem:[#allocation2 + $0x170] sm:$0xff] %v5905
    %6076 = vst [vmem:[#allocation2 + $0x180] sm:$0xff] %v5911
    %6077 = vst [vmem:[#allocation2 + $0x190] sm:$0xff] %v5917
    %6078 = vst [vmem:[#allocation2 + $0x1a0] sm:$0xff] %v5923
    %6079 = vst [vmem:[#allocation2 + $0x1b0] sm:$0xff] %v5929
    %6080 = vst [vmem:[#allocation2 + $0x1c0] sm:$0xff] %v5935
    %6081 = vst [vmem:[#allocation2 + $0x1d0] sm:$0xff] %v5941
    %6082 = vst [vmem:[#allocation2 + $0x1e0] sm:$0xff] %v5947
    %6083 = vst [vmem:[#allocation2 + $0x1f0] sm:$0xff] %v5953
    %6084 = vst [vmem:[#allocation2 + $0x8] sm:$0xff] %v5989
    %6085 = vst [vmem:[#allocation2 + $0x18] sm:$0xff] %v5991
    %6086 = vst [vmem:[#allocation2 + $0x28] sm:$0xff] %v5993
    %6087 = vst [vmem:[#allocation2 + $0x38] sm:$0xff] %v5995
    %6088 = vst [vmem:[#allocation2 + $0x48] sm:$0xff] %v5997
    %6089 = vst [vmem:[#allocation2 + $0x58] sm:$0xff] %v5999
    %6090 = vst [vmem:[#allocation2 + $0x68] sm:$0xff] %v6001
    %6091 = vst [vmem:[#allocation2 + $0x78] sm:$0xff] %v6003
    %6092 = vst [vmem:[#allocation2 + $0x88] sm:$0xff] %v6005
    %6093 = vst [vmem:[#allocation2 + $0x98] sm:$0xff] %v6007
    %6094 = vst [vmem:[#allocation2 + $0xa8] sm:$0xff] %v6009
    %6095 = vst [vmem:[#allocation2 + $0xb8] sm:$0xff] %v6011
    %6096 = vst [vmem:[#allocation2 + $0xc8] sm:$0xff] %v6013
    %6097 = vst [vmem:[#allocation2 + $0xd8] sm:$0xff] %v6015
    %6098 = vst [vmem:[#allocation2 + $0xe8] sm:$0xff] %v6017
    %6099 = vst [vmem:[#allocation2 + $0xf8] sm:$0xff] %v6019
    %6100 = vst [vmem:[#allocation2 + $0x108] sm:$0xff] %v6021
    %6101 = vst [vmem:[#allocation2 + $0x118] sm:$0xff] %v6023
    %6102 = vst [vmem:[#allocation2 + $0x128] sm:$0xff] %v6025
    %6103 = vst [vmem:[#allocation2 + $0x138] sm:$0xff] %v6027
    %6104 = vst [vmem:[#allocation2 + $0x148] sm:$0xff] %v6029
    %6105 = vst [vmem:[#allocation2 + $0x158] sm:$0xff] %v6031
    %6106 = vst [vmem:[#allocation2 + $0x168] sm:$0xff] %v6033
    %6107 = vst [vmem:[#allocation2 + $0x178] sm:$0xff] %v6035
    %6108 = vst [vmem:[#allocation2 + $0x188] sm:$0xff] %v6037
    %6109 = vst [vmem:[#allocation2 + $0x198] sm:$0xff] %v6039
    %6110 = vst [vmem:[#allocation2 + $0x1a8] sm:$0xff] %v6041
    %6111 = vst [vmem:[#allocation2 + $0x1b8] sm:$0xff] %v6043
    %6112 = vst [vmem:[#allocation2 + $0x1c8] sm:$0xff] %v6045
    %6113 = vst [vmem:[#allocation2 + $0x1d8] sm:$0xff] %v6047
    %6114 = vst [vmem:[#allocation2 + $0x1e8] sm:$0xff] %v6049
    %6115 = vst [vmem:[#allocation2 + $0x1f8] sm:$0xff] %v6051
    // Predicated region
    $region30: #{tpu_custom_call.1} parent=1 // pred_check
      _
    $region31: #{tpu_custom_call.1} parent=1 // pred_check_branch
      %6117 = sbr.rel (0) target = $region33
    $region32: #{tpu_custom_call.1} parent=1 // pred_region
      %s6119 = ssub.s32 8192, 8192
      %6120 = vsyncadd [#allocation3], %s6119
      %s6121 = sshll.u32 [#allocation2], 4
      %s6122 = int_to_ptr.vmem [resolvable:$true] %s6121
      %6127 = dma.vmem_to_hbm [thread:$0]  %s6122, 8192, %s7, [#allocation3], 256, 256, 16
    $region33: #{tpu_custom_call.1} parent=1 // pred_fallthru
      _
    // Predicated region
    $region34: #{tpu_custom_call.1} parent=1 // pred_check
      _
    $region35: #{tpu_custom_call.1} parent=1 // pred_check_branch
      %6129 = sbr.rel (0) target = $region37
    $region36: #{tpu_custom_call.1} parent=1 // pred_region
      %6130 = dma.done [#allocation3], 8192
    $region37: #{tpu_custom_call.1} parent=1 // pred_fallthru
      _
    %6131 = vsyncpa [#allocation3], 1

</llo_original>
